<compile_context>
chip_gen: v6e
topology: v6e:2x2x1
jax: 0.10.0
libtpu: 0.0.40
codegen_flags: <defaults>
</compile_context>

<pallas_src>
import functools

import jax
import jax.numpy as jnp
from jax import lax
from jax.experimental import pallas as pl
from jax.experimental.pallas import tpu as pltpu

# ---------------- small synthetic CLIP-vision config ----------------
BATCH = 2
NUM_CHANNELS = 3
IMAGE_SIZE = 32
PATCH = 16
NUM_PATCHES = (IMAGE_SIZE // PATCH) ** 2          # 4
SEQ = NUM_PATCHES + 1                             # 5 (CLS + patches)
EMBED_DIM = 128                                   # lane-dense last dim
NUM_HEADS = 4
HEAD_DIM = EMBED_DIM // NUM_HEADS                 # 32
INTERMEDIATE = 4 * EMBED_DIM                      # 512
NUM_LAYERS = 3
EPS = 1e-5
SELECT_LAYER = -2                                 # args.mm_vision_select_layer
SELECT_FEATURE = "patch"                          # drop CLS token

PATCH_FEATS = NUM_CHANNELS * PATCH * PATCH        # 768
MXU_DTYPE = jnp.bfloat16                          # matmul operands; f32 accumulation


# ---------------- Pallas kernel: one (image, encoder-layer) grid step ----------------
def _clip_layer_kernel(
    patch_ref, clspos_ref, pospatch_ref, wconv_ref, preg_ref, preb_ref,
    ln1g_ref, ln1b_ref, wqkv_ref, bqkv_ref, wo_ref, bo_ref,
    ln2g_ref, ln2b_ref, wfc1_ref, bfc1_ref, wfc2_ref, bfc2_ref,
    o_ref,                                   # (1, SEQ, D) output block
    h_ref, attn_ref,                         # VMEM scratch: carried h, head-concat
    *, num_heads, head_dim, eps):
  f32 = jnp.float32
  D = num_heads * head_dim
  l = pl.program_id(1)                       # layer index (innermost grid axis)

  def layernorm(x, g, b):
    # One-pass statistics: var = E[x^2] - mean^2 (both reduces can co-issue).
    x = x.astype(f32)
    mean = jnp.sum(x, axis=-1, keepdims=True) * (1.0 / D)
    meansq = jnp.sum(x * x, axis=-1, keepdims=True) * (1.0 / D)
    var = meansq - mean * mean
    return (x - mean) * lax.rsqrt(var + eps) * g.astype(f32) + b.astype(f32)

  # ---- embeddings + pre_layrnorm: only at the first layer step of each image ----
  @pl.when(l == 0)
  def _():
    pe = jnp.dot(patch_ref[0].astype(MXU_DTYPE), wconv_ref[...],
                 preferred_element_type=f32)                     # (NP, D)
    pe = pe + pospatch_ref[...].astype(f32)
    cls = clspos_ref[...].astype(f32)        # position row 0 + class_embedding
    # LayerNorm is row-wise, so normalize CLS and patch rows separately and
    # assemble directly in the carried scratch (no concat, no fake rows/cols).
    h_ref[0:1, :] = layernorm(cls, preg_ref[...], preb_ref[...])
    h_ref[1:, :] = layernorm(pe, preg_ref[...], preb_ref[...])

  # ---- encoder layer l: pre-LN self-attention + residual ----
  residual = h_ref[...]                                           # (S, D) f32
  x = layernorm(residual, ln1g_ref[0], ln1b_ref[0])
  qkv = jnp.dot(x.astype(MXU_DTYPE), wqkv_ref[0],
                preferred_element_type=f32) + bqkv_ref[0].astype(f32)   # (S, 3D)
  qkv_bf = qkv.astype(MXU_DTYPE)             # single f32->bf16 cast; Q pre-scaled

  for hh in range(num_heads):
    qs = slice(hh * head_dim, (hh + 1) * head_dim)
    ks = slice(D + hh * head_dim, D + (hh + 1) * head_dim)
    vs = slice(2 * D + hh * head_dim, 2 * D + (hh + 1) * head_dim)
    s = lax.dot_general(qkv_bf[:, qs], qkv_bf[:, ks],
                        dimension_numbers=(((1,), (1,)), ((), ())),
                        preferred_element_type=f32)               # (S, S) f32
    s = s - jnp.max(s, axis=-1, keepdims=True)
    p = jnp.exp(s)
    p = p * pl.reciprocal(jnp.sum(p, axis=-1, keepdims=True), approx=True)
    o_h = jnp.dot(p.astype(MXU_DTYPE), qkv_bf[:, vs],
                  preferred_element_type=f32)                     # (S, Hd)
    attn_ref[:, qs] = o_h                    # static lane-slice "concat" store

  # Single full-depth (k = D) out-projection instead of per-head k=head_dim.
  attn = jnp.dot(attn_ref[...].astype(MXU_DTYPE), wo_ref[0],
                 preferred_element_type=f32) + bo_ref[0].astype(f32)
  h = residual + attn

  # ---- pre-LN MLP + residual ----
  residual = h
  x = layernorm(h, ln2g_ref[0], ln2b_ref[0])
  t = jnp.dot(x.astype(MXU_DTYPE), wfc1_ref[0],
              preferred_element_type=f32) + bfc1_ref[0].astype(f32)
  g = (t * jax.nn.sigmoid(1.702 * t)).astype(MXU_DTYPE)           # quick_gelu, bf16
  y = jnp.dot(g, wfc2_ref[0], preferred_element_type=f32) + bfc2_ref[0].astype(f32)
  h = residual + y
  h_ref[...] = h                              # carry to next layer step

  # ---- write the selected hidden state exactly once (last computed layer) ----
  @pl.when(l == pl.num_programs(1) - 1)
  def _():
    o_ref[0] = h.astype(o_ref.dtype)          # full tile-aligned (S, D) store


# ---------------- parameter init (deterministic, synthetic) ----------------
def init_params(key):
  def nrm(k, shape, scale=0.02):
    return scale * jax.random.normal(k, shape, dtype=jnp.float32)

  keys = jax.random.split(key, 4 + NUM_LAYERS)
  params = {
      "class_embedding": nrm(keys[0], (EMBED_DIM,)),
      "patch_w": nrm(keys[1], (EMBED_DIM, NUM_CHANNELS, PATCH, PATCH)),  # Conv2d, no bias
      "pos_embedding": nrm(keys[2], (SEQ, EMBED_DIM)),
      "pre_ln_g": jnp.ones((EMBED_DIM,), jnp.float32),
      "pre_ln_b": jnp.zeros((EMBED_DIM,), jnp.float32),
      # post_layernorm exists in the module but is never applied to the
      # hidden_states consumed by feature_select, so it is not needed here.
      "layers": [],
  }
  for li in range(NUM_LAYERS):
    lk = jax.random.split(keys[4 + li], 12)
    params["layers"].append({
        "ln1_g": jnp.ones((EMBED_DIM,), jnp.float32),
        "ln1_b": jnp.zeros((EMBED_DIM,), jnp.float32),
        "q_w": nrm(lk[0], (EMBED_DIM, EMBED_DIM)),
        "q_b": nrm(lk[1], (EMBED_DIM,)),
        "k_w": nrm(lk[2], (EMBED_DIM, EMBED_DIM)),
        "k_b": nrm(lk[3], (EMBED_DIM,)),
        "v_w": nrm(lk[4], (EMBED_DIM, EMBED_DIM)),
        "v_b": nrm(lk[5], (EMBED_DIM,)),
        "o_w": nrm(lk[6], (EMBED_DIM, EMBED_DIM)),
        "o_b": nrm(lk[7], (EMBED_DIM,)),
        "ln2_g": jnp.ones((EMBED_DIM,), jnp.float32),
        "ln2_b": jnp.zeros((EMBED_DIM,), jnp.float32),
        "fc1_w": nrm(lk[8], (EMBED_DIM, INTERMEDIATE)),
        "fc1_b": nrm(lk[9], (INTERMEDIATE,)),
        "fc2_w": nrm(lk[10], (INTERMEDIATE, EMBED_DIM)),
        "fc2_b": nrm(lk[11], (EMBED_DIM,)),
    })
  return params


def _pack_layer_params(layers):
  """Stack ONLY the layers that will run; fuse QKV and fold head scale into Q."""
  scale = HEAD_DIM ** -0.5

  def stack(fn):
    return jnp.stack([fn(lp) for lp in layers], axis=0)

  return dict(
      ln1_g=stack(lambda lp: lp["ln1_g"].reshape(1, EMBED_DIM)),
      ln1_b=stack(lambda lp: lp["ln1_b"].reshape(1, EMBED_DIM)),
      wqkv=stack(lambda lp: jnp.concatenate(
          [lp["q_w"] * scale, lp["k_w"], lp["v_w"]], axis=1)).astype(MXU_DTYPE),
      bqkv=stack(lambda lp: jnp.concatenate(
          [lp["q_b"] * scale, lp["k_b"], lp["v_b"]], axis=0).reshape(1, 3 * EMBED_DIM)),
      wo=stack(lambda lp: lp["o_w"]).astype(MXU_DTYPE),
      bo=stack(lambda lp: lp["o_b"].reshape(1, EMBED_DIM)),
      ln2_g=stack(lambda lp: lp["ln2_g"].reshape(1, EMBED_DIM)),
      ln2_b=stack(lambda lp: lp["ln2_b"].reshape(1, EMBED_DIM)),
      wfc1=stack(lambda lp: lp["fc1_w"]).astype(MXU_DTYPE),
      bfc1=stack(lambda lp: lp["fc1_b"].reshape(1, INTERMEDIATE)),
      wfc2=stack(lambda lp: lp["fc2_w"]).astype(MXU_DTYPE),
      bfc2=stack(lambda lp: lp["fc2_b"].reshape(1, EMBED_DIM)),
  )


# ---------------- model forward (grid over batch x used-layers) ----------------
def clip_vision_tower_forward(params, images,
                              select_layer=SELECT_LAYER,
                              select_feature=SELECT_FEATURE):
  """Equivalent of CLIPVisionTower.forward for a batched image tensor."""
  B, C, H, W = images.shape
  p = PATCH
  num_layers = len(params["layers"])

  # hidden_states tuple length = num_layers + 1 (embeddings output first);
  # hidden_states[idx] is the output of encoder layer idx-1.
  idx = select_layer if select_layer >= 0 else num_layers + 1 + select_layer
  if not (1 <= idx <= num_layers):
    raise ValueError(f"Unsupported mm_vision_select_layer: {select_layer}")
  layers_to_run = idx                      # layers >= idx are dead work: skipped

  if select_feature not in ("patch", "cls_patch"):
    raise ValueError(f"Unexpected select feature: {select_feature}")

  x = images.astype(jnp.float32)
  # Conv2d(kernel=stride=patch, bias=False) as patch extraction (layout glue).
  patches = (x.reshape(B, C, H // p, p, W // p, p)
              .transpose(0, 2, 4, 1, 3, 5)
              .reshape(B, NUM_PATCHES, C * p * p))                 # (B, NP, Cpp)

  w_conv = params["patch_w"].reshape(EMBED_DIM, C * p * p).T.astype(MXU_DTYPE)
  pos = params["pos_embedding"]
  cls_pos = (pos[0] + params["class_embedding"]).reshape(1, EMBED_DIM)  # CLS folded into pos row 0
  pos_patch = pos[1:]                                              # (NP, D)
  lp = _pack_layer_params(params["layers"][:layers_to_run])

  kern = functools.partial(_clip_layer_kernel, num_heads=NUM_HEADS,
                           head_dim=HEAD_DIM, eps=EPS)

  img_map = lambda b, l: (b, 0, 0)      # per-image blocks (change with b only)
  const2 = lambda b, l: (0, 0)          # fetched once, resident
  layer3 = lambda b, l: (l, 0, 0)       # per-layer weight blocks (double-buffered)

  out = pl.pallas_call(
      kern,
      grid=(B, layers_to_run),
      out_shape=jax.ShapeDtypeStruct((B, SEQ, EMBED_DIM), images.dtype),
      in_specs=[
          pl.BlockSpec((1, NUM_PATCHES, PATCH_FEATS), img_map),          # patches
          pl.BlockSpec((1, EMBED_DIM), const2),                          # pos[0] + class_emb
          pl.BlockSpec((NUM_PATCHES, EMBED_DIM), const2),                # pos[1:]
          pl.BlockSpec((PATCH_FEATS, EMBED_DIM), const2),                # conv weight
          pl.BlockSpec((1, EMBED_DIM), const2),                          # pre-LN gamma
          pl.BlockSpec((1, EMBED_DIM), const2),                          # pre-LN beta
          pl.BlockSpec((1, 1, EMBED_DIM), layer3),                       # ln1 gamma
          pl.BlockSpec((1, 1, EMBED_DIM), layer3),                       # ln1 beta
          pl.BlockSpec((1, EMBED_DIM, 3 * EMBED_DIM), layer3),           # fused QKV weight
          pl.BlockSpec((1, 1, 3 * EMBED_DIM), layer3),                   # fused QKV bias
          pl.BlockSpec((1, EMBED_DIM, EMBED_DIM), layer3),               # out-proj weight
          pl.BlockSpec((1, 1, EMBED_DIM), layer3),                       # out-proj bias
          pl.BlockSpec((1, 1, EMBED_DIM), layer3),                       # ln2 gamma
          pl.BlockSpec((1, 1, EMBED_DIM), layer3),                       # ln2 beta
          pl.BlockSpec((1, EMBED_DIM, INTERMEDIATE), layer3),            # fc1 weight
          pl.BlockSpec((1, 1, INTERMEDIATE), layer3),                    # fc1 bias
          pl.BlockSpec((1, INTERMEDIATE, EMBED_DIM), layer3),            # fc2 weight
          pl.BlockSpec((1, 1, EMBED_DIM), layer3),                       # fc2 bias
      ],
      out_specs=pl.BlockSpec((1, SEQ, EMBED_DIM), img_map),
      scratch_shapes=[
          pltpu.VMEM((SEQ, EMBED_DIM), jnp.float32),   # carried hidden state
          pltpu.VMEM((SEQ, EMBED_DIM), jnp.float32),   # per-head concat buffer
      ],
      compiler_params=pltpu.CompilerParams(
          dimension_semantics=("parallel", "arbitrary"),
          vmem_limit_bytes=64 * 1024 * 1024),
  )(patches, cls_pos, pos_patch, w_conv,
    params["pre_ln_g"].reshape(1, EMBED_DIM),
    params["pre_ln_b"].reshape(1, EMBED_DIM),
    lp["ln1_g"], lp["ln1_b"], lp["wqkv"], lp["bqkv"], lp["wo"], lp["bo"],
    lp["ln2_g"], lp["ln2_b"], lp["wfc1"], lp["bfc1"], lp["wfc2"], lp["bfc2"])

  # feature_select: CLS drop is layout glue; slicing outside the kernel keeps
  # the kernel's output store tile-aligned.
  if select_feature == "patch":
    out = out[:, 1:, :]
  return out


# TODO(synk): checkpoint loading (from_pretrained) and CLIPImageProcessor
# preprocessing have no Pallas equivalent; parameters are synthetic here.

if __name__ == "__main__":
  key = jax.random.PRNGKey(0)
  kp, kx = jax.random.split(key)
  params = init_params(kp)
  images = jax.random.normal(kx, (BATCH, NUM_CHANNELS, IMAGE_SIZE, IMAGE_SIZE),
                             dtype=jnp.float32)

  fwd = jax.jit(functools.partial(clip_vision_tower_forward,
                                  select_layer=SELECT_LAYER,
                                  select_feature=SELECT_FEATURE))
  feats = fwd(params, images)
  jax.block_until_ready(feats)
  assert feats.shape == (BATCH, NUM_PATCHES, EMBED_DIM), feats.shape
  assert feats.dtype == images.dtype
  print("KERNEL_OK")
</pallas_src>

<mosaic_0001>
module attributes {stable_mosaic.version = 11 : i64} {
  func.func @_clip_layer_kernel(%arg0: i32, %arg1: i32, %arg2: memref<1x4x768xf32, #tpu.memory_space<vmem>>, %arg3: memref<1x128xf32, #tpu.memory_space<vmem>>, %arg4: memref<4x128xf32, #tpu.memory_space<vmem>>, %arg5: memref<768x128xbf16, #tpu.memory_space<vmem>>, %arg6: memref<1x128xf32, #tpu.memory_space<vmem>>, %arg7: memref<1x128xf32, #tpu.memory_space<vmem>>, %arg8: memref<1x1x128xf32, #tpu.memory_space<vmem>>, %arg9: memref<1x1x128xf32, #tpu.memory_space<vmem>>, %arg10: memref<1x128x384xbf16, #tpu.memory_space<vmem>>, %arg11: memref<1x1x384xf32, #tpu.memory_space<vmem>>, %arg12: memref<1x128x128xbf16, #tpu.memory_space<vmem>>, %arg13: memref<1x1x128xf32, #tpu.memory_space<vmem>>, %arg14: memref<1x1x128xf32, #tpu.memory_space<vmem>>, %arg15: memref<1x1x128xf32, #tpu.memory_space<vmem>>, %arg16: memref<1x128x512xbf16, #tpu.memory_space<vmem>>, %arg17: memref<1x1x512xf32, #tpu.memory_space<vmem>>, %arg18: memref<1x512x128xbf16, #tpu.memory_space<vmem>>, %arg19: memref<1x1x128xf32, #tpu.memory_space<vmem>>, %arg20: memref<1x5x128xf32, #tpu.memory_space<vmem>>, %arg21: memref<5x128xf32, #tpu.memory_space<vmem>>, %arg22: memref<5x128xf32, #tpu.memory_space<vmem>>) attributes {dimension_semantics = [#tpu.dimension_semantics<parallel>, #tpu.dimension_semantics<arbitrary>], iteration_bounds = array<i64: 2, 2>, scalar_prefetch = 0 : i64, scratch_operands = 2 : i64, tpu.core_type = #tpu.core_type<tc>, window_params = [{transform_indices = @transform_0, window_bounds = array<i64: 1, 4, 768>}, {pipeline_mode = #tpu.pipeline_mode<synchronous>, transform_indices = @transform_1, window_bounds = array<i64: 1, 128>}, {pipeline_mode = #tpu.pipeline_mode<synchronous>, transform_indices = @transform_2, window_bounds = array<i64: 4, 128>}, {pipeline_mode = #tpu.pipeline_mode<synchronous>, transform_indices = @transform_3, window_bounds = array<i64: 768, 128>}, {pipeline_mode = #tpu.pipeline_mode<synchronous>, transform_indices = @transform_4, window_bounds = array<i64: 1, 128>}, {pipeline_mode = #tpu.pipeline_mode<synchronous>, transform_indices = @transform_5, window_bounds = array<i64: 1, 128>}, {transform_indices = @transform_6, window_bounds = array<i64: 1, 1, 128>}, {transform_indices = @transform_7, window_bounds = array<i64: 1, 1, 128>}, {transform_indices = @transform_8, window_bounds = array<i64: 1, 128, 384>}, {transform_indices = @transform_9, window_bounds = array<i64: 1, 1, 384>}, {transform_indices = @transform_10, window_bounds = array<i64: 1, 128, 128>}, {transform_indices = @transform_11, window_bounds = array<i64: 1, 1, 128>}, {transform_indices = @transform_12, window_bounds = array<i64: 1, 1, 128>}, {transform_indices = @transform_13, window_bounds = array<i64: 1, 1, 128>}, {transform_indices = @transform_14, window_bounds = array<i64: 1, 128, 512>}, {transform_indices = @transform_15, window_bounds = array<i64: 1, 1, 512>}, {transform_indices = @transform_16, window_bounds = array<i64: 1, 512, 128>}, {transform_indices = @transform_17, window_bounds = array<i64: 1, 1, 128>}, {transform_indices = @transform_18, window_bounds = array<i64: 1, 5, 128>}]} {
    %c0_i32 = arith.constant 0 : i32
    %0 = arith.cmpi eq, %arg1, %c0_i32 : i32
    %1 = arith.extui %0 : i1 to i32
    %c0_i32_0 = arith.constant 0 : i32
    %2 = arith.cmpi ne, %1, %c0_i32_0 : i32
    scf.if %2 {
      %c0_79 = arith.constant 0 : index
      %c0_80 = arith.constant 0 : index
      %c0_81 = arith.constant 0 : index
      %172 = vector.load %arg2[%c0_79, %c0_80, %c0_81] : memref<1x4x768xf32, #tpu.memory_space<vmem>>, vector<1x4x768xf32>
      %173 = vector.shape_cast %172 : vector<1x4x768xf32> to vector<4x768xf32>
      %174 = arith.truncf %173 : vector<4x768xf32> to vector<4x768xbf16>
      %c0_82 = arith.constant 0 : index
      %c0_83 = arith.constant 0 : index
      %175 = vector.load %arg5[%c0_82, %c0_83] : memref<768x128xbf16, #tpu.memory_space<vmem>>, vector<768x128xbf16>
      %cst_84 = arith.constant dense<0.000000e+00> : vector<4x128xf32>
      %176 = tpu.matmul %174, %175, %cst_84 {dimension_numbers = #tpu.dot_dimension_numbers<[1], [0], [0], [1], [0, 0, 1, 1], [], []>} : vector<4x768xbf16>, vector<768x128xbf16>, vector<4x128xf32> -> vector<4x128xf32>
      %c0_85 = arith.constant 0 : index
      %c0_86 = arith.constant 0 : index
      %177 = vector.load %arg4[%c0_85, %c0_86] : memref<4x128xf32, #tpu.memory_space<vmem>>, vector<4x128xf32>
      %178 = arith.addf %176, %177 : vector<4x128xf32>
      %c0_87 = arith.constant 0 : index
      %c0_88 = arith.constant 0 : index
      %179 = vector.load %arg3[%c0_87, %c0_88] : memref<1x128xf32, #tpu.memory_space<vmem>>, vector<1x128xf32>
      %c0_89 = arith.constant 0 : index
      %c0_90 = arith.constant 0 : index
      %180 = vector.load %arg6[%c0_89, %c0_90] : memref<1x128xf32, #tpu.memory_space<vmem>>, vector<1x128xf32>
      %c0_91 = arith.constant 0 : index
      %c0_92 = arith.constant 0 : index
      %181 = vector.load %arg7[%c0_91, %c0_92] : memref<1x128xf32, #tpu.memory_space<vmem>>, vector<1x128xf32>
      %cst_93 = arith.constant dense<0.000000e+00> : vector<1xf32>
      %182 = vector.multi_reduction <add>, %179, %cst_93 [1] : vector<1x128xf32> to vector<1xf32>
      %183 = vector.shape_cast %182 : vector<1xf32> to vector<1x1xf32>
      %cst_94 = arith.constant 7.812500e-03 : f32
      %184 = vector.broadcast %cst_94 : f32 to vector<1x1xf32>
      %185 = arith.mulf %183, %184 : vector<1x1xf32>
      %186 = arith.mulf %179, %179 : vector<1x128xf32>
      %cst_95 = arith.constant dense<0.000000e+00> : vector<1xf32>
      %187 = vector.multi_reduction <add>, %186, %cst_95 [1] : vector<1x128xf32> to vector<1xf32>
      %188 = vector.shape_cast %187 : vector<1xf32> to vector<1x1xf32>
      %cst_96 = arith.constant 7.812500e-03 : f32
      %189 = vector.broadcast %cst_96 : f32 to vector<1x1xf32>
      %190 = arith.mulf %188, %189 : vector<1x1xf32>
      %191 = arith.mulf %185, %185 : vector<1x1xf32>
      %192 = arith.subf %190, %191 : vector<1x1xf32>
      %193 = vector.broadcast %185 : vector<1x1xf32> to vector<1x128xf32>
      %194 = arith.subf %179, %193 : vector<1x128xf32>
      %cst_97 = arith.constant 9.99999974E-6 : f32
      %195 = vector.broadcast %cst_97 : f32 to vector<1x1xf32>
      %196 = arith.addf %192, %195 : vector<1x1xf32>
      %197 = math.rsqrt %196 : vector<1x1xf32>
      %198 = vector.broadcast %197 : vector<1x1xf32> to vector<1x128xf32>
      %199 = arith.mulf %194, %198 : vector<1x128xf32>
      %200 = arith.mulf %199, %180 : vector<1x128xf32>
      %201 = arith.addf %200, %181 : vector<1x128xf32>
      %c0_98 = arith.constant 0 : index
      %c0_99 = arith.constant 0 : index
      %202 = vector.load %arg21[%c0_98, %c0_99] : memref<5x128xf32, #tpu.memory_space<vmem>>, vector<1x128xf32>
      tpu.vector_store %arg21[%c0_98, %c0_99], %201 {strides = array<i32>} : memref<5x128xf32, #tpu.memory_space<vmem>>, vector<1x128xf32>,
      %c0_100 = arith.constant 0 : index
      %c0_101 = arith.constant 0 : index
      %203 = vector.load %arg6[%c0_100, %c0_101] : memref<1x128xf32, #tpu.memory_space<vmem>>, vector<1x128xf32>
      %c0_102 = arith.constant 0 : index
      %c0_103 = arith.constant 0 : index
      %204 = vector.load %arg7[%c0_102, %c0_103] : memref<1x128xf32, #tpu.memory_space<vmem>>, vector<1x128xf32>
      %cst_104 = arith.constant dense<0.000000e+00> : vector<4xf32>
      %205 = vector.multi_reduction <add>, %178, %cst_104 [1] : vector<4x128xf32> to vector<4xf32>
      %206 = vector.shape_cast %205 : vector<4xf32> to vector<4x1xf32>
      %cst_105 = arith.constant 7.812500e-03 : f32
      %207 = vector.broadcast %cst_105 : f32 to vector<4x1xf32>
      %208 = arith.mulf %206, %207 : vector<4x1xf32>
      %209 = arith.mulf %178, %178 : vector<4x128xf32>
      %cst_106 = arith.constant dense<0.000000e+00> : vector<4xf32>
      %210 = vector.multi_reduction <add>, %209, %cst_106 [1] : vector<4x128xf32> to vector<4xf32>
      %211 = vector.shape_cast %210 : vector<4xf32> to vector<4x1xf32>
      %cst_107 = arith.constant 7.812500e-03 : f32
      %212 = vector.broadcast %cst_107 : f32 to vector<4x1xf32>
      %213 = arith.mulf %211, %212 : vector<4x1xf32>
      %214 = arith.mulf %208, %208 : vector<4x1xf32>
      %215 = arith.subf %213, %214 : vector<4x1xf32>
      %216 = vector.broadcast %208 : vector<4x1xf32> to vector<4x128xf32>
      %217 = arith.subf %178, %216 : vector<4x128xf32>
      %cst_108 = arith.constant 9.99999974E-6 : f32
      %218 = vector.broadcast %cst_108 : f32 to vector<4x1xf32>
      %219 = arith.addf %215, %218 : vector<4x1xf32>
      %220 = math.rsqrt %219 : vector<4x1xf32>
      %221 = vector.broadcast %220 : vector<4x1xf32> to vector<4x128xf32>
      %222 = arith.mulf %217, %221 : vector<4x128xf32>
      %223 = vector.broadcast %203 : vector<1x128xf32> to vector<4x128xf32>
      %224 = arith.mulf %222, %223 : vector<4x128xf32>
      %225 = vector.broadcast %204 : vector<1x128xf32> to vector<4x128xf32>
      %226 = arith.addf %224, %225 : vector<4x128xf32>
      %c1 = arith.constant 1 : index
      %c0_109 = arith.constant 0 : index
      %227 = vector.load %arg21[%c1, %c0_109] : memref<5x128xf32, #tpu.memory_space<vmem>>, vector<4x128xf32>
      tpu.vector_store %arg21[%c1, %c0_109], %226 {strides = array<i32>} : memref<5x128xf32, #tpu.memory_space<vmem>>, vector<4x128xf32>,
    } else {
    }
    %c0 = arith.constant 0 : index
    %c0_1 = arith.constant 0 : index
    %3 = vector.load %arg21[%c0, %c0_1] : memref<5x128xf32, #tpu.memory_space<vmem>>, vector<5x128xf32>
    %c0_2 = arith.constant 0 : index
    %c0_3 = arith.constant 0 : index
    %c0_4 = arith.constant 0 : index
    %4 = vector.load %arg8[%c0_2, %c0_3, %c0_4] : memref<1x1x128xf32, #tpu.memory_space<vmem>>, vector<1x1x128xf32>
    %5 = vector.shape_cast %4 : vector<1x1x128xf32> to vector<1x128xf32>
    %c0_5 = arith.constant 0 : index
    %c0_6 = arith.constant 0 : index
    %c0_7 = arith.constant 0 : index
    %6 = vector.load %arg9[%c0_5, %c0_6, %c0_7] : memref<1x1x128xf32, #tpu.memory_space<vmem>>, vector<1x1x128xf32>
    %7 = vector.shape_cast %6 : vector<1x1x128xf32> to vector<1x128xf32>
    %cst = arith.constant dense<0.000000e+00> : vector<5xf32>
    %8 = vector.multi_reduction <add>, %3, %cst [1] : vector<5x128xf32> to vector<5xf32>
    %9 = vector.shape_cast %8 : vector<5xf32> to vector<5x1xf32>
    %cst_8 = arith.constant 7.812500e-03 : f32
    %10 = vector.broadcast %cst_8 : f32 to vector<5x1xf32>
    %11 = arith.mulf %9, %10 : vector<5x1xf32>
    %12 = arith.mulf %3, %3 : vector<5x128xf32>
    %cst_9 = arith.constant dense<0.000000e+00> : vector<5xf32>
    %13 = vector.multi_reduction <add>, %12, %cst_9 [1] : vector<5x128xf32> to vector<5xf32>
    %14 = vector.shape_cast %13 : vector<5xf32> to vector<5x1xf32>
    %cst_10 = arith.constant 7.812500e-03 : f32
    %15 = vector.broadcast %cst_10 : f32 to vector<5x1xf32>
    %16 = arith.mulf %14, %15 : vector<5x1xf32>
    %17 = arith.mulf %11, %11 : vector<5x1xf32>
    %18 = arith.subf %16, %17 : vector<5x1xf32>
    %19 = vector.broadcast %11 : vector<5x1xf32> to vector<5x128xf32>
    %20 = arith.subf %3, %19 : vector<5x128xf32>
    %cst_11 = arith.constant 9.99999974E-6 : f32
    %21 = vector.broadcast %cst_11 : f32 to vector<5x1xf32>
    %22 = arith.addf %18, %21 : vector<5x1xf32>
    %23 = math.rsqrt %22 : vector<5x1xf32>
    %24 = vector.broadcast %23 : vector<5x1xf32> to vector<5x128xf32>
    %25 = arith.mulf %20, %24 : vector<5x128xf32>
    %26 = vector.broadcast %5 : vector<1x128xf32> to vector<5x128xf32>
    %27 = arith.mulf %25, %26 : vector<5x128xf32>
    %28 = vector.broadcast %7 : vector<1x128xf32> to vector<5x128xf32>
    %29 = arith.addf %27, %28 : vector<5x128xf32>
    %30 = arith.truncf %29 : vector<5x128xf32> to vector<5x128xbf16>
    %c0_12 = arith.constant 0 : index
    %c0_13 = arith.constant 0 : index
    %c0_14 = arith.constant 0 : index
    %31 = vector.load %arg10[%c0_12, %c0_13, %c0_14] : memref<1x128x384xbf16, #tpu.memory_space<vmem>>, vector<1x128x384xbf16>
    %32 = vector.shape_cast %31 : vector<1x128x384xbf16> to vector<128x384xbf16>
    %cst_15 = arith.constant dense<0.000000e+00> : vector<5x384xf32>
    %33 = tpu.matmul %30, %32, %cst_15 {dimension_numbers = #tpu.dot_dimension_numbers<[1], [0], [0], [1], [0, 0, 1, 1], [], []>} : vector<5x128xbf16>, vector<128x384xbf16>, vector<5x384xf32> -> vector<5x384xf32>
    %c0_16 = arith.constant 0 : index
    %c0_17 = arith.constant 0 : index
    %c0_18 = arith.constant 0 : index
    %34 = vector.load %arg11[%c0_16, %c0_17, %c0_18] : memref<1x1x384xf32, #tpu.memory_space<vmem>>, vector<1x1x384xf32>
    %35 = vector.shape_cast %34 : vector<1x1x384xf32> to vector<1x384xf32>
    %36 = vector.broadcast %35 : vector<1x384xf32> to vector<5x384xf32>
    %37 = arith.addf %33, %36 : vector<5x384xf32>
    %38 = arith.truncf %37 : vector<5x384xf32> to vector<5x384xbf16>
    %39 = vector.extract_strided_slice %38 {offsets = [0, 0], sizes = [5, 32], strides = [1, 1]} : vector<5x384xbf16> to vector<5x32xbf16>
    %40 = vector.extract_strided_slice %38 {offsets = [0, 128], sizes = [5, 32], strides = [1, 1]} : vector<5x384xbf16> to vector<5x32xbf16>
    %cst_19 = arith.constant dense<0.000000e+00> : vector<5x5xf32>
    %41 = tpu.matmul %39, %40, %cst_19 {dimension_numbers = #tpu.dot_dimension_numbers<[1], [1], [0], [0], [0, 0, 1, 0], [], []>} : vector<5x32xbf16>, vector<5x32xbf16>, vector<5x5xf32> -> vector<5x5xf32>
    %cst_20 = arith.constant dense<0xFF800000> : vector<5xf32>
    %42 = vector.multi_reduction <maximumf>, %41, %cst_20 [1] : vector<5x5xf32> to vector<5xf32>
    %43 = vector.shape_cast %42 : vector<5xf32> to vector<5x1xf32>
    %44 = vector.broadcast %43 : vector<5x1xf32> to vector<5x5xf32>
    %45 = arith.subf %41, %44 : vector<5x5xf32>
    %46 = math.exp %45 : vector<5x5xf32>
    %cst_21 = arith.constant dense<0.000000e+00> : vector<5xf32>
    %47 = vector.multi_reduction <add>, %46, %cst_21 [1] : vector<5x5xf32> to vector<5xf32>
    %48 = vector.shape_cast %47 : vector<5xf32> to vector<5x1xf32>
    %49 = tpu.reciprocal %48 {approx = true} : vector<5x1xf32> -> vector<5x1xf32>
    %50 = vector.broadcast %49 : vector<5x1xf32> to vector<5x5xf32>
    %51 = arith.mulf %46, %50 : vector<5x5xf32>
    %52 = arith.truncf %51 : vector<5x5xf32> to vector<5x5xbf16>
    %53 = vector.extract_strided_slice %38 {offsets = [0, 256], sizes = [5, 32], strides = [1, 1]} : vector<5x384xbf16> to vector<5x32xbf16>
    %cst_22 = arith.constant dense<0.000000e+00> : vector<5x32xf32>
    %54 = tpu.matmul %52, %53, %cst_22 {dimension_numbers = #tpu.dot_dimension_numbers<[1], [0], [0], [1], [0, 0, 1, 1], [], []>} : vector<5x5xbf16>, vector<5x32xbf16>, vector<5x32xf32> -> vector<5x32xf32>
    %c0_23 = arith.constant 0 : index
    %c0_24 = arith.constant 0 : index
    %55 = vector.load %arg22[%c0_23, %c0_24] : memref<5x128xf32, #tpu.memory_space<vmem>>, vector<5x32xf32>
    tpu.vector_store %arg22[%c0_23, %c0_24], %54 {strides = array<i32>} : memref<5x128xf32, #tpu.memory_space<vmem>>, vector<5x32xf32>,
    %56 = vector.extract_strided_slice %38 {offsets = [0, 32], sizes = [5, 32], strides = [1, 1]} : vector<5x384xbf16> to vector<5x32xbf16>
    %57 = vector.extract_strided_slice %38 {offsets = [0, 160], sizes = [5, 32], strides = [1, 1]} : vector<5x384xbf16> to vector<5x32xbf16>
    %cst_25 = arith.constant dense<0.000000e+00> : vector<5x5xf32>
    %58 = tpu.matmul %56, %57, %cst_25 {dimension_numbers = #tpu.dot_dimension_numbers<[1], [1], [0], [0], [0, 0, 1, 0], [], []>} : vector<5x32xbf16>, vector<5x32xbf16>, vector<5x5xf32> -> vector<5x5xf32>
    %cst_26 = arith.constant dense<0xFF800000> : vector<5xf32>
    %59 = vector.multi_reduction <maximumf>, %58, %cst_26 [1] : vector<5x5xf32> to vector<5xf32>
    %60 = vector.shape_cast %59 : vector<5xf32> to vector<5x1xf32>
    %61 = vector.broadcast %60 : vector<5x1xf32> to vector<5x5xf32>
    %62 = arith.subf %58, %61 : vector<5x5xf32>
    %63 = math.exp %62 : vector<5x5xf32>
    %cst_27 = arith.constant dense<0.000000e+00> : vector<5xf32>
    %64 = vector.multi_reduction <add>, %63, %cst_27 [1] : vector<5x5xf32> to vector<5xf32>
    %65 = vector.shape_cast %64 : vector<5xf32> to vector<5x1xf32>
    %66 = tpu.reciprocal %65 {approx = true} : vector<5x1xf32> -> vector<5x1xf32>
    %67 = vector.broadcast %66 : vector<5x1xf32> to vector<5x5xf32>
    %68 = arith.mulf %63, %67 : vector<5x5xf32>
    %69 = arith.truncf %68 : vector<5x5xf32> to vector<5x5xbf16>
    %70 = vector.extract_strided_slice %38 {offsets = [0, 288], sizes = [5, 32], strides = [1, 1]} : vector<5x384xbf16> to vector<5x32xbf16>
    %cst_28 = arith.constant dense<0.000000e+00> : vector<5x32xf32>
    %71 = tpu.matmul %69, %70, %cst_28 {dimension_numbers = #tpu.dot_dimension_numbers<[1], [0], [0], [1], [0, 0, 1, 1], [], []>} : vector<5x5xbf16>, vector<5x32xbf16>, vector<5x32xf32> -> vector<5x32xf32>
    %c0_29 = arith.constant 0 : index
    %c32 = arith.constant 32 : index
    %72 = vector.load %arg22[%c0_29, %c32] : memref<5x128xf32, #tpu.memory_space<vmem>>, vector<5x32xf32>
    tpu.vector_store %arg22[%c0_29, %c32], %71 {strides = array<i32>} : memref<5x128xf32, #tpu.memory_space<vmem>>, vector<5x32xf32>,
    %73 = vector.extract_strided_slice %38 {offsets = [0, 64], sizes = [5, 32], strides = [1, 1]} : vector<5x384xbf16> to vector<5x32xbf16>
    %74 = vector.extract_strided_slice %38 {offsets = [0, 192], sizes = [5, 32], strides = [1, 1]} : vector<5x384xbf16> to vector<5x32xbf16>
    %cst_30 = arith.constant dense<0.000000e+00> : vector<5x5xf32>
    %75 = tpu.matmul %73, %74, %cst_30 {dimension_numbers = #tpu.dot_dimension_numbers<[1], [1], [0], [0], [0, 0, 1, 0], [], []>} : vector<5x32xbf16>, vector<5x32xbf16>, vector<5x5xf32> -> vector<5x5xf32>
    %cst_31 = arith.constant dense<0xFF800000> : vector<5xf32>
    %76 = vector.multi_reduction <maximumf>, %75, %cst_31 [1] : vector<5x5xf32> to vector<5xf32>
    %77 = vector.shape_cast %76 : vector<5xf32> to vector<5x1xf32>
    %78 = vector.broadcast %77 : vector<5x1xf32> to vector<5x5xf32>
    %79 = arith.subf %75, %78 : vector<5x5xf32>
    %80 = math.exp %79 : vector<5x5xf32>
    %cst_32 = arith.constant dense<0.000000e+00> : vector<5xf32>
    %81 = vector.multi_reduction <add>, %80, %cst_32 [1] : vector<5x5xf32> to vector<5xf32>
    %82 = vector.shape_cast %81 : vector<5xf32> to vector<5x1xf32>
    %83 = tpu.reciprocal %82 {approx = true} : vector<5x1xf32> -> vector<5x1xf32>
    %84 = vector.broadcast %83 : vector<5x1xf32> to vector<5x5xf32>
    %85 = arith.mulf %80, %84 : vector<5x5xf32>
    %86 = arith.truncf %85 : vector<5x5xf32> to vector<5x5xbf16>
    %87 = vector.extract_strided_slice %38 {offsets = [0, 320], sizes = [5, 32], strides = [1, 1]} : vector<5x384xbf16> to vector<5x32xbf16>
    %cst_33 = arith.constant dense<0.000000e+00> : vector<5x32xf32>
    %88 = tpu.matmul %86, %87, %cst_33 {dimension_numbers = #tpu.dot_dimension_numbers<[1], [0], [0], [1], [0, 0, 1, 1], [], []>} : vector<5x5xbf16>, vector<5x32xbf16>, vector<5x32xf32> -> vector<5x32xf32>
    %c0_34 = arith.constant 0 : index
    %c64 = arith.constant 64 : index
    %89 = vector.load %arg22[%c0_34, %c64] : memref<5x128xf32, #tpu.memory_space<vmem>>, vector<5x32xf32>
    tpu.vector_store %arg22[%c0_34, %c64], %88 {strides = array<i32>} : memref<5x128xf32, #tpu.memory_space<vmem>>, vector<5x32xf32>,
    %90 = vector.extract_strided_slice %38 {offsets = [0, 96], sizes = [5, 32], strides = [1, 1]} : vector<5x384xbf16> to vector<5x32xbf16>
    %91 = vector.extract_strided_slice %38 {offsets = [0, 224], sizes = [5, 32], strides = [1, 1]} : vector<5x384xbf16> to vector<5x32xbf16>
    %cst_35 = arith.constant dense<0.000000e+00> : vector<5x5xf32>
    %92 = tpu.matmul %90, %91, %cst_35 {dimension_numbers = #tpu.dot_dimension_numbers<[1], [1], [0], [0], [0, 0, 1, 0], [], []>} : vector<5x32xbf16>, vector<5x32xbf16>, vector<5x5xf32> -> vector<5x5xf32>
    %cst_36 = arith.constant dense<0xFF800000> : vector<5xf32>
    %93 = vector.multi_reduction <maximumf>, %92, %cst_36 [1] : vector<5x5xf32> to vector<5xf32>
    %94 = vector.shape_cast %93 : vector<5xf32> to vector<5x1xf32>
    %95 = vector.broadcast %94 : vector<5x1xf32> to vector<5x5xf32>
    %96 = arith.subf %92, %95 : vector<5x5xf32>
    %97 = math.exp %96 : vector<5x5xf32>
    %cst_37 = arith.constant dense<0.000000e+00> : vector<5xf32>
    %98 = vector.multi_reduction <add>, %97, %cst_37 [1] : vector<5x5xf32> to vector<5xf32>
    %99 = vector.shape_cast %98 : vector<5xf32> to vector<5x1xf32>
    %100 = tpu.reciprocal %99 {approx = true} : vector<5x1xf32> -> vector<5x1xf32>
    %101 = vector.broadcast %100 : vector<5x1xf32> to vector<5x5xf32>
    %102 = arith.mulf %97, %101 : vector<5x5xf32>
    %103 = arith.truncf %102 : vector<5x5xf32> to vector<5x5xbf16>
    %104 = vector.extract_strided_slice %38 {offsets = [0, 352], sizes = [5, 32], strides = [1, 1]} : vector<5x384xbf16> to vector<5x32xbf16>
    %cst_38 = arith.constant dense<0.000000e+00> : vector<5x32xf32>
    %105 = tpu.matmul %103, %104, %cst_38 {dimension_numbers = #tpu.dot_dimension_numbers<[1], [0], [0], [1], [0, 0, 1, 1], [], []>} : vector<5x5xbf16>, vector<5x32xbf16>, vector<5x32xf32> -> vector<5x32xf32>
    %c0_39 = arith.constant 0 : index
    %c96 = arith.constant 96 : index
    %106 = vector.load %arg22[%c0_39, %c96] : memref<5x128xf32, #tpu.memory_space<vmem>>, vector<5x32xf32>
    tpu.vector_store %arg22[%c0_39, %c96], %105 {strides = array<i32>} : memref<5x128xf32, #tpu.memory_space<vmem>>, vector<5x32xf32>,
    %c0_40 = arith.constant 0 : index
    %c0_41 = arith.constant 0 : index
    %107 = vector.load %arg22[%c0_40, %c0_41] : memref<5x128xf32, #tpu.memory_space<vmem>>, vector<5x128xf32>
    %108 = arith.truncf %107 : vector<5x128xf32> to vector<5x128xbf16>
    %c0_42 = arith.constant 0 : index
    %c0_43 = arith.constant 0 : index
    %c0_44 = arith.constant 0 : index
    %109 = vector.load %arg12[%c0_42, %c0_43, %c0_44] : memref<1x128x128xbf16, #tpu.memory_space<vmem>>, vector<1x128x128xbf16>
    %110 = vector.shape_cast %109 : vector<1x128x128xbf16> to vector<128x128xbf16>
    %cst_45 = arith.constant dense<0.000000e+00> : vector<5x128xf32>
    %111 = tpu.matmul %108, %110, %cst_45 {dimension_numbers = #tpu.dot_dimension_numbers<[1], [0], [0], [1], [0, 0, 1, 1], [], []>} : vector<5x128xbf16>, vector<128x128xbf16>, vector<5x128xf32> -> vector<5x128xf32>
    %c0_46 = arith.constant 0 : index
    %c0_47 = arith.constant 0 : index
    %c0_48 = arith.constant 0 : index
    %112 = vector.load %arg13[%c0_46, %c0_47, %c0_48] : memref<1x1x128xf32, #tpu.memory_space<vmem>>, vector<1x1x128xf32>
    %113 = vector.shape_cast %112 : vector<1x1x128xf32> to vector<1x128xf32>
    %114 = vector.broadcast %113 : vector<1x128xf32> to vector<5x128xf32>
    %115 = arith.addf %111, %114 : vector<5x128xf32>
    %116 = arith.addf %3, %115 : vector<5x128xf32>
    %c0_49 = arith.constant 0 : index
    %c0_50 = arith.constant 0 : index
    %c0_51 = arith.constant 0 : index
    %117 = vector.load %arg14[%c0_49, %c0_50, %c0_51] : memref<1x1x128xf32, #tpu.memory_space<vmem>>, vector<1x1x128xf32>
    %118 = vector.shape_cast %117 : vector<1x1x128xf32> to vector<1x128xf32>
    %c0_52 = arith.constant 0 : index
    %c0_53 = arith.constant 0 : index
    %c0_54 = arith.constant 0 : index
    %119 = vector.load %arg15[%c0_52, %c0_53, %c0_54] : memref<1x1x128xf32, #tpu.memory_space<vmem>>, vector<1x1x128xf32>
    %120 = vector.shape_cast %119 : vector<1x1x128xf32> to vector<1x128xf32>
    %cst_55 = arith.constant dense<0.000000e+00> : vector<5xf32>
    %121 = vector.multi_reduction <add>, %116, %cst_55 [1] : vector<5x128xf32> to vector<5xf32>
    %122 = vector.shape_cast %121 : vector<5xf32> to vector<5x1xf32>
    %cst_56 = arith.constant 7.812500e-03 : f32
    %123 = vector.broadcast %cst_56 : f32 to vector<5x1xf32>
    %124 = arith.mulf %122, %123 : vector<5x1xf32>
    %125 = arith.mulf %116, %116 : vector<5x128xf32>
    %cst_57 = arith.constant dense<0.000000e+00> : vector<5xf32>
    %126 = vector.multi_reduction <add>, %125, %cst_57 [1] : vector<5x128xf32> to vector<5xf32>
    %127 = vector.shape_cast %126 : vector<5xf32> to vector<5x1xf32>
    %cst_58 = arith.constant 7.812500e-03 : f32
    %128 = vector.broadcast %cst_58 : f32 to vector<5x1xf32>
    %129 = arith.mulf %127, %128 : vector<5x1xf32>
    %130 = arith.mulf %124, %124 : vector<5x1xf32>
    %131 = arith.subf %129, %130 : vector<5x1xf32>
    %132 = vector.broadcast %124 : vector<5x1xf32> to vector<5x128xf32>
    %133 = arith.subf %116, %132 : vector<5x128xf32>
    %cst_59 = arith.constant 9.99999974E-6 : f32
    %134 = vector.broadcast %cst_59 : f32 to vector<5x1xf32>
    %135 = arith.addf %131, %134 : vector<5x1xf32>
    %136 = math.rsqrt %135 : vector<5x1xf32>
    %137 = vector.broadcast %136 : vector<5x1xf32> to vector<5x128xf32>
    %138 = arith.mulf %133, %137 : vector<5x128xf32>
    %139 = vector.broadcast %118 : vector<1x128xf32> to vector<5x128xf32>
    %140 = arith.mulf %138, %139 : vector<5x128xf32>
    %141 = vector.broadcast %120 : vector<1x128xf32> to vector<5x128xf32>
    %142 = arith.addf %140, %141 : vector<5x128xf32>
    %143 = arith.truncf %142 : vector<5x128xf32> to vector<5x128xbf16>
    %c0_60 = arith.constant 0 : index
    %c0_61 = arith.constant 0 : index
    %c0_62 = arith.constant 0 : index
    %144 = vector.load %arg16[%c0_60, %c0_61, %c0_62] : memref<1x128x512xbf16, #tpu.memory_space<vmem>>, vector<1x128x512xbf16>
    %145 = vector.shape_cast %144 : vector<1x128x512xbf16> to vector<128x512xbf16>
    %cst_63 = arith.constant dense<0.000000e+00> : vector<5x512xf32>
    %146 = tpu.matmul %143, %145, %cst_63 {dimension_numbers = #tpu.dot_dimension_numbers<[1], [0], [0], [1], [0, 0, 1, 1], [], []>} : vector<5x128xbf16>, vector<128x512xbf16>, vector<5x512xf32> -> vector<5x512xf32>
    %c0_64 = arith.constant 0 : index
    %c0_65 = arith.constant 0 : index
    %c0_66 = arith.constant 0 : index
    %147 = vector.load %arg17[%c0_64, %c0_65, %c0_66] : memref<1x1x512xf32, #tpu.memory_space<vmem>>, vector<1x1x512xf32>
    %148 = vector.shape_cast %147 : vector<1x1x512xf32> to vector<1x512xf32>
    %149 = vector.broadcast %148 : vector<1x512xf32> to vector<5x512xf32>
    %150 = arith.addf %146, %149 : vector<5x512xf32>
    %cst_67 = arith.constant 1.702000e+00 : f32
    %151 = vector.broadcast %cst_67 : f32 to vector<5x512xf32>
    %152 = arith.mulf %151, %150 : vector<5x512xf32>
    %153 = arith.negf %152 : vector<5x512xf32>
    %154 = math.exp %153 : vector<5x512xf32>
    %cst_68 = arith.constant 1.000000e+00 : f32
    %155 = vector.broadcast %cst_68 : f32 to vector<5x512xf32>
    %156 = arith.addf %155, %154 : vector<5x512xf32>
    %157 = arith.divf %155, %156 : vector<5x512xf32>
    %158 = arith.mulf %150, %157 : vector<5x512xf32>
    %159 = arith.truncf %158 : vector<5x512xf32> to vector<5x512xbf16>
    %c0_69 = arith.constant 0 : index
    %c0_70 = arith.constant 0 : index
    %c0_71 = arith.constant 0 : index
    %160 = vector.load %arg18[%c0_69, %c0_70, %c0_71] : memref<1x512x128xbf16, #tpu.memory_space<vmem>>, vector<1x512x128xbf16>
    %161 = vector.shape_cast %160 : vector<1x512x128xbf16> to vector<512x128xbf16>
    %cst_72 = arith.constant dense<0.000000e+00> : vector<5x128xf32>
    %162 = tpu.matmul %159, %161, %cst_72 {dimension_numbers = #tpu.dot_dimension_numbers<[1], [0], [0], [1], [0, 0, 1, 1], [], []>} : vector<5x512xbf16>, vector<512x128xbf16>, vector<5x128xf32> -> vector<5x128xf32>
    %c0_73 = arith.constant 0 : index
    %c0_74 = arith.constant 0 : index
    %c0_75 = arith.constant 0 : index
    %163 = vector.load %arg19[%c0_73, %c0_74, %c0_75] : memref<1x1x128xf32, #tpu.memory_space<vmem>>, vector<1x1x128xf32>
    %164 = vector.shape_cast %163 : vector<1x1x128xf32> to vector<1x128xf32>
    %165 = vector.broadcast %164 : vector<1x128xf32> to vector<5x128xf32>
    %166 = arith.addf %162, %165 : vector<5x128xf32>
    %167 = arith.addf %116, %166 : vector<5x128xf32>
    %c0_76 = arith.constant 0 : index
    %c0_77 = arith.constant 0 : index
    %168 = vector.load %arg21[%c0_76, %c0_77] : memref<5x128xf32, #tpu.memory_space<vmem>>, vector<5x128xf32>
    tpu.vector_store %arg21[%c0_76, %c0_77], %167 {strides = array<i32>} : memref<5x128xf32, #tpu.memory_space<vmem>>, vector<5x128xf32>,
    %c1_i32 = arith.constant 1 : i32
    %169 = arith.cmpi eq, %arg1, %c1_i32 : i32
    %170 = arith.extui %169 : i1 to i32
    %c0_i32_78 = arith.constant 0 : i32
    %171 = arith.cmpi ne, %170, %c0_i32_78 : i32
    scf.if %171 {
      %c0_79 = arith.constant 0 : index
      %c0_80 = arith.constant 0 : index
      %c0_81 = arith.constant 0 : index
      %172 = vector.load %arg20[%c0_79, %c0_80, %c0_81] : memref<1x5x128xf32, #tpu.memory_space<vmem>>, vector<1x5x128xf32>
      %173 = vector.shape_cast %172 : vector<1x5x128xf32> to vector<5x128xf32>
      %174 = vector.shape_cast %167 : vector<5x128xf32> to vector<1x5x128xf32>
      tpu.vector_store %arg20[%c0_79, %c0_80, %c0_81], %174 {strides = array<i32>} : memref<1x5x128xf32, #tpu.memory_space<vmem>>, vector<1x5x128xf32>,
    } else {
    }
    return
  }
  func.func @transform_0(%arg0: i32, %arg1: i32) -> (i32, i32, i32) {
    %c0_i32 = arith.constant 0 : i32
    %c0_i32_0 = arith.constant 0 : i32
    %c0_i32_1 = arith.constant 0 : i32
    return %arg0, %c0_i32, %c0_i32_0 : i32, i32, i32
  }
  func.func @transform_1(%arg0: i32, %arg1: i32) -> (i32, i32) {
    %c0_i32 = arith.constant 0 : i32
    %c0_i32_0 = arith.constant 0 : i32
    %c0_i32_1 = arith.constant 0 : i32
    return %c0_i32, %c0_i32_0 : i32, i32
  }
  func.func @transform_2(%arg0: i32, %arg1: i32) -> (i32, i32) {
    %c0_i32 = arith.constant 0 : i32
    %c0_i32_0 = arith.constant 0 : i32
    %c0_i32_1 = arith.constant 0 : i32
    return %c0_i32, %c0_i32_0 : i32, i32
  }
  func.func @transform_3(%arg0: i32, %arg1: i32) -> (i32, i32) {
    %c0_i32 = arith.constant 0 : i32
    %c0_i32_0 = arith.constant 0 : i32
    %c0_i32_1 = arith.constant 0 : i32
    return %c0_i32, %c0_i32_0 : i32, i32
  }
  func.func @transform_4(%arg0: i32, %arg1: i32) -> (i32, i32) {
    %c0_i32 = arith.constant 0 : i32
    %c0_i32_0 = arith.constant 0 : i32
    %c0_i32_1 = arith.constant 0 : i32
    return %c0_i32, %c0_i32_0 : i32, i32
  }
  func.func @transform_5(%arg0: i32, %arg1: i32) -> (i32, i32) {
    %c0_i32 = arith.constant 0 : i32
    %c0_i32_0 = arith.constant 0 : i32
    %c0_i32_1 = arith.constant 0 : i32
    return %c0_i32, %c0_i32_0 : i32, i32
  }
  func.func @transform_6(%arg0: i32, %arg1: i32) -> (i32, i32, i32) {
    %c0_i32 = arith.constant 0 : i32
    %c0_i32_0 = arith.constant 0 : i32
    %c0_i32_1 = arith.constant 0 : i32
    return %arg1, %c0_i32, %c0_i32_0 : i32, i32, i32
  }
  func.func @transform_7(%arg0: i32, %arg1: i32) -> (i32, i32, i32) {
    %c0_i32 = arith.constant 0 : i32
    %c0_i32_0 = arith.constant 0 : i32
    %c0_i32_1 = arith.constant 0 : i32
    return %arg1, %c0_i32, %c0_i32_0 : i32, i32, i32
  }
  func.func @transform_8(%arg0: i32, %arg1: i32) -> (i32, i32, i32) {
    %c0_i32 = arith.constant 0 : i32
    %c0_i32_0 = arith.constant 0 : i32
    %c0_i32_1 = arith.constant 0 : i32
    return %arg1, %c0_i32, %c0_i32_0 : i32, i32, i32
  }
  func.func @transform_9(%arg0: i32, %arg1: i32) -> (i32, i32, i32) {
    %c0_i32 = arith.constant 0 : i32
    %c0_i32_0 = arith.constant 0 : i32
    %c0_i32_1 = arith.constant 0 : i32
    return %arg1, %c0_i32, %c0_i32_0 : i32, i32, i32
  }
  func.func @transform_10(%arg0: i32, %arg1: i32) -> (i32, i32, i32) {
    %c0_i32 = arith.constant 0 : i32
    %c0_i32_0 = arith.constant 0 : i32
    %c0_i32_1 = arith.constant 0 : i32
    return %arg1, %c0_i32, %c0_i32_0 : i32, i32, i32
  }
  func.func @transform_11(%arg0: i32, %arg1: i32) -> (i32, i32, i32) {
    %c0_i32 = arith.constant 0 : i32
    %c0_i32_0 = arith.constant 0 : i32
    %c0_i32_1 = arith.constant 0 : i32
    return %arg1, %c0_i32, %c0_i32_0 : i32, i32, i32
  }
  func.func @transform_12(%arg0: i32, %arg1: i32) -> (i32, i32, i32) {
    %c0_i32 = arith.constant 0 : i32
    %c0_i32_0 = arith.constant 0 : i32
    %c0_i32_1 = arith.constant 0 : i32
    return %arg1, %c0_i32, %c0_i32_0 : i32, i32, i32
  }
  func.func @transform_13(%arg0: i32, %arg1: i32) -> (i32, i32, i32) {
    %c0_i32 = arith.constant 0 : i32
    %c0_i32_0 = arith.constant 0 : i32
    %c0_i32_1 = arith.constant 0 : i32
    return %arg1, %c0_i32, %c0_i32_0 : i32, i32, i32
  }
  func.func @transform_14(%arg0: i32, %arg1: i32) -> (i32, i32, i32) {
    %c0_i32 = arith.constant 0 : i32
    %c0_i32_0 = arith.constant 0 : i32
    %c0_i32_1 = arith.constant 0 : i32
    return %arg1, %c0_i32, %c0_i32_0 : i32, i32, i32
  }
  func.func @transform_15(%arg0: i32, %arg1: i32) -> (i32, i32, i32) {
    %c0_i32 = arith.constant 0 : i32
    %c0_i32_0 = arith.constant 0 : i32
    %c0_i32_1 = arith.constant 0 : i32
    return %arg1, %c0_i32, %c0_i32_0 : i32, i32, i32
  }
  func.func @transform_16(%arg0: i32, %arg1: i32) -> (i32, i32, i32) {
    %c0_i32 = arith.constant 0 : i32
    %c0_i32_0 = arith.constant 0 : i32
    %c0_i32_1 = arith.constant 0 : i32
    return %arg1, %c0_i32, %c0_i32_0 : i32, i32, i32
  }
  func.func @transform_17(%arg0: i32, %arg1: i32) -> (i32, i32, i32) {
    %c0_i32 = arith.constant 0 : i32
    %c0_i32_0 = arith.constant 0 : i32
    %c0_i32_1 = arith.constant 0 : i32
    return %arg1, %c0_i32, %c0_i32_0 : i32, i32, i32
  }
  func.func @transform_18(%arg0: i32, %arg1: i32) -> (i32, i32, i32) {
    %c0_i32 = arith.constant 0 : i32
    %c0_i32_0 = arith.constant 0 : i32
    %c0_i32_1 = arith.constant 0 : i32
    return %arg0, %c0_i32, %c0_i32_0 : i32, i32, i32
  }
}

</mosaic_0001>

<llo_original>
// kernel: clip_vision_tower_forward.1
$region0: #{clip_vision_tower_forward.1}
  #allocation0 [shape = 'u32[]', space=smem, size = 0x4, offset = 0x4, fixed_abs, tag = 'smem constant byte address 0x4 - core index']
  #allocation1 [shape = 'u32[144,128]{1,0:T(1,128)}', space=vmem, size = 0x12000, scoped, tag = 'internal scratch']
  #allocation2 [shape = 'f32[5,128]{1,0:T(8,128)}', space=vmem, size = 0x1000, scoped, tag = 'scratch operand']
  #allocation3 [shape = 'f32[5,128]{1,0:T(8,128)}', space=vmem, size = 0x1000, scoped, tag = 'scratch operand']
  %s0 = inlined_call_operand.vmem [shape: f32[2,4,768], index: 0, kind: input, shape index: {}]
  %s1 = inlined_call_operand.vmem [shape: f32[1,128], index: 1, kind: input, shape index: {}]
  %s2 = inlined_call_operand.vmem [shape: f32[4,128], index: 2, kind: input, shape index: {}]
  %s3 = inlined_call_operand.vmem [shape: bf16[768,128], index: 3, kind: input, shape index: {}]
  %s4 = inlined_call_operand.vmem [shape: f32[1,128], index: 4, kind: input, shape index: {}]
  %s5 = inlined_call_operand.vmem [shape: f32[1,128], index: 5, kind: input, shape index: {}]
  %s6 = inlined_call_operand.vmem [shape: f32[2,1,128], index: 6, kind: input, shape index: {}]
  %s7 = inlined_call_operand.vmem [shape: f32[2,1,128], index: 7, kind: input, shape index: {}]
  %s8 = inlined_call_operand.vmem [shape: bf16[2,128,384], index: 8, kind: input, shape index: {}]
  %s9 = inlined_call_operand.vmem [shape: f32[2,1,384], index: 9, kind: input, shape index: {}]
  %s10 = inlined_call_operand.vmem [shape: bf16[2,128,128], index: 10, kind: input, shape index: {}]
  %s11 = inlined_call_operand.vmem [shape: f32[2,1,128], index: 11, kind: input, shape index: {}]
  %s12 = inlined_call_operand.vmem [shape: f32[2,1,128], index: 12, kind: input, shape index: {}]
  %s13 = inlined_call_operand.vmem [shape: f32[2,1,128], index: 13, kind: input, shape index: {}]
  %s14 = inlined_call_operand.vmem [shape: bf16[2,128,512], index: 14, kind: input, shape index: {}]
  %s15 = inlined_call_operand.vmem [shape: f32[2,1,512], index: 15, kind: input, shape index: {}]
  %s16 = inlined_call_operand.vmem [shape: bf16[2,512,128], index: 16, kind: input, shape index: {}]
  %s17 = inlined_call_operand.vmem [shape: f32[2,1,128], index: 17, kind: input, shape index: {}]
  %s18 = inlined_call_operand.vmem [shape: f32[2,5,128], index: 18, kind: output, shape index: {}]
  %s19 = sld [smem:[#allocation0]]
  $region113: #{clip_vision_tower_forward.1} parent=0
    _
  %s21 = ssub.s32 1, %s19
  %s22 = scalar_select 0, %s21, %s19
  loop: start=0, step=1, limit=6
  $region2: #{clip_vision_tower_forward.1} parent=0 // loop_pre_header
    _
  $region3: #{clip_vision_tower_forward.1} parent=0 // loop_header
    %s24 = sphi 0, %s28
    %p25 = scmp.ge.s32.totalorder %s24, 6
    %s31 = sphi 0, %s43
    %s32 = sphi 0, %s39
    %s33 = sphi 0, %s31
    %s34 = sphi 0, %s32
    %s35 = sphi 0, %s33
    %s36 = sphi 0, %s34
    %s46 = sphi 0, %s48
    %s49 = sphi 0, %s46
    %s50 = sphi 0, %s49
    %s66 = sphi 0, %s50
    %s70 = sphi 0, %s70
    %s72 = sphi 0, %s70
    %s73 = sphi 0, %s72
    %s87 = sphi 0, %s73
    %s91 = sphi 0, %s91
    %s93 = sphi 0, %s91
    %s94 = sphi 0, %s93
    %s108 = sphi 0, %s94
    %s112 = sphi 0, %s112
    %s114 = sphi 0, %s112
    %s115 = sphi 0, %s114
    %s129 = sphi 0, %s115
    %s133 = sphi 0, %s133
    %s135 = sphi 0, %s133
    %s136 = sphi 0, %s135
    %s150 = sphi 0, %s136
    %s154 = sphi 0, %s154
    %s156 = sphi 0, %s154
    %s157 = sphi 0, %s156
    %s171 = sphi 0, %s157
    %s177 = sphi 0, %s179
    %s180 = sphi 0, %s177
    %s181 = sphi 0, %s180
    %s197 = sphi 0, %s181
    %s203 = sphi 0, %s205
    %s206 = sphi 0, %s203
    %s207 = sphi 0, %s206
    %s223 = sphi 0, %s207
    %s229 = sphi 0, %s231
    %s232 = sphi 0, %s229
    %s233 = sphi 0, %s232
    %s249 = sphi 0, %s233
    %s255 = sphi 0, %s257
    %s258 = sphi 0, %s255
    %s259 = sphi 0, %s258
    %s275 = sphi 0, %s259
    %s281 = sphi 0, %s283
    %s284 = sphi 0, %s281
    %s285 = sphi 0, %s284
    %s301 = sphi 0, %s285
    %s307 = sphi 0, %s309
    %s310 = sphi 0, %s307
    %s311 = sphi 0, %s310
    %s327 = sphi 0, %s311
    %s333 = sphi 0, %s335
    %s336 = sphi 0, %s333
    %s337 = sphi 0, %s336
    %s353 = sphi 0, %s337
    %s359 = sphi 0, %s361
    %s362 = sphi 0, %s359
    %s363 = sphi 0, %s362
    %s379 = sphi 0, %s363
    %s385 = sphi 0, %s387
    %s388 = sphi 0, %s385
    %s389 = sphi 0, %s388
    %s405 = sphi 0, %s389
    %s411 = sphi 0, %s413
    %s414 = sphi 0, %s411
    %s415 = sphi 0, %s414
    %s431 = sphi 0, %s415
    %s437 = sphi 0, %s439
    %s440 = sphi 0, %s437
    %s441 = sphi 0, %s440
    %s457 = sphi 0, %s441
    %s463 = sphi 0, %s465
    %s466 = sphi 0, %s463
    %s467 = sphi 0, %s466
    %s483 = sphi 0, %s467
    %s489 = sphi 0, %s491
    %s492 = sphi 0, %s489
    %s493 = sphi 0, %s492
    %s509 = sphi 0, %s493
  $region4: #{clip_vision_tower_forward.1} parent=0 // loop_header_branch
    %27 = sbr.rel (%p25) target = $region8
  $region5: #{clip_vision_tower_forward.1} parent=0 // loop_body
    %s29 = ssub.s32 %s24, 1
    %s30 = ssub.s32 %s24, 2
    %s37 = sadd.s32 1, %s32
    %p38 = scmp.ge.s32.totalorder %s37, 2
    %s39 = scalar_select %p38, 0, %s37
    %s40 = sadd.s32 1, %s31
    %s41 = scalar_select %p38, %s40, %s31
    %p42 = scmp.ge.s32.totalorder %s41, 2
    %s43 = scalar_select %p42, 0, %s41
    %s44 = ssub.s32 %s31, %s43
    %p45 = scmp.eq.s32.totalorder %s44, 0
    %s47 = sadd.s32 %s46, 1
    %s48 = scalar_select %p45, %s46, %s47
    %p51 = pneg %p45
    %p52 = scmp.eq.s32.totalorder %s24, 3
    %p53 = por %p51, %p52
    %p54 = scmp.ne.s32.totalorder %s46, %s49
    %p55 = scmp.eq.s32.totalorder %s24, 0
    %p56 = por %p54, %p55
    %p57 = scmp.ne.s32.totalorder %s46, %s49
    %p58 = scmp.eq.s32.totalorder %s29, 3
    %p59 = por %p57, %p58
    %p60 = scmp.ne.s32.totalorder %s49, %s50
    %p61 = scmp.eq.s32.totalorder %s29, 0
    %p62 = por %p60, %p61
    %p63 = scmp.ne.s32.totalorder %s49, %s50
    %p64 = scmp.eq.s32.totalorder %s30, 3
    %p65 = por %p63, %p64
    %p67 = scmp.ne.s32.totalorder %s50, %s66
    %p68 = scmp.eq.s32.totalorder %s30, 0
    %p69 = por %p67, %p68
    %s71 = sadd.s32 %s70, 1
    %p74 = scmp.eq.s32.totalorder %s24, 3
    %p75 = scmp.ne.s32.totalorder %s70, %s72
    %p76 = scmp.eq.s32.totalorder %s24, 0
    %p77 = por %p75, %p76
    %p78 = scmp.ne.s32.totalorder %s70, %s72
    %p79 = scmp.eq.s32.totalorder %s29, 3
    %p80 = por %p78, %p79
    %p81 = scmp.ne.s32.totalorder %s72, %s73
    %p82 = scmp.eq.s32.totalorder %s29, 0
    %p83 = por %p81, %p82
    %p84 = scmp.ne.s32.totalorder %s72, %s73
    %p85 = scmp.eq.s32.totalorder %s30, 3
    %p86 = por %p84, %p85
    %p88 = scmp.ne.s32.totalorder %s73, %s87
    %p89 = scmp.eq.s32.totalorder %s30, 0
    %p90 = por %p88, %p89
    %s92 = sadd.s32 %s91, 1
    %p95 = scmp.eq.s32.totalorder %s24, 3
    %p96 = scmp.ne.s32.totalorder %s91, %s93
    %p97 = scmp.eq.s32.totalorder %s24, 0
    %p98 = por %p96, %p97
    %p99 = scmp.ne.s32.totalorder %s91, %s93
    %p100 = scmp.eq.s32.totalorder %s29, 3
    %p101 = por %p99, %p100
    %p102 = scmp.ne.s32.totalorder %s93, %s94
    %p103 = scmp.eq.s32.totalorder %s29, 0
    %p104 = por %p102, %p103
    %p105 = scmp.ne.s32.totalorder %s93, %s94
    %p106 = scmp.eq.s32.totalorder %s30, 3
    %p107 = por %p105, %p106
    %p109 = scmp.ne.s32.totalorder %s94, %s108
    %p110 = scmp.eq.s32.totalorder %s30, 0
    %p111 = por %p109, %p110
    %s113 = sadd.s32 %s112, 1
    %p116 = scmp.eq.s32.totalorder %s24, 3
    %p117 = scmp.ne.s32.totalorder %s112, %s114
    %p118 = scmp.eq.s32.totalorder %s24, 0
    %p119 = por %p117, %p118
    %p120 = scmp.ne.s32.totalorder %s112, %s114
    %p121 = scmp.eq.s32.totalorder %s29, 3
    %p122 = por %p120, %p121
    %p123 = scmp.ne.s32.totalorder %s114, %s115
    %p124 = scmp.eq.s32.totalorder %s29, 0
    %p125 = por %p123, %p124
    %p126 = scmp.ne.s32.totalorder %s114, %s115
    %p127 = scmp.eq.s32.totalorder %s30, 3
    %p128 = por %p126, %p127
    %p130 = scmp.ne.s32.totalorder %s115, %s129
    %p131 = scmp.eq.s32.totalorder %s30, 0
    %p132 = por %p130, %p131
    %s134 = sadd.s32 %s133, 1
    %p137 = scmp.eq.s32.totalorder %s24, 3
    %p138 = scmp.ne.s32.totalorder %s133, %s135
    %p139 = scmp.eq.s32.totalorder %s24, 0
    %p140 = por %p138, %p139
    %p141 = scmp.ne.s32.totalorder %s133, %s135
    %p142 = scmp.eq.s32.totalorder %s29, 3
    %p143 = por %p141, %p142
    %p144 = scmp.ne.s32.totalorder %s135, %s136
    %p145 = scmp.eq.s32.totalorder %s29, 0
    %p146 = por %p144, %p145
    %p147 = scmp.ne.s32.totalorder %s135, %s136
    %p148 = scmp.eq.s32.totalorder %s30, 3
    %p149 = por %p147, %p148
    %p151 = scmp.ne.s32.totalorder %s136, %s150
    %p152 = scmp.eq.s32.totalorder %s30, 0
    %p153 = por %p151, %p152
    %s155 = sadd.s32 %s154, 1
    %p158 = scmp.eq.s32.totalorder %s24, 3
    %p159 = scmp.ne.s32.totalorder %s154, %s156
    %p160 = scmp.eq.s32.totalorder %s24, 0
    %p161 = por %p159, %p160
    %p162 = scmp.ne.s32.totalorder %s154, %s156
    %p163 = scmp.eq.s32.totalorder %s29, 3
    %p164 = por %p162, %p163
    %p165 = scmp.ne.s32.totalorder %s156, %s157
    %p166 = scmp.eq.s32.totalorder %s29, 0
    %p167 = por %p165, %p166
    %p168 = scmp.ne.s32.totalorder %s156, %s157
    %p169 = scmp.eq.s32.totalorder %s30, 3
    %p170 = por %p168, %p169
    %p172 = scmp.ne.s32.totalorder %s157, %s171
    %p173 = scmp.eq.s32.totalorder %s30, 0
    %p174 = por %p172, %p173
    %s175 = ssub.s32 %s32, %s39
    %p176 = scmp.eq.s32.totalorder %s175, 0
    %s178 = sadd.s32 %s177, 1
    %s179 = scalar_select %p176, %s177, %s178
    %p182 = pneg %p176
    %p183 = scmp.eq.s32.totalorder %s24, 3
    %p184 = por %p182, %p183
    %p185 = scmp.ne.s32.totalorder %s177, %s180
    %p186 = scmp.eq.s32.totalorder %s24, 0
    %p187 = por %p185, %p186
    %p188 = scmp.ne.s32.totalorder %s177, %s180
    %p189 = scmp.eq.s32.totalorder %s29, 3
    %p190 = por %p188, %p189
    %p191 = scmp.ne.s32.totalorder %s180, %s181
    %p192 = scmp.eq.s32.totalorder %s29, 0
    %p193 = por %p191, %p192
    %p194 = scmp.ne.s32.totalorder %s180, %s181
    %p195 = scmp.eq.s32.totalorder %s30, 3
    %p196 = por %p194, %p195
    %p198 = scmp.ne.s32.totalorder %s181, %s197
    %p199 = scmp.eq.s32.totalorder %s30, 0
    %p200 = por %p198, %p199
    %s201 = ssub.s32 %s32, %s39
    %p202 = scmp.eq.s32.totalorder %s201, 0
    %s204 = sadd.s32 %s203, 1
    %s205 = scalar_select %p202, %s203, %s204
    %p208 = pneg %p202
    %p209 = scmp.eq.s32.totalorder %s24, 3
    %p210 = por %p208, %p209
    %p211 = scmp.ne.s32.totalorder %s203, %s206
    %p212 = scmp.eq.s32.totalorder %s24, 0
    %p213 = por %p211, %p212
    %p214 = scmp.ne.s32.totalorder %s203, %s206
    %p215 = scmp.eq.s32.totalorder %s29, 3
    %p216 = por %p214, %p215
    %p217 = scmp.ne.s32.totalorder %s206, %s207
    %p218 = scmp.eq.s32.totalorder %s29, 0
    %p219 = por %p217, %p218
    %p220 = scmp.ne.s32.totalorder %s206, %s207
    %p221 = scmp.eq.s32.totalorder %s30, 3
    %p222 = por %p220, %p221
    %p224 = scmp.ne.s32.totalorder %s207, %s223
    %p225 = scmp.eq.s32.totalorder %s30, 0
    %p226 = por %p224, %p225
    %s227 = ssub.s32 %s32, %s39
    %p228 = scmp.eq.s32.totalorder %s227, 0
    %s230 = sadd.s32 %s229, 1
    %s231 = scalar_select %p228, %s229, %s230
    %p234 = pneg %p228
    %p235 = scmp.eq.s32.totalorder %s24, 3
    %p236 = por %p234, %p235
    %p237 = scmp.ne.s32.totalorder %s229, %s232
    %p238 = scmp.eq.s32.totalorder %s24, 0
    %p239 = por %p237, %p238
    %p240 = scmp.ne.s32.totalorder %s229, %s232
    %p241 = scmp.eq.s32.totalorder %s29, 3
    %p242 = por %p240, %p241
    %p243 = scmp.ne.s32.totalorder %s232, %s233
    %p244 = scmp.eq.s32.totalorder %s29, 0
    %p245 = por %p243, %p244
    %p246 = scmp.ne.s32.totalorder %s232, %s233
    %p247 = scmp.eq.s32.totalorder %s30, 3
    %p248 = por %p246, %p247
    %p250 = scmp.ne.s32.totalorder %s233, %s249
    %p251 = scmp.eq.s32.totalorder %s30, 0
    %p252 = por %p250, %p251
    %s253 = ssub.s32 %s32, %s39
    %p254 = scmp.eq.s32.totalorder %s253, 0
    %s256 = sadd.s32 %s255, 1
    %s257 = scalar_select %p254, %s255, %s256
    %p260 = pneg %p254
    %p261 = scmp.eq.s32.totalorder %s24, 3
    %p262 = por %p260, %p261
    %p263 = scmp.ne.s32.totalorder %s255, %s258
    %p264 = scmp.eq.s32.totalorder %s24, 0
    %p265 = por %p263, %p264
    %p266 = scmp.ne.s32.totalorder %s255, %s258
    %p267 = scmp.eq.s32.totalorder %s29, 3
    %p268 = por %p266, %p267
    %p269 = scmp.ne.s32.totalorder %s258, %s259
    %p270 = scmp.eq.s32.totalorder %s29, 0
    %p271 = por %p269, %p270
    %p272 = scmp.ne.s32.totalorder %s258, %s259
    %p273 = scmp.eq.s32.totalorder %s30, 3
    %p274 = por %p272, %p273
    %p276 = scmp.ne.s32.totalorder %s259, %s275
    %p277 = scmp.eq.s32.totalorder %s30, 0
    %p278 = por %p276, %p277
    %s279 = ssub.s32 %s32, %s39
    %p280 = scmp.eq.s32.totalorder %s279, 0
    %s282 = sadd.s32 %s281, 1
    %s283 = scalar_select %p280, %s281, %s282
    %p286 = pneg %p280
    %p287 = scmp.eq.s32.totalorder %s24, 3
    %p288 = por %p286, %p287
    %p289 = scmp.ne.s32.totalorder %s281, %s284
    %p290 = scmp.eq.s32.totalorder %s24, 0
    %p291 = por %p289, %p290
    %p292 = scmp.ne.s32.totalorder %s281, %s284
    %p293 = scmp.eq.s32.totalorder %s29, 3
    %p294 = por %p292, %p293
    %p295 = scmp.ne.s32.totalorder %s284, %s285
    %p296 = scmp.eq.s32.totalorder %s29, 0
    %p297 = por %p295, %p296
    %p298 = scmp.ne.s32.totalorder %s284, %s285
    %p299 = scmp.eq.s32.totalorder %s30, 3
    %p300 = por %p298, %p299
    %p302 = scmp.ne.s32.totalorder %s285, %s301
    %p303 = scmp.eq.s32.totalorder %s30, 0
    %p304 = por %p302, %p303
    %s305 = ssub.s32 %s32, %s39
    %p306 = scmp.eq.s32.totalorder %s305, 0
    %s308 = sadd.s32 %s307, 1
    %s309 = scalar_select %p306, %s307, %s308
    %p312 = pneg %p306
    %p313 = scmp.eq.s32.totalorder %s24, 3
    %p314 = por %p312, %p313
    %p315 = scmp.ne.s32.totalorder %s307, %s310
    %p316 = scmp.eq.s32.totalorder %s24, 0
    %p317 = por %p315, %p316
    %p318 = scmp.ne.s32.totalorder %s307, %s310
    %p319 = scmp.eq.s32.totalorder %s29, 3
    %p320 = por %p318, %p319
    %p321 = scmp.ne.s32.totalorder %s310, %s311
    %p322 = scmp.eq.s32.totalorder %s29, 0
    %p323 = por %p321, %p322
    %p324 = scmp.ne.s32.totalorder %s310, %s311
    %p325 = scmp.eq.s32.totalorder %s30, 3
    %p326 = por %p324, %p325
    %p328 = scmp.ne.s32.totalorder %s311, %s327
    %p329 = scmp.eq.s32.totalorder %s30, 0
    %p330 = por %p328, %p329
    %s331 = ssub.s32 %s32, %s39
    %p332 = scmp.eq.s32.totalorder %s331, 0
    %s334 = sadd.s32 %s333, 1
    %s335 = scalar_select %p332, %s333, %s334
    %p338 = pneg %p332
    %p339 = scmp.eq.s32.totalorder %s24, 3
    %p340 = por %p338, %p339
    %p341 = scmp.ne.s32.totalorder %s333, %s336
    %p342 = scmp.eq.s32.totalorder %s24, 0
    %p343 = por %p341, %p342
    %p344 = scmp.ne.s32.totalorder %s333, %s336
    %p345 = scmp.eq.s32.totalorder %s29, 3
    %p346 = por %p344, %p345
    %p347 = scmp.ne.s32.totalorder %s336, %s337
    %p348 = scmp.eq.s32.totalorder %s29, 0
    %p349 = por %p347, %p348
    %p350 = scmp.ne.s32.totalorder %s336, %s337
    %p351 = scmp.eq.s32.totalorder %s30, 3
    %p352 = por %p350, %p351
    %p354 = scmp.ne.s32.totalorder %s337, %s353
    %p355 = scmp.eq.s32.totalorder %s30, 0
    %p356 = por %p354, %p355
    %s357 = ssub.s32 %s32, %s39
    %p358 = scmp.eq.s32.totalorder %s357, 0
    %s360 = sadd.s32 %s359, 1
    %s361 = scalar_select %p358, %s359, %s360
    %p364 = pneg %p358
    %p365 = scmp.eq.s32.totalorder %s24, 3
    %p366 = por %p364, %p365
    %p367 = scmp.ne.s32.totalorder %s359, %s362
    %p368 = scmp.eq.s32.totalorder %s24, 0
    %p369 = por %p367, %p368
    %p370 = scmp.ne.s32.totalorder %s359, %s362
    %p371 = scmp.eq.s32.totalorder %s29, 3
    %p372 = por %p370, %p371
    %p373 = scmp.ne.s32.totalorder %s362, %s363
    %p374 = scmp.eq.s32.totalorder %s29, 0
    %p375 = por %p373, %p374
    %p376 = scmp.ne.s32.totalorder %s362, %s363
    %p377 = scmp.eq.s32.totalorder %s30, 3
    %p378 = por %p376, %p377
    %p380 = scmp.ne.s32.totalorder %s363, %s379
    %p381 = scmp.eq.s32.totalorder %s30, 0
    %p382 = por %p380, %p381
    %s383 = ssub.s32 %s32, %s39
    %p384 = scmp.eq.s32.totalorder %s383, 0
    %s386 = sadd.s32 %s385, 1
    %s387 = scalar_select %p384, %s385, %s386
    %p390 = pneg %p384
    %p391 = scmp.eq.s32.totalorder %s24, 3
    %p392 = por %p390, %p391
    %p393 = scmp.ne.s32.totalorder %s385, %s388
    %p394 = scmp.eq.s32.totalorder %s24, 0
    %p395 = por %p393, %p394
    %p396 = scmp.ne.s32.totalorder %s385, %s388
    %p397 = scmp.eq.s32.totalorder %s29, 3
    %p398 = por %p396, %p397
    %p399 = scmp.ne.s32.totalorder %s388, %s389
    %p400 = scmp.eq.s32.totalorder %s29, 0
    %p401 = por %p399, %p400
    %p402 = scmp.ne.s32.totalorder %s388, %s389
    %p403 = scmp.eq.s32.totalorder %s30, 3
    %p404 = por %p402, %p403
    %p406 = scmp.ne.s32.totalorder %s389, %s405
    %p407 = scmp.eq.s32.totalorder %s30, 0
    %p408 = por %p406, %p407
    %s409 = ssub.s32 %s32, %s39
    %p410 = scmp.eq.s32.totalorder %s409, 0
    %s412 = sadd.s32 %s411, 1
    %s413 = scalar_select %p410, %s411, %s412
    %p416 = pneg %p410
    %p417 = scmp.eq.s32.totalorder %s24, 3
    %p418 = por %p416, %p417
    %p419 = scmp.ne.s32.totalorder %s411, %s414
    %p420 = scmp.eq.s32.totalorder %s24, 0
    %p421 = por %p419, %p420
    %p422 = scmp.ne.s32.totalorder %s411, %s414
    %p423 = scmp.eq.s32.totalorder %s29, 3
    %p424 = por %p422, %p423
    %p425 = scmp.ne.s32.totalorder %s414, %s415
    %p426 = scmp.eq.s32.totalorder %s29, 0
    %p427 = por %p425, %p426
    %p428 = scmp.ne.s32.totalorder %s414, %s415
    %p429 = scmp.eq.s32.totalorder %s30, 3
    %p430 = por %p428, %p429
    %p432 = scmp.ne.s32.totalorder %s415, %s431
    %p433 = scmp.eq.s32.totalorder %s30, 0
    %p434 = por %p432, %p433
    %s435 = ssub.s32 %s32, %s39
    %p436 = scmp.eq.s32.totalorder %s435, 0
    %s438 = sadd.s32 %s437, 1
    %s439 = scalar_select %p436, %s437, %s438
    %p442 = pneg %p436
    %p443 = scmp.eq.s32.totalorder %s24, 3
    %p444 = por %p442, %p443
    %p445 = scmp.ne.s32.totalorder %s437, %s440
    %p446 = scmp.eq.s32.totalorder %s24, 0
    %p447 = por %p445, %p446
    %p448 = scmp.ne.s32.totalorder %s437, %s440
    %p449 = scmp.eq.s32.totalorder %s29, 3
    %p450 = por %p448, %p449
    %p451 = scmp.ne.s32.totalorder %s440, %s441
    %p452 = scmp.eq.s32.totalorder %s29, 0
    %p453 = por %p451, %p452
    %p454 = scmp.ne.s32.totalorder %s440, %s441
    %p455 = scmp.eq.s32.totalorder %s30, 3
    %p456 = por %p454, %p455
    %p458 = scmp.ne.s32.totalorder %s441, %s457
    %p459 = scmp.eq.s32.totalorder %s30, 0
    %p460 = por %p458, %p459
    %s461 = ssub.s32 %s32, %s39
    %p462 = scmp.eq.s32.totalorder %s461, 0
    %s464 = sadd.s32 %s463, 1
    %s465 = scalar_select %p462, %s463, %s464
    %p468 = pneg %p462
    %p469 = scmp.eq.s32.totalorder %s24, 3
    %p470 = por %p468, %p469
    %p471 = scmp.ne.s32.totalorder %s463, %s466
    %p472 = scmp.eq.s32.totalorder %s24, 0
    %p473 = por %p471, %p472
    %p474 = scmp.ne.s32.totalorder %s463, %s466
    %p475 = scmp.eq.s32.totalorder %s29, 3
    %p476 = por %p474, %p475
    %p477 = scmp.ne.s32.totalorder %s466, %s467
    %p478 = scmp.eq.s32.totalorder %s29, 0
    %p479 = por %p477, %p478
    %p480 = scmp.ne.s32.totalorder %s466, %s467
    %p481 = scmp.eq.s32.totalorder %s30, 3
    %p482 = por %p480, %p481
    %p484 = scmp.ne.s32.totalorder %s467, %s483
    %p485 = scmp.eq.s32.totalorder %s30, 0
    %p486 = por %p484, %p485
    %s487 = ssub.s32 %s31, %s43
    %p488 = scmp.eq.s32.totalorder %s487, 0
    %s490 = sadd.s32 %s489, 1
    %s491 = scalar_select %p488, %s489, %s490
    %p494 = pneg %p488
    %p495 = scmp.eq.s32.totalorder %s24, 3
    %p496 = por %p494, %p495
    %p497 = scmp.ne.s32.totalorder %s489, %s492
    %p498 = scmp.eq.s32.totalorder %s24, 0
    %p499 = por %p497, %p498
    %p500 = scmp.ne.s32.totalorder %s489, %s492
    %p501 = scmp.eq.s32.totalorder %s29, 3
    %p502 = por %p500, %p501
    %p503 = scmp.ne.s32.totalorder %s492, %s493
    %p504 = scmp.eq.s32.totalorder %s29, 0
    %p505 = por %p503, %p504
    %p506 = scmp.ne.s32.totalorder %s492, %s493
    %p507 = scmp.eq.s32.totalorder %s30, 3
    %p508 = por %p506, %p507
    %p510 = scmp.ne.s32.totalorder %s493, %s509
    %p511 = scmp.eq.s32.totalorder %s30, 0
    %p512 = por %p510, %p511
    %p513 = scmp.le.s32.totalorder 1, %s24
    %p514 = scmp.lt.s32.totalorder %s24, 5
    %p515 = pnand %p513, %p514
    %p516 = pneg %p515
    // Predicated region
    $region9: #{clip_vision_tower_forward.1} parent=5 // pred_check
      _
    $region10: #{clip_vision_tower_forward.1} parent=5 // pred_check_branch
      %518 = sbr.rel (%p515) target = $region12
    $region11: #{clip_vision_tower_forward.1} parent=5 // pred_region
      %s519 = ssub.s32 %s24, 1
      // Predicated region
      $region13: #{clip_vision_tower_forward.1} parent=11 // pred_check
        %p520 = pneg %p83
      $region14: #{clip_vision_tower_forward.1} parent=11 // pred_check_branch
        %522 = sbr.rel (%p520) target = $region16
      $region15: #{clip_vision_tower_forward.1} parent=11 // pred_region
        _
      $region16: #{clip_vision_tower_forward.1} parent=11 // pred_fallthru
        _
      // Predicated region
      $region17: #{clip_vision_tower_forward.1} parent=11 // pred_check
        %p523 = pneg %p104
      $region18: #{clip_vision_tower_forward.1} parent=11 // pred_check_branch
        %525 = sbr.rel (%p523) target = $region20
      $region19: #{clip_vision_tower_forward.1} parent=11 // pred_region
        _
      $region20: #{clip_vision_tower_forward.1} parent=11 // pred_fallthru
        _
      // Predicated region
      $region21: #{clip_vision_tower_forward.1} parent=11 // pred_check
        %p526 = pneg %p125
      $region22: #{clip_vision_tower_forward.1} parent=11 // pred_check_branch
        %528 = sbr.rel (%p526) target = $region24
      $region23: #{clip_vision_tower_forward.1} parent=11 // pred_region
        _
      $region24: #{clip_vision_tower_forward.1} parent=11 // pred_fallthru
        _
      // Predicated region
      $region25: #{clip_vision_tower_forward.1} parent=11 // pred_check
        %p529 = pneg %p146
      $region26: #{clip_vision_tower_forward.1} parent=11 // pred_check_branch
        %531 = sbr.rel (%p529) target = $region28
      $region27: #{clip_vision_tower_forward.1} parent=11 // pred_region
        _
      $region28: #{clip_vision_tower_forward.1} parent=11 // pred_fallthru
        _
      // Predicated region
      $region29: #{clip_vision_tower_forward.1} parent=11 // pred_check
        %p532 = pneg %p167
      $region30: #{clip_vision_tower_forward.1} parent=11 // pred_check_branch
        %534 = sbr.rel (%p532) target = $region32
      $region31: #{clip_vision_tower_forward.1} parent=11 // pred_region
        _
      $region32: #{clip_vision_tower_forward.1} parent=11 // pred_fallthru
        _
    $region12: #{clip_vision_tower_forward.1} parent=5 // pred_fallthru
      _
    %p535 = scmp.lt.s32.totalorder %s24, 4
    // Predicated region
    $region33: #{clip_vision_tower_forward.1} parent=5 // pred_check
      %p536 = pneg %p535
    $region34: #{clip_vision_tower_forward.1} parent=5 // pred_check_branch
      %538 = sbr.rel (%p536) target = $region36
    $region35: #{clip_vision_tower_forward.1} parent=5 // pred_region
      // Predicated region
      $region37: #{clip_vision_tower_forward.1} parent=35 // pred_check
        %p539 = pneg %p56
      $region38: #{clip_vision_tower_forward.1} parent=35 // pred_check_branch
        %541 = sbr.rel (%p539) target = $region40
      $region39: #{clip_vision_tower_forward.1} parent=35 // pred_region
        %p542 = scmp.lt.s32.totalorder %s31, 1
        %s543 = scalar_select %p542, %s31, 1
        %s544 = smul.addr %s543, 6
        %s545 = smul.addr %s544, 4
        %s546 = scalar_lea.vmem %s0, %s545
      $region40: #{clip_vision_tower_forward.1} parent=35 // pred_fallthru
        _
      // Predicated region
      $region41: #{clip_vision_tower_forward.1} parent=35 // pred_check
        %p547 = pneg %p187
      $region42: #{clip_vision_tower_forward.1} parent=35 // pred_check_branch
        %549 = sbr.rel (%p547) target = $region44
      $region43: #{clip_vision_tower_forward.1} parent=35 // pred_region
        %p550 = scmp.lt.s32.totalorder %s32, 1
        %s551 = scalar_select %p550, %s32, 1
        %s552 = scalar_lea.vmem %s6, %s551
      $region44: #{clip_vision_tower_forward.1} parent=35 // pred_fallthru
        _
      // Predicated region
      $region45: #{clip_vision_tower_forward.1} parent=35 // pred_check
        %p553 = pneg %p213
      $region46: #{clip_vision_tower_forward.1} parent=35 // pred_check_branch
        %555 = sbr.rel (%p553) target = $region48
      $region47: #{clip_vision_tower_forward.1} parent=35 // pred_region
        %p556 = scmp.lt.s32.totalorder %s32, 1
        %s557 = scalar_select %p556, %s32, 1
        %s558 = scalar_lea.vmem %s7, %s557
      $region48: #{clip_vision_tower_forward.1} parent=35 // pred_fallthru
        _
      // Predicated region
      $region49: #{clip_vision_tower_forward.1} parent=35 // pred_check
        %p559 = pneg %p239
      $region50: #{clip_vision_tower_forward.1} parent=35 // pred_check_branch
        %561 = sbr.rel (%p559) target = $region52
      $region51: #{clip_vision_tower_forward.1} parent=35 // pred_region
        %p562 = scmp.lt.s32.totalorder %s32, 1
        %s563 = scalar_select %p562, %s32, 1
        %s564 = smul.addr %s563, 48
        %s565 = smul.addr %s564, 4
        %s566 = scalar_lea.vmem %s8, %s565
      $region52: #{clip_vision_tower_forward.1} parent=35 // pred_fallthru
        _
      // Predicated region
      $region53: #{clip_vision_tower_forward.1} parent=35 // pred_check
        %p567 = pneg %p265
      $region54: #{clip_vision_tower_forward.1} parent=35 // pred_check_branch
        %569 = sbr.rel (%p567) target = $region56
      $region55: #{clip_vision_tower_forward.1} parent=35 // pred_region
        %p570 = scmp.lt.s32.totalorder %s32, 1
        %s571 = scalar_select %p570, %s32, 1
        %s572 = smul.addr %s571, 3
        %s573 = scalar_lea.vmem %s9, %s572
      $region56: #{clip_vision_tower_forward.1} parent=35 // pred_fallthru
        _
      // Predicated region
      $region57: #{clip_vision_tower_forward.1} parent=35 // pred_check
        %p574 = pneg %p291
      $region58: #{clip_vision_tower_forward.1} parent=35 // pred_check_branch
        %576 = sbr.rel (%p574) target = $region60
      $region59: #{clip_vision_tower_forward.1} parent=35 // pred_region
        %p577 = scmp.lt.s32.totalorder %s32, 1
        %s578 = scalar_select %p577, %s32, 1
        %s579 = smul.addr %s578, 16
        %s580 = smul.addr %s579, 4
        %s581 = scalar_lea.vmem %s10, %s580
      $region60: #{clip_vision_tower_forward.1} parent=35 // pred_fallthru
        _
      // Predicated region
      $region61: #{clip_vision_tower_forward.1} parent=35 // pred_check
        %p582 = pneg %p317
      $region62: #{clip_vision_tower_forward.1} parent=35 // pred_check_branch
        %584 = sbr.rel (%p582) target = $region64
      $region63: #{clip_vision_tower_forward.1} parent=35 // pred_region
        %p585 = scmp.lt.s32.totalorder %s32, 1
        %s586 = scalar_select %p585, %s32, 1
        %s587 = scalar_lea.vmem %s11, %s586
      $region64: #{clip_vision_tower_forward.1} parent=35 // pred_fallthru
        _
      // Predicated region
      $region65: #{clip_vision_tower_forward.1} parent=35 // pred_check
        %p588 = pneg %p343
      $region66: #{clip_vision_tower_forward.1} parent=35 // pred_check_branch
        %590 = sbr.rel (%p588) target = $region68
      $region67: #{clip_vision_tower_forward.1} parent=35 // pred_region
        %p591 = scmp.lt.s32.totalorder %s32, 1
        %s592 = scalar_select %p591, %s32, 1
        %s593 = scalar_lea.vmem %s12, %s592
      $region68: #{clip_vision_tower_forward.1} parent=35 // pred_fallthru
        _
      // Predicated region
      $region69: #{clip_vision_tower_forward.1} parent=35 // pred_check
        %p594 = pneg %p369
      $region70: #{clip_vision_tower_forward.1} parent=35 // pred_check_branch
        %596 = sbr.rel (%p594) target = $region72
      $region71: #{clip_vision_tower_forward.1} parent=35 // pred_region
        %p597 = scmp.lt.s32.totalorder %s32, 1
        %s598 = scalar_select %p597, %s32, 1
        %s599 = scalar_lea.vmem %s13, %s598
      $region72: #{clip_vision_tower_forward.1} parent=35 // pred_fallthru
        _
      // Predicated region
      $region73: #{clip_vision_tower_forward.1} parent=35 // pred_check
        %p600 = pneg %p395
      $region74: #{clip_vision_tower_forward.1} parent=35 // pred_check_branch
        %602 = sbr.rel (%p600) target = $region76
      $region75: #{clip_vision_tower_forward.1} parent=35 // pred_region
        %p603 = scmp.lt.s32.totalorder %s32, 1
        %s604 = scalar_select %p603, %s32, 1
        %s605 = smul.addr %s604, 64
        %s606 = smul.addr %s605, 4
        %s607 = scalar_lea.vmem %s14, %s606
      $region76: #{clip_vision_tower_forward.1} parent=35 // pred_fallthru
        _
      // Predicated region
      $region77: #{clip_vision_tower_forward.1} parent=35 // pred_check
        %p608 = pneg %p421
      $region78: #{clip_vision_tower_forward.1} parent=35 // pred_check_branch
        %610 = sbr.rel (%p608) target = $region80
      $region79: #{clip_vision_tower_forward.1} parent=35 // pred_region
        %p611 = scmp.lt.s32.totalorder %s32, 1
        %s612 = scalar_select %p611, %s32, 1
        %s613 = smul.addr %s612, 4
        %s614 = scalar_lea.vmem %s15, %s613
      $region80: #{clip_vision_tower_forward.1} parent=35 // pred_fallthru
        _
      // Predicated region
      $region81: #{clip_vision_tower_forward.1} parent=35 // pred_check
        %p615 = pneg %p447
      $region82: #{clip_vision_tower_forward.1} parent=35 // pred_check_branch
        %617 = sbr.rel (%p615) target = $region84
      $region83: #{clip_vision_tower_forward.1} parent=35 // pred_region
        %p618 = scmp.lt.s32.totalorder %s32, 1
        %s619 = scalar_select %p618, %s32, 1
        %s620 = smul.addr %s619, 64
        %s621 = smul.addr %s620, 4
        %s622 = scalar_lea.vmem %s16, %s621
      $region84: #{clip_vision_tower_forward.1} parent=35 // pred_fallthru
        _
      // Predicated region
      $region85: #{clip_vision_tower_forward.1} parent=35 // pred_check
        %p623 = pneg %p473
      $region86: #{clip_vision_tower_forward.1} parent=35 // pred_check_branch
        %625 = sbr.rel (%p623) target = $region88
      $region87: #{clip_vision_tower_forward.1} parent=35 // pred_region
        %p626 = scmp.lt.s32.totalorder %s32, 1
        %s627 = scalar_select %p626, %s32, 1
        %s628 = scalar_lea.vmem %s17, %s627
      $region88: #{clip_vision_tower_forward.1} parent=35 // pred_fallthru
        _
    $region36: #{clip_vision_tower_forward.1} parent=5 // pred_fallthru
      _
    %p629 = scmp.le.s32.totalorder 1, %s24
    %p630 = scmp.lt.s32.totalorder %s24, 5
    %p631 = pnand %p629, %p630
    %p632 = pneg %p631
    // Predicated region
    $region89: #{clip_vision_tower_forward.1} parent=5 // pred_check
      _
    $region90: #{clip_vision_tower_forward.1} parent=5 // pred_check_branch
      %634 = sbr.rel (%p631) target = $region92
    $region91: #{clip_vision_tower_forward.1} parent=5 // pred_region
      %s635 = ssub.s32 %s24, 1
      %p636 = scmp.lt.s32.totalorder %s33, 1
      %s637 = scalar_select %p636, %s33, 1
      %s638 = smul.addr %s637, 6
      %s639 = smul.addr %s638, 4
      %s640 = scalar_lea.vmem %s0, %s639
      %p641 = pneg %p62
      %p642 = pneg %p59
      %p643 = pneg %p83
      %p644 = pneg %p80
      %p645 = pneg %p104
      %p646 = pneg %p101
      %p647 = pneg %p125
      %p648 = pneg %p122
      %p649 = pneg %p146
      %p650 = pneg %p143
      %p651 = pneg %p167
      %p652 = pneg %p164
      %p653 = scmp.lt.s32.totalorder %s34, 1
      %s654 = scalar_select %p653, %s34, 1
      %s655 = scalar_lea.vmem %s6, %s654
      %p656 = pneg %p193
      %p657 = pneg %p190
      %p658 = scmp.lt.s32.totalorder %s34, 1
      %s659 = scalar_select %p658, %s34, 1
      %s660 = scalar_lea.vmem %s7, %s659
      %p661 = pneg %p219
      %p662 = pneg %p216
      %p663 = scmp.lt.s32.totalorder %s34, 1
      %s664 = scalar_select %p663, %s34, 1
      %s665 = smul.addr %s664, 48
      %s666 = smul.addr %s665, 4
      %s667 = scalar_lea.vmem %s8, %s666
      %p668 = pneg %p245
      %p669 = pneg %p242
      %p670 = scmp.lt.s32.totalorder %s34, 1
      %s671 = scalar_select %p670, %s34, 1
      %s672 = smul.addr %s671, 3
      %s673 = scalar_lea.vmem %s9, %s672
      %p674 = pneg %p271
      %p675 = pneg %p268
      %p676 = scmp.lt.s32.totalorder %s34, 1
      %s677 = scalar_select %p676, %s34, 1
      %s678 = smul.addr %s677, 16
      %s679 = smul.addr %s678, 4
      %s680 = scalar_lea.vmem %s10, %s679
      %p681 = pneg %p297
      %p682 = pneg %p294
      %p683 = scmp.lt.s32.totalorder %s34, 1
      %s684 = scalar_select %p683, %s34, 1
      %s685 = scalar_lea.vmem %s11, %s684
      %p686 = pneg %p323
      %p687 = pneg %p320
      %p688 = scmp.lt.s32.totalorder %s34, 1
      %s689 = scalar_select %p688, %s34, 1
      %s690 = scalar_lea.vmem %s12, %s689
      %p691 = pneg %p349
      %p692 = pneg %p346
      %p693 = scmp.lt.s32.totalorder %s34, 1
      %s694 = scalar_select %p693, %s34, 1
      %s695 = scalar_lea.vmem %s13, %s694
      %p696 = pneg %p375
      %p697 = pneg %p372
      %p698 = scmp.lt.s32.totalorder %s34, 1
      %s699 = scalar_select %p698, %s34, 1
      %s700 = smul.addr %s699, 64
      %s701 = smul.addr %s700, 4
      %s702 = scalar_lea.vmem %s14, %s701
      %p703 = pneg %p401
      %p704 = pneg %p398
      %p705 = scmp.lt.s32.totalorder %s34, 1
      %s706 = scalar_select %p705, %s34, 1
      %s707 = smul.addr %s706, 4
      %s708 = scalar_lea.vmem %s15, %s707
      %p709 = pneg %p427
      %p710 = pneg %p424
      %p711 = scmp.lt.s32.totalorder %s34, 1
      %s712 = scalar_select %p711, %s34, 1
      %s713 = smul.addr %s712, 64
      %s714 = smul.addr %s713, 4
      %s715 = scalar_lea.vmem %s16, %s714
      %p716 = pneg %p453
      %p717 = pneg %p450
      %p718 = scmp.lt.s32.totalorder %s34, 1
      %s719 = scalar_select %p718, %s34, 1
      %s720 = scalar_lea.vmem %s17, %s719
      %p721 = pneg %p479
      %p722 = pneg %p476
      %p723 = pneg %p505
      %p724 = pneg %p502
      %p725 = scmp.lt.s32.totalorder %s33, 1
      %s726 = scalar_select %p725, %s33, 1
      %s727 = smul.addr %s726, 8
      %s728 = scalar_lea.vmem %s18, %s727
      %p729 = scmp.lt.s32.totalorder %s33, 1
      %s730 = scalar_select %p729, %s33, 1
      %s731 = smul.addr %s730, 6
      %s732 = smul.addr %s731, 4
      %s733 = scalar_lea.vmem %s0, %s732
      %p734 = scmp.lt.s32.totalorder %s34, 1
      %s735 = scalar_select %p734, %s34, 1
      %s736 = scalar_lea.vmem %s6, %s735
      %p737 = scmp.lt.s32.totalorder %s34, 1
      %s738 = scalar_select %p737, %s34, 1
      %s739 = scalar_lea.vmem %s7, %s738
      %p740 = scmp.lt.s32.totalorder %s34, 1
      %s741 = scalar_select %p740, %s34, 1
      %s742 = smul.addr %s741, 48
      %s743 = smul.addr %s742, 4
      %s744 = scalar_lea.vmem %s8, %s743
      %p745 = scmp.lt.s32.totalorder %s34, 1
      %s746 = scalar_select %p745, %s34, 1
      %s747 = smul.addr %s746, 3
      %s748 = scalar_lea.vmem %s9, %s747
      %p749 = scmp.lt.s32.totalorder %s34, 1
      %s750 = scalar_select %p749, %s34, 1
      %s751 = smul.addr %s750, 16
      %s752 = smul.addr %s751, 4
      %s753 = scalar_lea.vmem %s10, %s752
      %p754 = scmp.lt.s32.totalorder %s34, 1
      %s755 = scalar_select %p754, %s34, 1
      %s756 = scalar_lea.vmem %s11, %s755
      %p757 = scmp.lt.s32.totalorder %s34, 1
      %s758 = scalar_select %p757, %s34, 1
      %s759 = scalar_lea.vmem %s12, %s758
      %p760 = scmp.lt.s32.totalorder %s34, 1
      %s761 = scalar_select %p760, %s34, 1
      %s762 = scalar_lea.vmem %s13, %s761
      %p763 = scmp.lt.s32.totalorder %s34, 1
      %s764 = scalar_select %p763, %s34, 1
      %s765 = smul.addr %s764, 64
      %s766 = smul.addr %s765, 4
      %s767 = scalar_lea.vmem %s14, %s766
      %p768 = scmp.lt.s32.totalorder %s34, 1
      %s769 = scalar_select %p768, %s34, 1
      %s770 = smul.addr %s769, 4
      %s771 = scalar_lea.vmem %s15, %s770
      %p772 = scmp.lt.s32.totalorder %s34, 1
      %s773 = scalar_select %p772, %s34, 1
      %s774 = smul.addr %s773, 64
      %s775 = smul.addr %s774, 4
      %s776 = scalar_lea.vmem %s16, %s775
      %p777 = scmp.lt.s32.totalorder %s34, 1
      %s778 = scalar_select %p777, %s34, 1
      %s779 = scalar_lea.vmem %s17, %s778
      %p780 = scmp.lt.s32.totalorder %s33, 1
      %s781 = scalar_select %p780, %s33, 1
      %s782 = smul.addr %s781, 8
      %s783 = scalar_lea.vmem %s18, %s782
      %p785 = scmp.eq.s32.totalorder %s34, 0
      // Predicated region
      $region93: #{clip_vision_tower_forward.1} parent=91 // pred_check
        %p786 = pneg %p785
      $region94: #{clip_vision_tower_forward.1} parent=91 // pred_check_branch
        %788 = sbr.rel (%p786) target = $region96
      $region95: #{clip_vision_tower_forward.1} parent=91 // pred_region
        %v789 = vld [vmem:[%s733] sm:$0xff]
        %v790 = vld [vmem:[%s733 + $0x8] sm:$0xff]
        %v791 = vld [vmem:[%s733 + $0x10] sm:$0xff]
        %v795 = vcombine.high %v789, %v789
        %v796 = vcombine.high %v790, %v790
        %v797 = vcombine.high %v791, %v791
        %v801 = vpack.c.bf16 %v789, %v789
        %v802 = vpack.c.bf16 %v795, %v795
        %v803 = vpack.c.bf16 %v790, %v790
        %v804 = vpack.c.bf16 %v796, %v796
        %v805 = vpack.c.bf16 %v791, %v791
        %v806 = vpack.c.bf16 %v797, %v797
        %v807 = vld [vmem:[%s3] sm:$0xf]
        %v808 = vld [vmem:[%s3 + $0x4] sm:$0xf]
        %v809 = vld [vmem:[%s3 + $0x8] sm:$0xf]
        %v810 = vld [vmem:[%s3 + $0xc] sm:$0xf]
        %v811 = vld [vmem:[%s3 + $0x10] sm:$0xf]
        %v812 = vld [vmem:[%s3 + $0x14] sm:$0xf]
        %v813 = vld [vmem:[%s3 + $0x18] sm:$0xf]
        %v814 = vld [vmem:[%s3 + $0x1c] sm:$0xf]
        %v815 = vld [vmem:[%s3 + $0x20] sm:$0xf]
        %v816 = vld [vmem:[%s3 + $0x24] sm:$0xf]
        %v817 = vld [vmem:[%s3 + $0x28] sm:$0xf]
        %v818 = vld [vmem:[%s3 + $0x2c] sm:$0xf]
        %v819 = vld [vmem:[%s3 + $0x30] sm:$0xf]
        %v820 = vld [vmem:[%s3 + $0x34] sm:$0xf]
        %v821 = vld [vmem:[%s3 + $0x38] sm:$0xf]
        %v822 = vld [vmem:[%s3 + $0x3c] sm:$0xf]
        %v823 = vld [vmem:[%s3 + $0x40] sm:$0xf]
        %v824 = vld [vmem:[%s3 + $0x44] sm:$0xf]
        %v825 = vld [vmem:[%s3 + $0x48] sm:$0xf]
        %v826 = vld [vmem:[%s3 + $0x4c] sm:$0xf]
        %v827 = vld [vmem:[%s3 + $0x50] sm:$0xf]
        %v828 = vld [vmem:[%s3 + $0x54] sm:$0xf]
        %v829 = vld [vmem:[%s3 + $0x58] sm:$0xf]
        %v830 = vld [vmem:[%s3 + $0x5c] sm:$0xf]
        %v831 = vld [vmem:[%s3 + $0x60] sm:$0xf]
        %v832 = vld [vmem:[%s3 + $0x64] sm:$0xf]
        %v833 = vld [vmem:[%s3 + $0x68] sm:$0xf]
        %v834 = vld [vmem:[%s3 + $0x6c] sm:$0xf]
        %v835 = vld [vmem:[%s3 + $0x70] sm:$0xf]
        %v836 = vld [vmem:[%s3 + $0x74] sm:$0xf]
        %v837 = vld [vmem:[%s3 + $0x78] sm:$0xf]
        %v838 = vld [vmem:[%s3 + $0x7c] sm:$0xf]
        %v839 = vld [vmem:[%s3 + $0x80] sm:$0xf]
        %v840 = vld [vmem:[%s3 + $0x84] sm:$0xf]
        %v841 = vld [vmem:[%s3 + $0x88] sm:$0xf]
        %v842 = vld [vmem:[%s3 + $0x8c] sm:$0xf]
        %v843 = vld [vmem:[%s3 + $0x90] sm:$0xf]
        %v844 = vld [vmem:[%s3 + $0x94] sm:$0xf]
        %v845 = vld [vmem:[%s3 + $0x98] sm:$0xf]
        %v846 = vld [vmem:[%s3 + $0x9c] sm:$0xf]
        %v847 = vld [vmem:[%s3 + $0xa0] sm:$0xf]
        %v848 = vld [vmem:[%s3 + $0xa4] sm:$0xf]
        %v849 = vld [vmem:[%s3 + $0xa8] sm:$0xf]
        %v850 = vld [vmem:[%s3 + $0xac] sm:$0xf]
        %v851 = vld [vmem:[%s3 + $0xb0] sm:$0xf]
        %v852 = vld [vmem:[%s3 + $0xb4] sm:$0xf]
        %v853 = vld [vmem:[%s3 + $0xb8] sm:$0xf]
        %v854 = vld [vmem:[%s3 + $0xbc] sm:$0xf]
        %v855 = vld [vmem:[%s3 + $0xc0] sm:$0xf]
        %v856 = vld [vmem:[%s3 + $0xc4] sm:$0xf]
        %v857 = vld [vmem:[%s3 + $0xc8] sm:$0xf]
        %v858 = vld [vmem:[%s3 + $0xcc] sm:$0xf]
        %v859 = vld [vmem:[%s3 + $0xd0] sm:$0xf]
        %v860 = vld [vmem:[%s3 + $0xd4] sm:$0xf]
        %v861 = vld [vmem:[%s3 + $0xd8] sm:$0xf]
        %v862 = vld [vmem:[%s3 + $0xdc] sm:$0xf]
        %v863 = vld [vmem:[%s3 + $0xe0] sm:$0xf]
        %v864 = vld [vmem:[%s3 + $0xe4] sm:$0xf]
        %v865 = vld [vmem:[%s3 + $0xe8] sm:$0xf]
        %v866 = vld [vmem:[%s3 + $0xec] sm:$0xf]
        %v867 = vld [vmem:[%s3 + $0xf0] sm:$0xf]
        %v868 = vld [vmem:[%s3 + $0xf4] sm:$0xf]
        %v869 = vld [vmem:[%s3 + $0xf8] sm:$0xf]
        %v870 = vld [vmem:[%s3 + $0xfc] sm:$0xf]
        %v871 = vld [vmem:[%s3 + $0x100] sm:$0xf]
        %v872 = vld [vmem:[%s3 + $0x104] sm:$0xf]
        %v873 = vld [vmem:[%s3 + $0x108] sm:$0xf]
        %v874 = vld [vmem:[%s3 + $0x10c] sm:$0xf]
        %v875 = vld [vmem:[%s3 + $0x110] sm:$0xf]
        %v876 = vld [vmem:[%s3 + $0x114] sm:$0xf]
        %v877 = vld [vmem:[%s3 + $0x118] sm:$0xf]
        %v878 = vld [vmem:[%s3 + $0x11c] sm:$0xf]
        %v879 = vld [vmem:[%s3 + $0x120] sm:$0xf]
        %v880 = vld [vmem:[%s3 + $0x124] sm:$0xf]
        %v881 = vld [vmem:[%s3 + $0x128] sm:$0xf]
        %v882 = vld [vmem:[%s3 + $0x12c] sm:$0xf]
        %v883 = vld [vmem:[%s3 + $0x130] sm:$0xf]
        %v884 = vld [vmem:[%s3 + $0x134] sm:$0xf]
        %v885 = vld [vmem:[%s3 + $0x138] sm:$0xf]
        %v886 = vld [vmem:[%s3 + $0x13c] sm:$0xf]
        %v887 = vld [vmem:[%s3 + $0x140] sm:$0xf]
        %v888 = vld [vmem:[%s3 + $0x144] sm:$0xf]
        %v889 = vld [vmem:[%s3 + $0x148] sm:$0xf]
        %v890 = vld [vmem:[%s3 + $0x14c] sm:$0xf]
        %v891 = vld [vmem:[%s3 + $0x150] sm:$0xf]
        %v892 = vld [vmem:[%s3 + $0x154] sm:$0xf]
        %v893 = vld [vmem:[%s3 + $0x158] sm:$0xf]
        %v894 = vld [vmem:[%s3 + $0x15c] sm:$0xf]
        %v895 = vld [vmem:[%s3 + $0x160] sm:$0xf]
        %v896 = vld [vmem:[%s3 + $0x164] sm:$0xf]
        %v897 = vld [vmem:[%s3 + $0x168] sm:$0xf]
        %v898 = vld [vmem:[%s3 + $0x16c] sm:$0xf]
        %v899 = vld [vmem:[%s3 + $0x170] sm:$0xf]
        %v900 = vld [vmem:[%s3 + $0x174] sm:$0xf]
        %v901 = vld [vmem:[%s3 + $0x178] sm:$0xf]
        %v902 = vld [vmem:[%s3 + $0x17c] sm:$0xf]
        %v903 = vld [vmem:[%s2] sm:$0xf]
        %v1000 = vunpack.c.l.b16 %v807
        %v1001 = vunpack.c.l.b16 %v808
        %v1002 = vunpack.c.l.b16 %v809
        %v1003 = vunpack.c.l.b16 %v810
        %v1004 = vunpack.c.l.b16 %v811
        %v1005 = vunpack.c.l.b16 %v812
        %v1006 = vunpack.c.l.b16 %v813
        %v1007 = vunpack.c.l.b16 %v814
        %v1008 = vunpack.c.l.b16 %v815
        %v1009 = vunpack.c.l.b16 %v816
        %v1010 = vunpack.c.l.b16 %v817
        %v1011 = vunpack.c.l.b16 %v818
        %v1012 = vunpack.c.l.b16 %v819
        %v1013 = vunpack.c.l.b16 %v820
        %v1014 = vunpack.c.l.b16 %v821
        %v1015 = vunpack.c.l.b16 %v822
        %v1016 = vunpack.c.l.b16 %v823
        %v1017 = vunpack.c.l.b16 %v824
        %v1018 = vunpack.c.l.b16 %v825
        %v1019 = vunpack.c.l.b16 %v826
        %v1020 = vunpack.c.l.b16 %v827
        %v1021 = vunpack.c.l.b16 %v828
        %v1022 = vunpack.c.l.b16 %v829
        %v1023 = vunpack.c.l.b16 %v830
        %v1024 = vunpack.c.l.b16 %v831
        %v1025 = vunpack.c.l.b16 %v832
        %v1026 = vunpack.c.l.b16 %v833
        %v1027 = vunpack.c.l.b16 %v834
        %v1028 = vunpack.c.l.b16 %v835
        %v1029 = vunpack.c.l.b16 %v836
        %v1030 = vunpack.c.l.b16 %v837
        %v1031 = vunpack.c.l.b16 %v838
        %v1032 = vunpack.c.l.b16 %v839
        %v1033 = vunpack.c.l.b16 %v840
        %v1034 = vunpack.c.l.b16 %v841
        %v1035 = vunpack.c.l.b16 %v842
        %v1036 = vunpack.c.l.b16 %v843
        %v1037 = vunpack.c.l.b16 %v844
        %v1038 = vunpack.c.l.b16 %v845
        %v1039 = vunpack.c.l.b16 %v846
        %v1040 = vunpack.c.l.b16 %v847
        %v1041 = vunpack.c.l.b16 %v848
        %v1042 = vunpack.c.l.b16 %v849
        %v1043 = vunpack.c.l.b16 %v850
        %v1044 = vunpack.c.l.b16 %v851
        %v1045 = vunpack.c.l.b16 %v852
        %v1046 = vunpack.c.l.b16 %v853
        %v1047 = vunpack.c.l.b16 %v854
        %v1048 = vunpack.c.l.b16 %v855
        %v1049 = vunpack.c.l.b16 %v856
        %v1050 = vunpack.c.l.b16 %v857
        %v1051 = vunpack.c.l.b16 %v858
        %v1052 = vunpack.c.l.b16 %v859
        %v1053 = vunpack.c.l.b16 %v860
        %v1054 = vunpack.c.l.b16 %v861
        %v1055 = vunpack.c.l.b16 %v862
        %v1056 = vunpack.c.l.b16 %v863
        %v1057 = vunpack.c.l.b16 %v864
        %v1058 = vunpack.c.l.b16 %v865
        %v1059 = vunpack.c.l.b16 %v866
        %v1060 = vunpack.c.l.b16 %v867
        %v1061 = vunpack.c.l.b16 %v868
        %v1062 = vunpack.c.l.b16 %v869
        %v1063 = vunpack.c.l.b16 %v870
        %v1064 = vunpack.c.l.b16 %v871
        %v1065 = vunpack.c.l.b16 %v872
        %v1066 = vunpack.c.l.b16 %v873
        %v1067 = vunpack.c.l.b16 %v874
        %v1068 = vunpack.c.l.b16 %v875
        %v1069 = vunpack.c.l.b16 %v876
        %v1070 = vunpack.c.l.b16 %v877
        %v1071 = vunpack.c.l.b16 %v878
        %v1072 = vunpack.c.l.b16 %v879
        %v1073 = vunpack.c.l.b16 %v880
        %v1074 = vunpack.c.l.b16 %v881
        %v1075 = vunpack.c.l.b16 %v882
        %v1076 = vunpack.c.l.b16 %v883
        %v1077 = vunpack.c.l.b16 %v884
        %v1078 = vunpack.c.l.b16 %v885
        %v1079 = vunpack.c.l.b16 %v886
        %v1080 = vunpack.c.l.b16 %v887
        %v1081 = vunpack.c.l.b16 %v888
        %v1082 = vunpack.c.l.b16 %v889
        %v1083 = vunpack.c.l.b16 %v890
        %v1084 = vunpack.c.l.b16 %v891
        %v1085 = vunpack.c.l.b16 %v892
        %v1086 = vunpack.c.l.b16 %v893
        %v1087 = vunpack.c.l.b16 %v894
        %v1088 = vunpack.c.l.b16 %v895
        %v1089 = vunpack.c.l.b16 %v896
        %v1090 = vunpack.c.l.b16 %v897
        %v1091 = vunpack.c.l.b16 %v898
        %v1092 = vunpack.c.l.b16 %v899
        %v1093 = vunpack.c.l.b16 %v900
        %v1094 = vunpack.c.l.b16 %v901
        %v1095 = vunpack.c.l.b16 %v902
        %v1096 = vpack.c.b16 %v1001, %v1000
        %v1097 = vpack.c.b16 %v1003, %v1002
        %v1098 = vpack.c.b16 %v1005, %v1004
        %v1099 = vpack.c.b16 %v1007, %v1006
        %v1100 = vpack.c.b16 %v1009, %v1008
        %v1101 = vpack.c.b16 %v1011, %v1010
        %v1102 = vpack.c.b16 %v1013, %v1012
        %v1103 = vpack.c.b16 %v1015, %v1014
        %v1104 = vpack.c.b16 %v1017, %v1016
        %v1105 = vpack.c.b16 %v1019, %v1018
        %v1106 = vpack.c.b16 %v1021, %v1020
        %v1107 = vpack.c.b16 %v1023, %v1022
        %v1108 = vpack.c.b16 %v1025, %v1024
        %v1109 = vpack.c.b16 %v1027, %v1026
        %v1110 = vpack.c.b16 %v1029, %v1028
        %v1111 = vpack.c.b16 %v1031, %v1030
        %v1112 = vpack.c.b16 %v1033, %v1032
        %v1113 = vpack.c.b16 %v1035, %v1034
        %v1114 = vpack.c.b16 %v1037, %v1036
        %v1115 = vpack.c.b16 %v1039, %v1038
        %v1116 = vpack.c.b16 %v1041, %v1040
        %v1117 = vpack.c.b16 %v1043, %v1042
        %v1118 = vpack.c.b16 %v1045, %v1044
        %v1119 = vpack.c.b16 %v1047, %v1046
        %v1120 = vpack.c.b16 %v1049, %v1048
        %v1121 = vpack.c.b16 %v1051, %v1050
        %v1122 = vpack.c.b16 %v1053, %v1052
        %v1123 = vpack.c.b16 %v1055, %v1054
        %v1124 = vpack.c.b16 %v1057, %v1056
        %v1125 = vpack.c.b16 %v1059, %v1058
        %v1126 = vpack.c.b16 %v1061, %v1060
        %v1127 = vpack.c.b16 %v1063, %v1062
        %v1128 = vpack.c.b16 %v1065, %v1064
        %v1129 = vpack.c.b16 %v1067, %v1066
        %v1130 = vpack.c.b16 %v1069, %v1068
        %v1131 = vpack.c.b16 %v1071, %v1070
        %v1132 = vpack.c.b16 %v1073, %v1072
        %v1133 = vpack.c.b16 %v1075, %v1074
        %v1134 = vpack.c.b16 %v1077, %v1076
        %v1135 = vpack.c.b16 %v1079, %v1078
        %v1136 = vpack.c.b16 %v1081, %v1080
        %v1137 = vpack.c.b16 %v1083, %v1082
        %v1138 = vpack.c.b16 %v1085, %v1084
        %v1139 = vpack.c.b16 %v1087, %v1086
        %v1140 = vpack.c.b16 %v1089, %v1088
        %v1141 = vpack.c.b16 %v1091, %v1090
        %v1142 = vpack.c.b16 %v1093, %v1092
        %v1143 = vpack.c.b16 %v1095, %v1094
        %1192 = vmatprep.subr.bf16.mxu0 0
        %1193 = vmatpush1.bf16.msra.mxu0 %v1103
        %1194 = vmatprep.subr.bf16.mxu0 0
        %1195 = vmatpush1.bf16.msra.mxu0 %v1102
        %1196 = vmatprep.subr.bf16.mxu0 0
        %1197 = vmatpush1.bf16.msra.mxu0 %v1101
        %1198 = vmatprep.subr.bf16.mxu0 0
        %1199 = vmatpush1.bf16.msra.mxu0 %v1100
        %1200 = vmatprep.subr.bf16.mxu0 0
        %1201 = vmatpush1.bf16.msra.mxu0 %v1099
        %1202 = vmatprep.subr.bf16.mxu0 0
        %1203 = vmatpush1.bf16.msra.mxu0 %v1098
        %1204 = vmatprep.subr.bf16.mxu0 0
        %1205 = vmatpush1.bf16.msra.mxu0 %v1097
        %1206 = vmatprep.subr.bf16.mxu0 0
        %1207 = vmatpush1.bf16.msra.mxu0 %v1096
        %1208 = vmatprep.subr.bf16.mxu0 0
        %1209 = vmatpush2.bf16.msra.mxu0 %v1111
        %1210 = vmatprep.subr.bf16.mxu0 0
        %1211 = vmatpush2.bf16.msra.mxu0 %v1110
        %1212 = vmatprep.subr.bf16.mxu0 0
        %1213 = vmatpush2.bf16.msra.mxu0 %v1109
        %1214 = vmatprep.subr.bf16.mxu0 0
        %1215 = vmatpush2.bf16.msra.mxu0 %v1108
        %1216 = vmatprep.subr.bf16.mxu0 0
        %1217 = vmatpush2.bf16.msra.mxu0 %v1107
        %1218 = vmatprep.subr.bf16.mxu0 0
        %1219 = vmatpush2.bf16.msra.mxu0 %v1106
        %1220 = vmatprep.subr.bf16.mxu0 0
        %1221 = vmatpush2.bf16.msra.mxu0 %v1105
        %1222 = vmatprep.subr.bf16.mxu0 0
        %1223 = vmatpush2.bf16.msra.mxu0 %v1104
        %1224 = vmatprep.mubr.bf16.mxu0 %v802
        %1225 = vmatmul.mubr.bf16.gmra.mxu0 %v801
        %v1226 = vpop.f32.mrf.mxu0
        %v1227 = vadd.f32 %v903, %v1226
        %v1228 = vpop.f32.mrf.mxu0
        %v1229 = vpop.f32.mrf.mxu0
        %v1230 = vpop.f32.mrf.mxu0
        %1231 = vdwg.mxu0
        %1232 = vmatprep.subr.bf16.mxu0 0
        %1233 = vmatpush1.bf16.msra.mxu0 %v1119
        %1234 = vmatprep.subr.bf16.mxu0 0
        %1235 = vmatpush1.bf16.msra.mxu0 %v1118
        %1236 = vmatprep.subr.bf16.mxu0 0
        %1237 = vmatpush1.bf16.msra.mxu0 %v1117
        %1238 = vmatprep.subr.bf16.mxu0 0
        %1239 = vmatpush1.bf16.msra.mxu0 %v1116
        %1240 = vmatprep.subr.bf16.mxu0 0
        %1241 = vmatpush1.bf16.msra.mxu0 %v1115
        %1242 = vmatprep.subr.bf16.mxu0 0
        %1243 = vmatpush1.bf16.msra.mxu0 %v1114
        %1244 = vmatprep.subr.bf16.mxu0 0
        %1245 = vmatpush1.bf16.msra.mxu0 %v1113
        %1246 = vmatprep.subr.bf16.mxu0 0
        %1247 = vmatpush1.bf16.msra.mxu0 %v1112
        %1248 = vmatprep.subr.bf16.mxu0 0
        %1249 = vmatpush2.bf16.msra.mxu0 %v1127
        %1250 = vmatprep.subr.bf16.mxu0 0
        %1251 = vmatpush2.bf16.msra.mxu0 %v1126
        %1252 = vmatprep.subr.bf16.mxu0 0
        %1253 = vmatpush2.bf16.msra.mxu0 %v1125
        %1254 = vmatprep.subr.bf16.mxu0 0
        %1255 = vmatpush2.bf16.msra.mxu0 %v1124
        %1256 = vmatprep.subr.bf16.mxu0 0
        %1257 = vmatpush2.bf16.msra.mxu0 %v1123
        %1258 = vmatprep.subr.bf16.mxu0 0
        %1259 = vmatpush2.bf16.msra.mxu0 %v1122
        %1260 = vmatprep.subr.bf16.mxu0 0
        %1261 = vmatpush2.bf16.msra.mxu0 %v1121
        %1262 = vmatprep.subr.bf16.mxu0 0
        %1263 = vmatpush2.bf16.msra.mxu0 %v1120
        %1264 = vmatprep.mubr.bf16.mxu0 %v804
        %1265 = vmatmul.mubr.bf16.gmra.mxu0 %v803
        %v1266 = vpop.f32.mrf.mxu0
        %v1267 = vadd.f32 %v1227, %v1266
        %v1268 = vpop.f32.mrf.mxu0
        %v1269 = vpop.f32.mrf.mxu0
        %v1270 = vpop.f32.mrf.mxu0
        %1271 = vdwg.mxu0
        %1272 = vmatprep.subr.bf16.mxu0 0
        %1273 = vmatpush1.bf16.msra.mxu0 %v1135
        %1274 = vmatprep.subr.bf16.mxu0 0
        %1275 = vmatpush1.bf16.msra.mxu0 %v1134
        %1276 = vmatprep.subr.bf16.mxu0 0
        %1277 = vmatpush1.bf16.msra.mxu0 %v1133
        %1278 = vmatprep.subr.bf16.mxu0 0
        %1279 = vmatpush1.bf16.msra.mxu0 %v1132
        %1280 = vmatprep.subr.bf16.mxu0 0
        %1281 = vmatpush1.bf16.msra.mxu0 %v1131
        %1282 = vmatprep.subr.bf16.mxu0 0
        %1283 = vmatpush1.bf16.msra.mxu0 %v1130
        %1284 = vmatprep.subr.bf16.mxu0 0
        %1285 = vmatpush1.bf16.msra.mxu0 %v1129
        %1286 = vmatprep.subr.bf16.mxu0 0
        %1287 = vmatpush1.bf16.msra.mxu0 %v1128
        %1288 = vmatprep.subr.bf16.mxu0 0
        %1289 = vmatpush2.bf16.msra.mxu0 %v1143
        %1290 = vmatprep.subr.bf16.mxu0 0
        %1291 = vmatpush2.bf16.msra.mxu0 %v1142
        %1292 = vmatprep.subr.bf16.mxu0 0
        %1293 = vmatpush2.bf16.msra.mxu0 %v1141
        %1294 = vmatprep.subr.bf16.mxu0 0
        %1295 = vmatpush2.bf16.msra.mxu0 %v1140
        %1296 = vmatprep.subr.bf16.mxu0 0
        %1297 = vmatpush2.bf16.msra.mxu0 %v1139
        %1298 = vmatprep.subr.bf16.mxu0 0
        %1299 = vmatpush2.bf16.msra.mxu0 %v1138
        %1300 = vmatprep.subr.bf16.mxu0 0
        %1301 = vmatpush2.bf16.msra.mxu0 %v1137
        %1302 = vmatprep.subr.bf16.mxu0 0
        %1303 = vmatpush2.bf16.msra.mxu0 %v1136
        %1304 = vmatprep.mubr.bf16.mxu0 %v806
        %1305 = vmatmul.mubr.bf16.gmra.mxu0 %v805
        %v1306 = vpop.f32.mrf.mxu0
        %v1307 = vadd.f32 %v1267, %v1306
        %v1308 = vpop.f32.mrf.mxu0
        %v1309 = vpop.f32.mrf.mxu0
        %v1310 = vpop.f32.mrf.mxu0
        %1311 = vdwg.mxu0
        %v1312 = vld [vmem:[%s1] sm:$0x1]
        %v1313 = vld [vmem:[%s4] sm:$0x1]
        %v1314 = vld [vmem:[%s5] sm:$0x1]
        %vm1315 = vcmask 1040384
        %v1316 = vsel %vm1315, %v1312, 0.0
        %1317 = vadd.xlane.f32.xlu0 %v1316
        %v1318 = vpop.xlane.xlu0 %1317
        %v1319 = vmul.f32 %v1318, 0.0078125
        %v1320 = vmul.f32 %v1312, %v1312
        %v1321 = vsel %vm1315, %v1320, 0.0
        %1322 = vadd.xlane.f32.xlu0 %v1321
        %v1323 = vpop.xlane.xlu0 %1322
        %v1324 = vmul.f32 %v1323, 0.0078125
        %v1325 = vmul.f32 %v1319, %v1319
        %v1326 = vsub.f32 %v1324, %v1325
        %v1327 = vsub.f32 %v1312, %v1319
        %v1328 = vadd.f32 %v1326, 1e-05
        %v1329 = vrsqrt.pop %v1328
        %v1330 = vmul.f32 %v1327, %v1329
        %v1331 = vmul.f32 %v1330, %v1313
        %v1332 = vadd.f32 %v1331, %v1314
        %1333 = vst [vmem:[#allocation2] sm:$0x1] %v1332
        %v1334 = vld [vmem:[%s4] sm:$0x1]
        %v1335 = vld [vmem:[%s5] sm:$0x1]
        %vm1336 = vcmask 1043456
        %v1337 = vsel %vm1336, %v1307, 0.0
        %1338 = vadd.xlane.f32.xlu0 %v1337
        %v1339 = vpop.xlane.xlu0 %1338
        %v1340 = vmul.f32 %v1339, 0.0078125
        %v1341 = vmul.f32 %v1307, %v1307
        %v1342 = vsel %vm1336, %v1341, 0.0
        %1343 = vadd.xlane.f32.xlu0 %v1342
        %v1344 = vpop.xlane.xlu0 %1343
        %v1345 = vmul.f32 %v1344, 0.0078125
        %v1346 = vmul.f32 %v1340, %v1340
        %v1347 = vsub.f32 %v1345, %v1346
        %v1348 = vsub.f32 %v1307, %v1340
        %v1349 = vadd.f32 %v1347, 1e-05
        %v1350 = vrsqrt.pop %v1349
        %v1351 = vmul.f32 %v1348, %v1350
        %v1353 = vlaneseq
        %v1354 = vshrl.u32 %v1353, 7
        %v1355 = vsub.s32 0, %v1354
        %v1356 = vrot.slane %v1334, %v1355
        %v1358 = vmul.f32 %v1351, %v1356
        %v1360 = vlaneseq
        %v1361 = vshrl.u32 %v1360, 7
        %v1362 = vsub.s32 0, %v1361
        %v1363 = vrot.slane %v1335, %v1362
        %v1365 = vadd.f32 %v1358, %v1363
        %1366 = vst [vmem:[#allocation2 + $0x1] sm:$0xf] %v1365
      $region96: #{clip_vision_tower_forward.1} parent=91 // pred_fallthru
        _
      %v1367 = vld [vmem:[#allocation2] sm:$0x1f]
      %v1368 = vld [vmem:[%s736] sm:$0x1]
      %v1369 = vld [vmem:[%s739] sm:$0x1]
      %vm1370 = vcmask 1044480
      %v1371 = vsel %vm1370, %v1367, 0.0
      %1372 = vadd.xlane.f32.xlu0 %v1371
      %v1373 = vpop.xlane.xlu0 %1372
      %v1374 = vmul.f32 %v1373, 0.0078125
      %v1375 = vmul.f32 %v1367, %v1367
      %v1376 = vsel %vm1370, %v1375, 0.0
      %1377 = vadd.xlane.f32.xlu0 %v1376
      %v1378 = vpop.xlane.xlu0 %1377
      %v1379 = vmul.f32 %v1378, 0.0078125
      %v1380 = vmul.f32 %v1374, %v1374
      %v1381 = vsub.f32 %v1379, %v1380
      %v1382 = vsub.f32 %v1367, %v1374
      %v1383 = vadd.f32 %v1381, 1e-05
      %v1384 = vrsqrt.pop %v1383
      %v1385 = vmul.f32 %v1382, %v1384
      %v1387 = vlaneseq
      %v1388 = vshrl.u32 %v1387, 7
      %v1389 = vsub.s32 0, %v1388
      %v1390 = vrot.slane %v1368, %v1389
      %v1392 = vmul.f32 %v1385, %v1390
      %v1394 = vlaneseq
      %v1395 = vshrl.u32 %v1394, 7
      %v1396 = vsub.s32 0, %v1395
      %v1397 = vrot.slane %v1369, %v1396
      %v1399 = vadd.f32 %v1392, %v1397
      %v1400 = vpack.c.bf16 %v1399, %v1399
      %v1401 = vld [vmem:[%s744] sm:$0xff]
      %v1402 = vld [vmem:[%s744 + $0x8] sm:$0xf]
      %v1403 = vld [vmem:[%s744 + $0xc] sm:$0xff]
      %v1404 = vld [vmem:[%s744 + $0x14] sm:$0xf]
      %v1405 = vld [vmem:[%s744 + $0x18] sm:$0xff]
      %v1406 = vld [vmem:[%s744 + $0x20] sm:$0xf]
      %v1407 = vld [vmem:[%s744 + $0x24] sm:$0xff]
      %v1408 = vld [vmem:[%s744 + $0x2c] sm:$0xf]
      %v1409 = vld [vmem:[%s744 + $0x30] sm:$0xff]
      %v1410 = vld [vmem:[%s744 + $0x38] sm:$0xf]
      %v1411 = vld [vmem:[%s744 + $0x3c] sm:$0xff]
      %v1412 = vld [vmem:[%s744 + $0x44] sm:$0xf]
      %v1413 = vld [vmem:[%s744 + $0x48] sm:$0xff]
      %v1414 = vld [vmem:[%s744 + $0x50] sm:$0xf]
      %v1415 = vld [vmem:[%s744 + $0x54] sm:$0xff]
      %v1416 = vld [vmem:[%s744 + $0x5c] sm:$0xf]
      %v1417 = vld [vmem:[%s744 + $0x60] sm:$0xff]
      %v1418 = vld [vmem:[%s744 + $0x68] sm:$0xf]
      %v1419 = vld [vmem:[%s744 + $0x6c] sm:$0xff]
      %v1420 = vld [vmem:[%s744 + $0x74] sm:$0xf]
      %v1421 = vld [vmem:[%s744 + $0x78] sm:$0xff]
      %v1422 = vld [vmem:[%s744 + $0x80] sm:$0xf]
      %v1423 = vld [vmem:[%s744 + $0x84] sm:$0xff]
      %v1424 = vld [vmem:[%s744 + $0x8c] sm:$0xf]
      %v1425 = vld [vmem:[%s744 + $0x90] sm:$0xff]
      %v1426 = vld [vmem:[%s744 + $0x98] sm:$0xf]
      %v1427 = vld [vmem:[%s744 + $0x9c] sm:$0xff]
      %v1428 = vld [vmem:[%s744 + $0xa4] sm:$0xf]
      %v1429 = vld [vmem:[%s744 + $0xa8] sm:$0xff]
      %v1430 = vld [vmem:[%s744 + $0xb0] sm:$0xf]
      %v1431 = vld [vmem:[%s744 + $0xb4] sm:$0xff]
      %v1432 = vld [vmem:[%s744 + $0xbc] sm:$0xf]
      %v1433 = vld [vmem:[%s748] sm:$0x7]
      %v1435 = vlaneseq
      %v1436 = vshrl.u32 %v1435, 7
      %v1437 = vsub.s32 0, %v1436
      %v1438 = vrot.slane %v1433, %v1437
      %v1439 = vlaneseq
      %v1440 = vshrl.u32 %v1439, 7
      %v1441 = vsub.s32 1, %v1440
      %v1442 = vrot.slane %v1433, %v1441
      %v1443 = vlaneseq
      %v1444 = vshrl.u32 %v1443, 7
      %v1445 = vsub.s32 2, %v1444
      %v1446 = vrot.slane %v1433, %v1445
      %v1482 = vunpack.c.l.b16 %v1401
      %v1483 = vunpack.c.h.b16 %v1401
      %v1484 = vunpack.c.l.b16 %v1402
      %v1485 = vunpack.c.l.b16 %v1403
      %v1486 = vunpack.c.h.b16 %v1403
      %v1487 = vunpack.c.l.b16 %v1404
      %v1488 = vunpack.c.l.b16 %v1405
      %v1489 = vunpack.c.h.b16 %v1405
      %v1490 = vunpack.c.l.b16 %v1406
      %v1491 = vunpack.c.l.b16 %v1407
      %v1492 = vunpack.c.h.b16 %v1407
      %v1493 = vunpack.c.l.b16 %v1408
      %v1494 = vunpack.c.l.b16 %v1409
      %v1495 = vunpack.c.h.b16 %v1409
      %v1496 = vunpack.c.l.b16 %v1410
      %v1497 = vunpack.c.l.b16 %v1411
      %v1498 = vunpack.c.h.b16 %v1411
      %v1499 = vunpack.c.l.b16 %v1412
      %v1500 = vunpack.c.l.b16 %v1413
      %v1501 = vunpack.c.h.b16 %v1413
      %v1502 = vunpack.c.l.b16 %v1414
      %v1503 = vunpack.c.l.b16 %v1415
      %v1504 = vunpack.c.h.b16 %v1415
      %v1505 = vunpack.c.l.b16 %v1416
      %v1506 = vunpack.c.l.b16 %v1417
      %v1507 = vunpack.c.h.b16 %v1417
      %v1508 = vunpack.c.l.b16 %v1418
      %v1509 = vunpack.c.l.b16 %v1419
      %v1510 = vunpack.c.h.b16 %v1419
      %v1511 = vunpack.c.l.b16 %v1420
      %v1512 = vunpack.c.l.b16 %v1421
      %v1513 = vunpack.c.h.b16 %v1421
      %v1514 = vunpack.c.l.b16 %v1422
      %v1515 = vunpack.c.l.b16 %v1423
      %v1516 = vunpack.c.h.b16 %v1423
      %v1517 = vunpack.c.l.b16 %v1424
      %v1518 = vunpack.c.l.b16 %v1425
      %v1519 = vunpack.c.h.b16 %v1425
      %v1520 = vunpack.c.l.b16 %v1426
      %v1521 = vunpack.c.l.b16 %v1427
      %v1522 = vunpack.c.h.b16 %v1427
      %v1523 = vunpack.c.l.b16 %v1428
      %v1524 = vunpack.c.l.b16 %v1429
      %v1525 = vunpack.c.h.b16 %v1429
      %v1526 = vunpack.c.l.b16 %v1430
      %v1527 = vunpack.c.l.b16 %v1431
      %v1528 = vunpack.c.h.b16 %v1431
      %v1529 = vunpack.c.l.b16 %v1432
      %v1530 = vpack.c.b16 %v1485, %v1482
      %v1531 = vpack.c.b16 %v1486, %v1483
      %v1532 = vpack.c.b16 %v1487, %v1484
      %v1533 = vpack.c.b16 %v1491, %v1488
      %v1534 = vpack.c.b16 %v1492, %v1489
      %v1535 = vpack.c.b16 %v1493, %v1490
      %v1536 = vpack.c.b16 %v1497, %v1494
      %v1537 = vpack.c.b16 %v1498, %v1495
      %v1538 = vpack.c.b16 %v1499, %v1496
      %v1539 = vpack.c.b16 %v1503, %v1500
      %v1540 = vpack.c.b16 %v1504, %v1501
      %v1541 = vpack.c.b16 %v1505, %v1502
      %v1542 = vpack.c.b16 %v1509, %v1506
      %v1543 = vpack.c.b16 %v1510, %v1507
      %v1544 = vpack.c.b16 %v1511, %v1508
      %v1545 = vpack.c.b16 %v1515, %v1512
      %v1546 = vpack.c.b16 %v1516, %v1513
      %v1547 = vpack.c.b16 %v1517, %v1514
      %v1548 = vpack.c.b16 %v1521, %v1518
      %v1549 = vpack.c.b16 %v1522, %v1519
      %v1550 = vpack.c.b16 %v1523, %v1520
      %v1551 = vpack.c.b16 %v1527, %v1524
      %v1552 = vpack.c.b16 %v1528, %v1525
      %v1553 = vpack.c.b16 %v1529, %v1526
      %1578 = vmatprep.subr.bf16.mxu0 %v1552
      %1579 = vmatpush1.bf16.msra.mxu0 %v1551
      %1580 = vmatprep.subr.bf16.mxu0 %v1549
      %1581 = vmatpush1.bf16.msra.mxu0 %v1548
      %1582 = vmatprep.subr.bf16.mxu0 %v1546
      %1583 = vmatpush1.bf16.msra.mxu0 %v1545
      %1584 = vmatprep.subr.bf16.mxu0 %v1543
      %1585 = vmatpush1.bf16.msra.mxu0 %v1542
      %1586 = vmatprep.subr.bf16.mxu0 %v1540
      %1587 = vmatpush1.bf16.msra.mxu0 %v1539
      %1588 = vmatprep.subr.bf16.mxu0 %v1537
      %1589 = vmatpush1.bf16.msra.mxu0 %v1536
      %1590 = vmatprep.subr.bf16.mxu0 %v1534
      %1591 = vmatpush1.bf16.msra.mxu0 %v1533
      %1592 = vmatprep.subr.bf16.mxu0 %v1531
      %1593 = vmatpush1.bf16.msra.mxu0 %v1530
      %1594 = vmatprep.subr.bf16.mxu0 0
      %1595 = vmatpush2.bf16.msra.mxu0 0
      %1596 = vmatprep.subr.bf16.mxu0 0
      %1597 = vmatpush2.bf16.msra.mxu0 0
      %1598 = vmatprep.subr.bf16.mxu0 0
      %1599 = vmatpush2.bf16.msra.mxu0 0
      %1600 = vmatprep.subr.bf16.mxu0 0
      %1601 = vmatpush2.bf16.msra.mxu0 0
      %1602 = vmatprep.subr.bf16.mxu0 0
      %1603 = vmatpush2.bf16.msra.mxu0 0
      %1604 = vmatprep.subr.bf16.mxu0 0
      %1605 = vmatpush2.bf16.msra.mxu0 0
      %1606 = vmatprep.subr.bf16.mxu0 0
      %1607 = vmatpush2.bf16.msra.mxu0 0
      %1608 = vmatprep.subr.bf16.mxu0 0
      %1609 = vmatpush2.bf16.msra.mxu0 0
      %1610 = vmatprep.mubr.bf16.mxu0 0
      %1611 = vmatmul.mubr.bf16.gmra.mxu0 %v1400
      %v1612 = vpop.f32.mrf.mxu0
      %v1613 = vadd.f32 %v1438, %v1612
      %v1614 = vpop.f32.mrf.mxu0
      %v1615 = vadd.f32 %v1442, %v1614
      %v1616 = vpop.f32.mrf.mxu0
      %v1617 = vpop.f32.mrf.mxu0
      %1618 = vdwg.mxu0
      %1619 = vmatprep.subr.bf16.mxu0 0
      %1620 = vmatpush1.bf16.msra.mxu0 %v1553
      %1621 = vmatprep.subr.bf16.mxu0 0
      %1622 = vmatpush1.bf16.msra.mxu0 %v1550
      %1623 = vmatprep.subr.bf16.mxu0 0
      %1624 = vmatpush1.bf16.msra.mxu0 %v1547
      %1625 = vmatprep.subr.bf16.mxu0 0
      %1626 = vmatpush1.bf16.msra.mxu0 %v1544
      %1627 = vmatprep.subr.bf16.mxu0 0
      %1628 = vmatpush1.bf16.msra.mxu0 %v1541
      %1629 = vmatprep.subr.bf16.mxu0 0
      %1630 = vmatpush1.bf16.msra.mxu0 %v1538
      %1631 = vmatprep.subr.bf16.mxu0 0
      %1632 = vmatpush1.bf16.msra.mxu0 %v1535
      %1633 = vmatprep.subr.bf16.mxu0 0
      %1634 = vmatpush1.bf16.msra.mxu0 %v1532
      %1635 = vmatprep.subr.bf16.mxu0 0
      %1636 = vmatpush2.bf16.msra.mxu0 0
      %1637 = vmatprep.subr.bf16.mxu0 0
      %1638 = vmatpush2.bf16.msra.mxu0 0
      %1639 = vmatprep.subr.bf16.mxu0 0
      %1640 = vmatpush2.bf16.msra.mxu0 0
      %1641 = vmatprep.subr.bf16.mxu0 0
      %1642 = vmatpush2.bf16.msra.mxu0 0
      %1643 = vmatprep.subr.bf16.mxu0 0
      %1644 = vmatpush2.bf16.msra.mxu0 0
      %1645 = vmatprep.subr.bf16.mxu0 0
      %1646 = vmatpush2.bf16.msra.mxu0 0
      %1647 = vmatprep.subr.bf16.mxu0 0
      %1648 = vmatpush2.bf16.msra.mxu0 0
      %1649 = vmatprep.subr.bf16.mxu0 0
      %1650 = vmatpush2.bf16.msra.mxu0 0
      %1651 = vmatprep.mubr.bf16.mxu0 0
      %1652 = vmatmul.mubr.bf16.gmra.mxu0 %v1400
      %v1653 = vpop.f32.mrf.mxu0
      %v1654 = vadd.f32 %v1446, %v1653
      %v1655 = vpop.f32.mrf.mxu0
      %v1656 = vpop.f32.mrf.mxu0
      %v1657 = vpop.f32.mrf.mxu0
      %1658 = vdwg.mxu0
      %v1659 = vpack.c.bf16 %v1613, %v1613
      %v1660 = vpack.c.bf16 %v1615, %v1615
      %v1661 = vpack.c.bf16 %v1654, %v1654
      %vm1662 = vcmask 261120
      %v1664 = vsel %vm1662, %v1659, 0
      %v1667 = vsel %vm1662, %v1660, 0
      %1669 = vmatprep.subr.bf16.mxu0 0
      %1670 = vmatpush1.bf16.xpose.msra.mxu0 0
      %1671 = vmatprep.subr.bf16.mxu0 0
      %1672 = vmatpush1.bf16.xpose.msra.mxu0 0
      %1673 = vmatprep.subr.bf16.mxu0 0
      %1674 = vmatpush1.bf16.xpose.msra.mxu0 0
      %1675 = vmatprep.subr.bf16.mxu0 0
      %1676 = vmatpush1.bf16.xpose.msra.mxu0 0
      %1677 = vmatprep.subr.bf16.mxu0 0
      %1678 = vmatpush1.bf16.xpose.msra.mxu0 0
      %1679 = vmatprep.subr.bf16.mxu0 0
      %1680 = vmatpush1.bf16.xpose.msra.mxu0 0
      %1681 = vmatprep.subr.bf16.mxu0 0
      %1682 = vmatpush1.bf16.xpose.msra.mxu0 0
      %1683 = vmatprep.subr.bf16.mxu0 0
      %1684 = vmatpush1.bf16.xpose.msra.mxu0 %v1667
      %1685 = vmatprep.subr.bf16.mxu0 0
      %1686 = vmatpush2.bf16.xpose.msra.mxu0 0
      %1687 = vmatprep.subr.bf16.mxu0 0
      %1688 = vmatpush2.bf16.xpose.msra.mxu0 0
      %1689 = vmatprep.subr.bf16.mxu0 0
      %1690 = vmatpush2.bf16.xpose.msra.mxu0 0
      %1691 = vmatprep.subr.bf16.mxu0 0
      %1692 = vmatpush2.bf16.xpose.msra.mxu0 0
      %1693 = vmatprep.subr.bf16.mxu0 0
      %1694 = vmatpush2.bf16.xpose.msra.mxu0 0
      %1695 = vmatprep.subr.bf16.mxu0 0
      %1696 = vmatpush2.bf16.xpose.msra.mxu0 0
      %1697 = vmatprep.subr.bf16.mxu0 0
      %1698 = vmatpush2.bf16.xpose.msra.mxu0 0
      %1699 = vmatprep.subr.bf16.mxu0 0
      %1700 = vmatpush2.bf16.xpose.msra.mxu0 0
      %1701 = vmatprep.mubr.bf16.mxu0 0
      %1702 = vmatmul.mubr.bf16.gmra.mxu0 %v1664
      %v1703 = vpop.f32.mrf.mxu0
      %v1704 = vadd.f32 0.0, %v1703
      %v1705 = vpop.f32.mrf.mxu0
      %v1706 = vpop.f32.mrf.mxu0
      %v1707 = vpop.f32.mrf.mxu0
      %1708 = vdwg.mxu0
      %vm1709 = vcmask 36864
      %v1710 = vsel %vm1709, %v1704, -inf
      %1711 = vmax.xlane.f32.xlu0 %v1710
      %v1712 = vpop.xlane.xlu0 %1711
      %v1713 = vsub.f32 %v1704, %v1712
      %v1714 = vmul.f32 %v1713, 1.442695
      %v1715 = vpow.pop %v1714
      %v1716 = vsel %vm1709, %v1715, 0.0
      %1717 = vadd.xlane.f32.xlu0 %v1716
      %v1718 = vpop.xlane.xlu0 %1717
      %v1719 = vrcp.pop %v1718
      %v1720 = vmul.f32 %v1715, %v1719
      %v1721 = vpack.c.bf16 %v1720, %v1720
      %vm1722 = vcmask 39936
      %v1724 = vsel %vm1722, %v1721, 0
      %vm1726 = vcmask 1041408
      %vm1727 = vcmask 1042432
      %v1728 = vsel %vm1726, 4294967295, 65535
      %v1729 = vsel %vm1727, %v1728, 0
      %v1731 = vand.u32 %v1661, %v1729
      %1733 = vmatprep.subr.bf16.mxu0 0
      %1734 = vmatpush1.bf16.msra.mxu0 0
      %1735 = vmatprep.subr.bf16.mxu0 0
      %1736 = vmatpush1.bf16.msra.mxu0 0
      %1737 = vmatprep.subr.bf16.mxu0 0
      %1738 = vmatpush1.bf16.msra.mxu0 0
      %1739 = vmatprep.subr.bf16.mxu0 0
      %1740 = vmatpush1.bf16.msra.mxu0 0
      %1741 = vmatprep.subr.bf16.mxu0 0
      %1742 = vmatpush1.bf16.msra.mxu0 0
      %1743 = vmatprep.subr.bf16.mxu0 0
      %1744 = vmatpush1.bf16.msra.mxu0 0
      %1745 = vmatprep.subr.bf16.mxu0 0
      %1746 = vmatpush1.bf16.msra.mxu0 0
      %1747 = vmatprep.subr.bf16.mxu0 0
      %1748 = vmatpush1.bf16.msra.mxu0 %v1731
      %1749 = vmatprep.subr.bf16.mxu0 0
      %1750 = vmatpush2.bf16.msra.mxu0 0
      %1751 = vmatprep.subr.bf16.mxu0 0
      %1752 = vmatpush2.bf16.msra.mxu0 0
      %1753 = vmatprep.subr.bf16.mxu0 0
      %1754 = vmatpush2.bf16.msra.mxu0 0
      %1755 = vmatprep.subr.bf16.mxu0 0
      %1756 = vmatpush2.bf16.msra.mxu0 0
      %1757 = vmatprep.subr.bf16.mxu0 0
      %1758 = vmatpush2.bf16.msra.mxu0 0
      %1759 = vmatprep.subr.bf16.mxu0 0
      %1760 = vmatpush2.bf16.msra.mxu0 0
      %1761 = vmatprep.subr.bf16.mxu0 0
      %1762 = vmatpush2.bf16.msra.mxu0 0
      %1763 = vmatprep.subr.bf16.mxu0 0
      %1764 = vmatpush2.bf16.msra.mxu0 0
      %1765 = vmatprep.mubr.bf16.mxu0 0
      %1766 = vmatmul.mubr.bf16.gmra.mxu0 %v1724
      %v1767 = vpop.f32.mrf.mxu0
      %v1768 = vadd.f32 0.0, %v1767
      %v1769 = vpop.f32.mrf.mxu0
      %v1770 = vpop.f32.mrf.mxu0
      %v1771 = vpop.f32.mrf.mxu0
      %1772 = vdwg.mxu0
      %vm1773 = vcmask 258048
      %1774 = vst.msk [vmem:[#allocation3] sm:$0x1f] %vm1773, %v1768
      %1776 = vrot.lane.b32.xlu0 %v1659, 96
      %v1777 = vpop.permute.xlu0 %1776
      %1779 = vrot.lane.b32.xlu0 %v1660, 96
      %v1780 = vpop.permute.xlu0 %1779
      %v1782 = vsel %vm1662, %v1777, 0
      %v1785 = vsel %vm1662, %v1780, 0
      %1787 = vmatprep.subr.bf16.mxu0 0
      %1788 = vmatpush1.bf16.xpose.msra.mxu0 0
      %1789 = vmatprep.subr.bf16.mxu0 0
      %1790 = vmatpush1.bf16.xpose.msra.mxu0 0
      %1791 = vmatprep.subr.bf16.mxu0 0
      %1792 = vmatpush1.bf16.xpose.msra.mxu0 0
      %1793 = vmatprep.subr.bf16.mxu0 0
      %1794 = vmatpush1.bf16.xpose.msra.mxu0 0
      %1795 = vmatprep.subr.bf16.mxu0 0
      %1796 = vmatpush1.bf16.xpose.msra.mxu0 0
      %1797 = vmatprep.subr.bf16.mxu0 0
      %1798 = vmatpush1.bf16.xpose.msra.mxu0 0
      %1799 = vmatprep.subr.bf16.mxu0 0
      %1800 = vmatpush1.bf16.xpose.msra.mxu0 0
      %1801 = vmatprep.subr.bf16.mxu0 0
      %1802 = vmatpush1.bf16.xpose.msra.mxu0 %v1785
      %1803 = vmatprep.subr.bf16.mxu0 0
      %1804 = vmatpush2.bf16.xpose.msra.mxu0 0
      %1805 = vmatprep.subr.bf16.mxu0 0
      %1806 = vmatpush2.bf16.xpose.msra.mxu0 0
      %1807 = vmatprep.subr.bf16.mxu0 0
      %1808 = vmatpush2.bf16.xpose.msra.mxu0 0
      %1809 = vmatprep.subr.bf16.mxu0 0
      %1810 = vmatpush2.bf16.xpose.msra.mxu0 0
      %1811 = vmatprep.subr.bf16.mxu0 0
      %1812 = vmatpush2.bf16.xpose.msra.mxu0 0
      %1813 = vmatprep.subr.bf16.mxu0 0
      %1814 = vmatpush2.bf16.xpose.msra.mxu0 0
      %1815 = vmatprep.subr.bf16.mxu0 0
      %1816 = vmatpush2.bf16.xpose.msra.mxu0 0
      %1817 = vmatprep.subr.bf16.mxu0 0
      %1818 = vmatpush2.bf16.xpose.msra.mxu0 0
      %1819 = vmatprep.mubr.bf16.mxu0 0
      %1820 = vmatmul.mubr.bf16.gmra.mxu0 %v1782
      %v1821 = vpop.f32.mrf.mxu0
      %v1822 = vadd.f32 0.0, %v1821
      %v1823 = vpop.f32.mrf.mxu0
      %v1824 = vpop.f32.mrf.mxu0
      %v1825 = vpop.f32.mrf.mxu0
      %1826 = vdwg.mxu0
      %v1827 = vsel %vm1709, %v1822, -inf
      %1828 = vmax.xlane.f32.xlu0 %v1827
      %v1829 = vpop.xlane.xlu0 %1828
      %v1830 = vsub.f32 %v1822, %v1829
      %v1831 = vmul.f32 %v1830, 1.442695
      %v1832 = vpow.pop %v1831
      %v1833 = vsel %vm1709, %v1832, 0.0
      %1834 = vadd.xlane.f32.xlu0 %v1833
      %v1835 = vpop.xlane.xlu0 %1834
      %v1836 = vrcp.pop %v1835
      %v1837 = vmul.f32 %v1832, %v1836
      %v1838 = vpack.c.bf16 %v1837, %v1837
      %1840 = vrot.lane.b32.xlu0 %v1661, 96
      %v1841 = vpop.permute.xlu0 %1840
      %v1843 = vsel %vm1722, %v1838, 0
      %v1846 = vand.u32 %v1841, %v1729
      %1848 = vmatprep.subr.bf16.mxu0 0
      %1849 = vmatpush1.bf16.msra.mxu0 0
      %1850 = vmatprep.subr.bf16.mxu0 0
      %1851 = vmatpush1.bf16.msra.mxu0 0
      %1852 = vmatprep.subr.bf16.mxu0 0
      %1853 = vmatpush1.bf16.msra.mxu0 0
      %1854 = vmatprep.subr.bf16.mxu0 0
      %1855 = vmatpush1.bf16.msra.mxu0 0
      %1856 = vmatprep.subr.bf16.mxu0 0
      %1857 = vmatpush1.bf16.msra.mxu0 0
      %1858 = vmatprep.subr.bf16.mxu0 0
      %1859 = vmatpush1.bf16.msra.mxu0 0
      %1860 = vmatprep.subr.bf16.mxu0 0
      %1861 = vmatpush1.bf16.msra.mxu0 0
      %1862 = vmatprep.subr.bf16.mxu0 0
      %1863 = vmatpush1.bf16.msra.mxu0 %v1846
      %1864 = vmatprep.subr.bf16.mxu0 0
      %1865 = vmatpush2.bf16.msra.mxu0 0
      %1866 = vmatprep.subr.bf16.mxu0 0
      %1867 = vmatpush2.bf16.msra.mxu0 0
      %1868 = vmatprep.subr.bf16.mxu0 0
      %1869 = vmatpush2.bf16.msra.mxu0 0
      %1870 = vmatprep.subr.bf16.mxu0 0
      %1871 = vmatpush2.bf16.msra.mxu0 0
      %1872 = vmatprep.subr.bf16.mxu0 0
      %1873 = vmatpush2.bf16.msra.mxu0 0
      %1874 = vmatprep.subr.bf16.mxu0 0
      %1875 = vmatpush2.bf16.msra.mxu0 0
      %1876 = vmatprep.subr.bf16.mxu0 0
      %1877 = vmatpush2.bf16.msra.mxu0 0
      %1878 = vmatprep.subr.bf16.mxu0 0
      %1879 = vmatpush2.bf16.msra.mxu0 0
      %1880 = vmatprep.mubr.bf16.mxu0 0
      %1881 = vmatmul.mubr.bf16.gmra.mxu0 %v1843
      %v1882 = vpop.f32.mrf.mxu0
      %v1883 = vadd.f32 0.0, %v1882
      %v1884 = vpop.f32.mrf.mxu0
      %v1885 = vpop.f32.mrf.mxu0
      %v1886 = vpop.f32.mrf.mxu0
      %1887 = vdwg.mxu0
      %1889 = vrot.lane.b32.xlu0 %v1883, 32
      %v1890 = vpop.permute.xlu0 %1889
      %vm1892 = vcmask 520448
      %1893 = vst.msk [vmem:[#allocation3] sm:$0x1f] %vm1892, %v1890
      %1894 = vrot.lane.b32.xlu0 %v1659, 64
      %v1895 = vpop.permute.xlu0 %1894
      %1896 = vrot.lane.b32.xlu0 %v1660, 64
      %v1897 = vpop.permute.xlu0 %1896
      %v1899 = vsel %vm1662, %v1895, 0
      %v1902 = vsel %vm1662, %v1897, 0
      %1904 = vmatprep.subr.bf16.mxu0 0
      %1905 = vmatpush1.bf16.xpose.msra.mxu0 0
      %1906 = vmatprep.subr.bf16.mxu0 0
      %1907 = vmatpush1.bf16.xpose.msra.mxu0 0
      %1908 = vmatprep.subr.bf16.mxu0 0
      %1909 = vmatpush1.bf16.xpose.msra.mxu0 0
      %1910 = vmatprep.subr.bf16.mxu0 0
      %1911 = vmatpush1.bf16.xpose.msra.mxu0 0
      %1912 = vmatprep.subr.bf16.mxu0 0
      %1913 = vmatpush1.bf16.xpose.msra.mxu0 0
      %1914 = vmatprep.subr.bf16.mxu0 0
      %1915 = vmatpush1.bf16.xpose.msra.mxu0 0
      %1916 = vmatprep.subr.bf16.mxu0 0
      %1917 = vmatpush1.bf16.xpose.msra.mxu0 0
      %1918 = vmatprep.subr.bf16.mxu0 0
      %1919 = vmatpush1.bf16.xpose.msra.mxu0 %v1902
      %1920 = vmatprep.subr.bf16.mxu0 0
      %1921 = vmatpush2.bf16.xpose.msra.mxu0 0
      %1922 = vmatprep.subr.bf16.mxu0 0
      %1923 = vmatpush2.bf16.xpose.msra.mxu0 0
      %1924 = vmatprep.subr.bf16.mxu0 0
      %1925 = vmatpush2.bf16.xpose.msra.mxu0 0
      %1926 = vmatprep.subr.bf16.mxu0 0
      %1927 = vmatpush2.bf16.xpose.msra.mxu0 0
      %1928 = vmatprep.subr.bf16.mxu0 0
      %1929 = vmatpush2.bf16.xpose.msra.mxu0 0
      %1930 = vmatprep.subr.bf16.mxu0 0
      %1931 = vmatpush2.bf16.xpose.msra.mxu0 0
      %1932 = vmatprep.subr.bf16.mxu0 0
      %1933 = vmatpush2.bf16.xpose.msra.mxu0 0
      %1934 = vmatprep.subr.bf16.mxu0 0
      %1935 = vmatpush2.bf16.xpose.msra.mxu0 0
      %1936 = vmatprep.mubr.bf16.mxu0 0
      %1937 = vmatmul.mubr.bf16.gmra.mxu0 %v1899
      %v1938 = vpop.f32.mrf.mxu0
      %v1939 = vadd.f32 0.0, %v1938
      %v1940 = vpop.f32.mrf.mxu0
      %v1941 = vpop.f32.mrf.mxu0
      %v1942 = vpop.f32.mrf.mxu0
      %1943 = vdwg.mxu0
      %v1944 = vsel %vm1709, %v1939, -inf
      %1945 = vmax.xlane.f32.xlu0 %v1944
      %v1946 = vpop.xlane.xlu0 %1945
      %v1947 = vsub.f32 %v1939, %v1946
      %v1948 = vmul.f32 %v1947, 1.442695
      %v1949 = vpow.pop %v1948
      %v1950 = vsel %vm1709, %v1949, 0.0
      %1951 = vadd.xlane.f32.xlu0 %v1950
      %v1952 = vpop.xlane.xlu0 %1951
      %v1953 = vrcp.pop %v1952
      %v1954 = vmul.f32 %v1949, %v1953
      %v1955 = vpack.c.bf16 %v1954, %v1954
      %1956 = vrot.lane.b32.xlu0 %v1661, 64
      %v1957 = vpop.permute.xlu0 %1956
      %v1959 = vsel %vm1722, %v1955, 0
      %v1962 = vand.u32 %v1957, %v1729
      %1964 = vmatprep.subr.bf16.mxu0 0
      %1965 = vmatpush1.bf16.msra.mxu0 0
      %1966 = vmatprep.subr.bf16.mxu0 0
      %1967 = vmatpush1.bf16.msra.mxu0 0
      %1968 = vmatprep.subr.bf16.mxu0 0
      %1969 = vmatpush1.bf16.msra.mxu0 0
      %1970 = vmatprep.subr.bf16.mxu0 0
      %1971 = vmatpush1.bf16.msra.mxu0 0
      %1972 = vmatprep.subr.bf16.mxu0 0
      %1973 = vmatpush1.bf16.msra.mxu0 0
      %1974 = vmatprep.subr.bf16.mxu0 0
      %1975 = vmatpush1.bf16.msra.mxu0 0
      %1976 = vmatprep.subr.bf16.mxu0 0
      %1977 = vmatpush1.bf16.msra.mxu0 0
      %1978 = vmatprep.subr.bf16.mxu0 0
      %1979 = vmatpush1.bf16.msra.mxu0 %v1962
      %1980 = vmatprep.subr.bf16.mxu0 0
      %1981 = vmatpush2.bf16.msra.mxu0 0
      %1982 = vmatprep.subr.bf16.mxu0 0
      %1983 = vmatpush2.bf16.msra.mxu0 0
      %1984 = vmatprep.subr.bf16.mxu0 0
      %1985 = vmatpush2.bf16.msra.mxu0 0
      %1986 = vmatprep.subr.bf16.mxu0 0
      %1987 = vmatpush2.bf16.msra.mxu0 0
      %1988 = vmatprep.subr.bf16.mxu0 0
      %1989 = vmatpush2.bf16.msra.mxu0 0
      %1990 = vmatprep.subr.bf16.mxu0 0
      %1991 = vmatpush2.bf16.msra.mxu0 0
      %1992 = vmatprep.subr.bf16.mxu0 0
      %1993 = vmatpush2.bf16.msra.mxu0 0
      %1994 = vmatprep.subr.bf16.mxu0 0
      %1995 = vmatpush2.bf16.msra.mxu0 0
      %1996 = vmatprep.mubr.bf16.mxu0 0
      %1997 = vmatmul.mubr.bf16.gmra.mxu0 %v1959
      %v1998 = vpop.f32.mrf.mxu0
      %v1999 = vadd.f32 0.0, %v1998
      %v2000 = vpop.f32.mrf.mxu0
      %v2001 = vpop.f32.mrf.mxu0
      %v2002 = vpop.f32.mrf.mxu0
      %2003 = vdwg.mxu0
      %2005 = vrot.lane.b32.xlu0 %v1999, 64
      %v2006 = vpop.permute.xlu0 %2005
      %vm2008 = vcmask 782848
      %2009 = vst.msk [vmem:[#allocation3] sm:$0x1f] %vm2008, %v2006
      %2010 = vrot.lane.b32.xlu0 %v1659, 32
      %v2011 = vpop.permute.xlu0 %2010
      %2012 = vrot.lane.b32.xlu0 %v1660, 32
      %v2013 = vpop.permute.xlu0 %2012
      %v2015 = vsel %vm1662, %v2011, 0
      %v2018 = vsel %vm1662, %v2013, 0
      %2020 = vmatprep.subr.bf16.mxu0 0
      %2021 = vmatpush1.bf16.xpose.msra.mxu0 0
      %2022 = vmatprep.subr.bf16.mxu0 0
      %2023 = vmatpush1.bf16.xpose.msra.mxu0 0
      %2024 = vmatprep.subr.bf16.mxu0 0
      %2025 = vmatpush1.bf16.xpose.msra.mxu0 0
      %2026 = vmatprep.subr.bf16.mxu0 0
      %2027 = vmatpush1.bf16.xpose.msra.mxu0 0
      %2028 = vmatprep.subr.bf16.mxu0 0
      %2029 = vmatpush1.bf16.xpose.msra.mxu0 0
      %2030 = vmatprep.subr.bf16.mxu0 0
      %2031 = vmatpush1.bf16.xpose.msra.mxu0 0
      %2032 = vmatprep.subr.bf16.mxu0 0
      %2033 = vmatpush1.bf16.xpose.msra.mxu0 0
      %2034 = vmatprep.subr.bf16.mxu0 0
      %2035 = vmatpush1.bf16.xpose.msra.mxu0 %v2018
      %2036 = vmatprep.subr.bf16.mxu0 0
      %2037 = vmatpush2.bf16.xpose.msra.mxu0 0
      %2038 = vmatprep.subr.bf16.mxu0 0
      %2039 = vmatpush2.bf16.xpose.msra.mxu0 0
      %2040 = vmatprep.subr.bf16.mxu0 0
      %2041 = vmatpush2.bf16.xpose.msra.mxu0 0
      %2042 = vmatprep.subr.bf16.mxu0 0
      %2043 = vmatpush2.bf16.xpose.msra.mxu0 0
      %2044 = vmatprep.subr.bf16.mxu0 0
      %2045 = vmatpush2.bf16.xpose.msra.mxu0 0
      %2046 = vmatprep.subr.bf16.mxu0 0
      %2047 = vmatpush2.bf16.xpose.msra.mxu0 0
      %2048 = vmatprep.subr.bf16.mxu0 0
      %2049 = vmatpush2.bf16.xpose.msra.mxu0 0
      %2050 = vmatprep.subr.bf16.mxu0 0
      %2051 = vmatpush2.bf16.xpose.msra.mxu0 0
      %2052 = vmatprep.mubr.bf16.mxu0 0
      %2053 = vmatmul.mubr.bf16.gmra.mxu0 %v2015
      %v2054 = vpop.f32.mrf.mxu0
      %v2055 = vadd.f32 0.0, %v2054
      %v2056 = vpop.f32.mrf.mxu0
      %v2057 = vpop.f32.mrf.mxu0
      %v2058 = vpop.f32.mrf.mxu0
      %2059 = vdwg.mxu0
      %v2060 = vsel %vm1709, %v2055, -inf
      %2061 = vmax.xlane.f32.xlu0 %v2060
      %v2062 = vpop.xlane.xlu0 %2061
      %v2063 = vsub.f32 %v2055, %v2062
      %v2064 = vmul.f32 %v2063, 1.442695
      %v2065 = vpow.pop %v2064
      %v2066 = vsel %vm1709, %v2065, 0.0
      %2067 = vadd.xlane.f32.xlu0 %v2066
      %v2068 = vpop.xlane.xlu0 %2067
      %v2069 = vrcp.pop %v2068
      %v2070 = vmul.f32 %v2065, %v2069
      %v2071 = vpack.c.bf16 %v2070, %v2070
      %2072 = vrot.lane.b32.xlu0 %v1661, 32
      %v2073 = vpop.permute.xlu0 %2072
      %v2075 = vsel %vm1722, %v2071, 0
      %v2078 = vand.u32 %v2073, %v1729
      %2080 = vmatprep.subr.bf16.mxu0 0
      %2081 = vmatpush1.bf16.msra.mxu0 0
      %2082 = vmatprep.subr.bf16.mxu0 0
      %2083 = vmatpush1.bf16.msra.mxu0 0
      %2084 = vmatprep.subr.bf16.mxu0 0
      %2085 = vmatpush1.bf16.msra.mxu0 0
      %2086 = vmatprep.subr.bf16.mxu0 0
      %2087 = vmatpush1.bf16.msra.mxu0 0
      %2088 = vmatprep.subr.bf16.mxu0 0
      %2089 = vmatpush1.bf16.msra.mxu0 0
      %2090 = vmatprep.subr.bf16.mxu0 0
      %2091 = vmatpush1.bf16.msra.mxu0 0
      %2092 = vmatprep.subr.bf16.mxu0 0
      %2093 = vmatpush1.bf16.msra.mxu0 0
      %2094 = vmatprep.subr.bf16.mxu0 0
      %2095 = vmatpush1.bf16.msra.mxu0 %v2078
      %2096 = vmatprep.subr.bf16.mxu0 0
      %2097 = vmatpush2.bf16.msra.mxu0 0
      %2098 = vmatprep.subr.bf16.mxu0 0
      %2099 = vmatpush2.bf16.msra.mxu0 0
      %2100 = vmatprep.subr.bf16.mxu0 0
      %2101 = vmatpush2.bf16.msra.mxu0 0
      %2102 = vmatprep.subr.bf16.mxu0 0
      %2103 = vmatpush2.bf16.msra.mxu0 0
      %2104 = vmatprep.subr.bf16.mxu0 0
      %2105 = vmatpush2.bf16.msra.mxu0 0
      %2106 = vmatprep.subr.bf16.mxu0 0
      %2107 = vmatpush2.bf16.msra.mxu0 0
      %2108 = vmatprep.subr.bf16.mxu0 0
      %2109 = vmatpush2.bf16.msra.mxu0 0
      %2110 = vmatprep.subr.bf16.mxu0 0
      %2111 = vmatpush2.bf16.msra.mxu0 0
      %2112 = vmatprep.mubr.bf16.mxu0 0
      %2113 = vmatmul.mubr.bf16.gmra.mxu0 %v2075
      %v2114 = vpop.f32.mrf.mxu0
      %v2115 = vadd.f32 0.0, %v2114
      %v2116 = vpop.f32.mrf.mxu0
      %v2117 = vpop.f32.mrf.mxu0
      %v2118 = vpop.f32.mrf.mxu0
      %2119 = vdwg.mxu0
      %2121 = vrot.lane.b32.xlu0 %v2115, 96
      %v2122 = vpop.permute.xlu0 %2121
      %vm2124 = vcmask 1045248
      %2125 = vst.msk [vmem:[#allocation3] sm:$0x1f] %vm2124, %v2122
      %v2126 = vld [vmem:[#allocation3] sm:$0x1f]
      %v2127 = vpack.c.bf16 %v2126, %v2126
      %v2128 = vld [vmem:[%s753] sm:$0xf]
      %v2129 = vld [vmem:[%s753 + $0x4] sm:$0xf]
      %v2130 = vld [vmem:[%s753 + $0x8] sm:$0xf]
      %v2131 = vld [vmem:[%s753 + $0xc] sm:$0xf]
      %v2132 = vld [vmem:[%s753 + $0x10] sm:$0xf]
      %v2133 = vld [vmem:[%s753 + $0x14] sm:$0xf]
      %v2134 = vld [vmem:[%s753 + $0x18] sm:$0xf]
      %v2135 = vld [vmem:[%s753 + $0x1c] sm:$0xf]
      %v2136 = vld [vmem:[%s753 + $0x20] sm:$0xf]
      %v2137 = vld [vmem:[%s753 + $0x24] sm:$0xf]
      %v2138 = vld [vmem:[%s753 + $0x28] sm:$0xf]
      %v2139 = vld [vmem:[%s753 + $0x2c] sm:$0xf]
      %v2140 = vld [vmem:[%s753 + $0x30] sm:$0xf]
      %v2141 = vld [vmem:[%s753 + $0x34] sm:$0xf]
      %v2142 = vld [vmem:[%s753 + $0x38] sm:$0xf]
      %v2143 = vld [vmem:[%s753 + $0x3c] sm:$0xf]
      %v2144 = vld [vmem:[%s756] sm:$0x1]
      %v2146 = vlaneseq
      %v2147 = vshrl.u32 %v2146, 7
      %v2148 = vsub.s32 0, %v2147
      %v2149 = vrot.slane %v2144, %v2148
      %v2167 = vunpack.c.l.b16 %v2128
      %v2168 = vunpack.c.l.b16 %v2129
      %v2169 = vunpack.c.l.b16 %v2130
      %v2170 = vunpack.c.l.b16 %v2131
      %v2171 = vunpack.c.l.b16 %v2132
      %v2172 = vunpack.c.l.b16 %v2133
      %v2173 = vunpack.c.l.b16 %v2134
      %v2174 = vunpack.c.l.b16 %v2135
      %v2175 = vunpack.c.l.b16 %v2136
      %v2176 = vunpack.c.l.b16 %v2137
      %v2177 = vunpack.c.l.b16 %v2138
      %v2178 = vunpack.c.l.b16 %v2139
      %v2179 = vunpack.c.l.b16 %v2140
      %v2180 = vunpack.c.l.b16 %v2141
      %v2181 = vunpack.c.l.b16 %v2142
      %v2182 = vunpack.c.l.b16 %v2143
      %v2183 = vpack.c.b16 %v2168, %v2167
      %v2184 = vpack.c.b16 %v2170, %v2169
      %v2185 = vpack.c.b16 %v2172, %v2171
      %v2186 = vpack.c.b16 %v2174, %v2173
      %v2187 = vpack.c.b16 %v2176, %v2175
      %v2188 = vpack.c.b16 %v2178, %v2177
      %v2189 = vpack.c.b16 %v2180, %v2179
      %v2190 = vpack.c.b16 %v2182, %v2181
      %2199 = vmatprep.subr.bf16.mxu0 0
      %2200 = vmatpush1.bf16.msra.mxu0 %v2190
      %2201 = vmatprep.subr.bf16.mxu0 0
      %2202 = vmatpush1.bf16.msra.mxu0 %v2189
      %2203 = vmatprep.subr.bf16.mxu0 0
      %2204 = vmatpush1.bf16.msra.mxu0 %v2188
      %2205 = vmatprep.subr.bf16.mxu0 0
      %2206 = vmatpush1.bf16.msra.mxu0 %v2187
      %2207 = vmatprep.subr.bf16.mxu0 0
      %2208 = vmatpush1.bf16.msra.mxu0 %v2186
      %2209 = vmatprep.subr.bf16.mxu0 0
      %2210 = vmatpush1.bf16.msra.mxu0 %v2185
      %2211 = vmatprep.subr.bf16.mxu0 0
      %2212 = vmatpush1.bf16.msra.mxu0 %v2184
      %2213 = vmatprep.subr.bf16.mxu0 0
      %2214 = vmatpush1.bf16.msra.mxu0 %v2183
      %2215 = vmatprep.subr.bf16.mxu0 0
      %2216 = vmatpush2.bf16.msra.mxu0 0
      %2217 = vmatprep.subr.bf16.mxu0 0
      %2218 = vmatpush2.bf16.msra.mxu0 0
      %2219 = vmatprep.subr.bf16.mxu0 0
      %2220 = vmatpush2.bf16.msra.mxu0 0
      %2221 = vmatprep.subr.bf16.mxu0 0
      %2222 = vmatpush2.bf16.msra.mxu0 0
      %2223 = vmatprep.subr.bf16.mxu0 0
      %2224 = vmatpush2.bf16.msra.mxu0 0
      %2225 = vmatprep.subr.bf16.mxu0 0
      %2226 = vmatpush2.bf16.msra.mxu0 0
      %2227 = vmatprep.subr.bf16.mxu0 0
      %2228 = vmatpush2.bf16.msra.mxu0 0
      %2229 = vmatprep.subr.bf16.mxu0 0
      %2230 = vmatpush2.bf16.msra.mxu0 0
      %2231 = vmatprep.mubr.bf16.mxu0 0
      %2232 = vmatmul.mubr.bf16.gmra.mxu0 %v2127
      %v2233 = vpop.f32.mrf.mxu0
      %v2234 = vadd.f32 %v2149, %v2233
      %v2235 = vpop.f32.mrf.mxu0
      %v2236 = vpop.f32.mrf.mxu0
      %v2237 = vpop.f32.mrf.mxu0
      %2238 = vdwg.mxu0
      %v2239 = vadd.f32 %v1367, %v2234
      %v2240 = vld [vmem:[%s759] sm:$0x1]
      %v2241 = vld [vmem:[%s762] sm:$0x1]
      %v2242 = vsel %vm1370, %v2239, 0.0
      %2243 = vadd.xlane.f32.xlu0 %v2242
      %v2244 = vpop.xlane.xlu0 %2243
      %v2245 = vmul.f32 %v2244, 0.0078125
      %v2246 = vmul.f32 %v2239, %v2239
      %v2247 = vsel %vm1370, %v2246, 0.0
      %2248 = vadd.xlane.f32.xlu0 %v2247
      %v2249 = vpop.xlane.xlu0 %2248
      %v2250 = vmul.f32 %v2249, 0.0078125
      %v2251 = vmul.f32 %v2245, %v2245
      %v2252 = vsub.f32 %v2250, %v2251
      %v2253 = vsub.f32 %v2239, %v2245
      %v2254 = vadd.f32 %v2252, 1e-05
      %v2255 = vrsqrt.pop %v2254
      %v2256 = vmul.f32 %v2253, %v2255
      %v2258 = vlaneseq
      %v2259 = vshrl.u32 %v2258, 7
      %v2260 = vsub.s32 0, %v2259
      %v2261 = vrot.slane %v2240, %v2260
      %v2263 = vmul.f32 %v2256, %v2261
      %v2265 = vlaneseq
      %v2266 = vshrl.u32 %v2265, 7
      %v2267 = vsub.s32 0, %v2266
      %v2268 = vrot.slane %v2241, %v2267
      %v2270 = vadd.f32 %v2263, %v2268
      %v2271 = vpack.c.bf16 %v2270, %v2270
      %v2272 = vld [vmem:[%s767] sm:$0xff]
      %v2273 = vld [vmem:[%s767 + $0x8] sm:$0xff]
      %v2274 = vld [vmem:[%s767 + $0x10] sm:$0xff]
      %v2275 = vld [vmem:[%s767 + $0x18] sm:$0xff]
      %v2276 = vld [vmem:[%s767 + $0x20] sm:$0xff]
      %v2277 = vld [vmem:[%s767 + $0x28] sm:$0xff]
      %v2278 = vld [vmem:[%s767 + $0x30] sm:$0xff]
      %v2279 = vld [vmem:[%s767 + $0x38] sm:$0xff]
      %v2280 = vld [vmem:[%s767 + $0x40] sm:$0xff]
      %v2281 = vld [vmem:[%s767 + $0x48] sm:$0xff]
      %v2282 = vld [vmem:[%s767 + $0x50] sm:$0xff]
      %v2283 = vld [vmem:[%s767 + $0x58] sm:$0xff]
      %v2284 = vld [vmem:[%s767 + $0x60] sm:$0xff]
      %v2285 = vld [vmem:[%s767 + $0x68] sm:$0xff]
      %v2286 = vld [vmem:[%s767 + $0x70] sm:$0xff]
      %v2287 = vld [vmem:[%s767 + $0x78] sm:$0xff]
      %v2288 = vld [vmem:[%s767 + $0x80] sm:$0xff]
      %v2289 = vld [vmem:[%s767 + $0x88] sm:$0xff]
      %v2290 = vld [vmem:[%s767 + $0x90] sm:$0xff]
      %v2291 = vld [vmem:[%s767 + $0x98] sm:$0xff]
      %v2292 = vld [vmem:[%s767 + $0xa0] sm:$0xff]
      %v2293 = vld [vmem:[%s767 + $0xa8] sm:$0xff]
      %v2294 = vld [vmem:[%s767 + $0xb0] sm:$0xff]
      %v2295 = vld [vmem:[%s767 + $0xb8] sm:$0xff]
      %v2296 = vld [vmem:[%s767 + $0xc0] sm:$0xff]
      %v2297 = vld [vmem:[%s767 + $0xc8] sm:$0xff]
      %v2298 = vld [vmem:[%s767 + $0xd0] sm:$0xff]
      %v2299 = vld [vmem:[%s767 + $0xd8] sm:$0xff]
      %v2300 = vld [vmem:[%s767 + $0xe0] sm:$0xff]
      %v2301 = vld [vmem:[%s767 + $0xe8] sm:$0xff]
      %v2302 = vld [vmem:[%s767 + $0xf0] sm:$0xff]
      %v2303 = vld [vmem:[%s767 + $0xf8] sm:$0xff]
      %v2304 = vld [vmem:[%s771] sm:$0xf]
      %v2306 = vlaneseq
      %v2307 = vshrl.u32 %v2306, 7
      %v2308 = vsub.s32 0, %v2307
      %v2309 = vrot.slane %v2304, %v2308
      %v2310 = vlaneseq
      %v2311 = vshrl.u32 %v2310, 7
      %v2312 = vsub.s32 1, %v2311
      %v2313 = vrot.slane %v2304, %v2312
      %v2314 = vlaneseq
      %v2315 = vshrl.u32 %v2314, 7
      %v2316 = vsub.s32 2, %v2315
      %v2317 = vrot.slane %v2304, %v2316
      %v2318 = vlaneseq
      %v2319 = vshrl.u32 %v2318, 7
      %v2320 = vsub.s32 3, %v2319
      %v2321 = vrot.slane %v2304, %v2320
      %v2358 = vunpack.c.l.b16 %v2272
      %v2359 = vunpack.c.h.b16 %v2272
      %v2360 = vunpack.c.l.b16 %v2273
      %v2361 = vunpack.c.h.b16 %v2273
      %v2362 = vunpack.c.l.b16 %v2274
      %v2363 = vunpack.c.h.b16 %v2274
      %v2364 = vunpack.c.l.b16 %v2275
      %v2365 = vunpack.c.h.b16 %v2275
      %v2366 = vunpack.c.l.b16 %v2276
      %v2367 = vunpack.c.h.b16 %v2276
      %v2368 = vunpack.c.l.b16 %v2277
      %v2369 = vunpack.c.h.b16 %v2277
      %v2370 = vunpack.c.l.b16 %v2278
      %v2371 = vunpack.c.h.b16 %v2278
      %v2372 = vunpack.c.l.b16 %v2279
      %v2373 = vunpack.c.h.b16 %v2279
      %v2374 = vunpack.c.l.b16 %v2280
      %v2375 = vunpack.c.h.b16 %v2280
      %v2376 = vunpack.c.l.b16 %v2281
      %v2377 = vunpack.c.h.b16 %v2281
      %v2378 = vunpack.c.l.b16 %v2282
      %v2379 = vunpack.c.h.b16 %v2282
      %v2380 = vunpack.c.l.b16 %v2283
      %v2381 = vunpack.c.h.b16 %v2283
      %v2382 = vunpack.c.l.b16 %v2284
      %v2383 = vunpack.c.h.b16 %v2284
      %v2384 = vunpack.c.l.b16 %v2285
      %v2385 = vunpack.c.h.b16 %v2285
      %v2386 = vunpack.c.l.b16 %v2286
      %v2387 = vunpack.c.h.b16 %v2286
      %v2388 = vunpack.c.l.b16 %v2287
      %v2389 = vunpack.c.h.b16 %v2287
      %v2390 = vunpack.c.l.b16 %v2288
      %v2391 = vunpack.c.h.b16 %v2288
      %v2392 = vunpack.c.l.b16 %v2289
      %v2393 = vunpack.c.h.b16 %v2289
      %v2394 = vunpack.c.l.b16 %v2290
      %v2395 = vunpack.c.h.b16 %v2290
      %v2396 = vunpack.c.l.b16 %v2291
      %v2397 = vunpack.c.h.b16 %v2291
      %v2398 = vunpack.c.l.b16 %v2292
      %v2399 = vunpack.c.h.b16 %v2292
      %v2400 = vunpack.c.l.b16 %v2293
      %v2401 = vunpack.c.h.b16 %v2293
      %v2402 = vunpack.c.l.b16 %v2294
      %v2403 = vunpack.c.h.b16 %v2294
      %v2404 = vunpack.c.l.b16 %v2295
      %v2405 = vunpack.c.h.b16 %v2295
      %v2406 = vunpack.c.l.b16 %v2296
      %v2407 = vunpack.c.h.b16 %v2296
      %v2408 = vunpack.c.l.b16 %v2297
      %v2409 = vunpack.c.h.b16 %v2297
      %v2410 = vunpack.c.l.b16 %v2298
      %v2411 = vunpack.c.h.b16 %v2298
      %v2412 = vunpack.c.l.b16 %v2299
      %v2413 = vunpack.c.h.b16 %v2299
      %v2414 = vunpack.c.l.b16 %v2300
      %v2415 = vunpack.c.h.b16 %v2300
      %v2416 = vunpack.c.l.b16 %v2301
      %v2417 = vunpack.c.h.b16 %v2301
      %v2418 = vunpack.c.l.b16 %v2302
      %v2419 = vunpack.c.h.b16 %v2302
      %v2420 = vunpack.c.l.b16 %v2303
      %v2421 = vunpack.c.h.b16 %v2303
      %v2422 = vpack.c.b16 %v2362, %v2358
      %v2423 = vpack.c.b16 %v2363, %v2359
      %v2424 = vpack.c.b16 %v2364, %v2360
      %v2425 = vpack.c.b16 %v2365, %v2361
      %v2426 = vpack.c.b16 %v2370, %v2366
      %v2427 = vpack.c.b16 %v2371, %v2367
      %v2428 = vpack.c.b16 %v2372, %v2368
      %v2429 = vpack.c.b16 %v2373, %v2369
      %v2430 = vpack.c.b16 %v2378, %v2374
      %v2431 = vpack.c.b16 %v2379, %v2375
      %v2432 = vpack.c.b16 %v2380, %v2376
      %v2433 = vpack.c.b16 %v2381, %v2377
      %v2434 = vpack.c.b16 %v2386, %v2382
      %v2435 = vpack.c.b16 %v2387, %v2383
      %v2436 = vpack.c.b16 %v2388, %v2384
      %v2437 = vpack.c.b16 %v2389, %v2385
      %v2438 = vpack.c.b16 %v2394, %v2390
      %v2439 = vpack.c.b16 %v2395, %v2391
      %v2440 = vpack.c.b16 %v2396, %v2392
      %v2441 = vpack.c.b16 %v2397, %v2393
      %v2442 = vpack.c.b16 %v2402, %v2398
      %v2443 = vpack.c.b16 %v2403, %v2399
      %v2444 = vpack.c.b16 %v2404, %v2400
      %v2445 = vpack.c.b16 %v2405, %v2401
      %v2446 = vpack.c.b16 %v2410, %v2406
      %v2447 = vpack.c.b16 %v2411, %v2407
      %v2448 = vpack.c.b16 %v2412, %v2408
      %v2449 = vpack.c.b16 %v2413, %v2409
      %v2450 = vpack.c.b16 %v2418, %v2414
      %v2451 = vpack.c.b16 %v2419, %v2415
      %v2452 = vpack.c.b16 %v2420, %v2416
      %v2453 = vpack.c.b16 %v2421, %v2417
      %2486 = vmatprep.subr.bf16.mxu0 %v2451
      %2487 = vmatpush1.bf16.msra.mxu0 %v2450
      %2488 = vmatprep.subr.bf16.mxu0 %v2447
      %2489 = vmatpush1.bf16.msra.mxu0 %v2446
      %2490 = vmatprep.subr.bf16.mxu0 %v2443
      %2491 = vmatpush1.bf16.msra.mxu0 %v2442
      %2492 = vmatprep.subr.bf16.mxu0 %v2439
      %2493 = vmatpush1.bf16.msra.mxu0 %v2438
      %2494 = vmatprep.subr.bf16.mxu0 %v2435
      %2495 = vmatpush1.bf16.msra.mxu0 %v2434
      %2496 = vmatprep.subr.bf16.mxu0 %v2431
      %2497 = vmatpush1.bf16.msra.mxu0 %v2430
      %2498 = vmatprep.subr.bf16.mxu0 %v2427
      %2499 = vmatpush1.bf16.msra.mxu0 %v2426
      %2500 = vmatprep.subr.bf16.mxu0 %v2423
      %2501 = vmatpush1.bf16.msra.mxu0 %v2422
      %2502 = vmatprep.subr.bf16.mxu0 0
      %2503 = vmatpush2.bf16.msra.mxu0 0
      %2504 = vmatprep.subr.bf16.mxu0 0
      %2505 = vmatpush2.bf16.msra.mxu0 0
      %2506 = vmatprep.subr.bf16.mxu0 0
      %2507 = vmatpush2.bf16.msra.mxu0 0
      %2508 = vmatprep.subr.bf16.mxu0 0
      %2509 = vmatpush2.bf16.msra.mxu0 0
      %2510 = vmatprep.subr.bf16.mxu0 0
      %2511 = vmatpush2.bf16.msra.mxu0 0
      %2512 = vmatprep.subr.bf16.mxu0 0
      %2513 = vmatpush2.bf16.msra.mxu0 0
      %2514 = vmatprep.subr.bf16.mxu0 0
      %2515 = vmatpush2.bf16.msra.mxu0 0
      %2516 = vmatprep.subr.bf16.mxu0 0
      %2517 = vmatpush2.bf16.msra.mxu0 0
      %2518 = vmatprep.mubr.bf16.mxu0 0
      %2519 = vmatmul.mubr.bf16.gmra.mxu0 %v2271
      %v2520 = vpop.f32.mrf.mxu0
      %v2521 = vadd.f32 %v2309, %v2520
      %v2522 = vpop.f32.mrf.mxu0
      %v2523 = vadd.f32 %v2313, %v2522
      %v2524 = vpop.f32.mrf.mxu0
      %v2525 = vpop.f32.mrf.mxu0
      %2526 = vdwg.mxu0
      %2527 = vmatprep.subr.bf16.mxu0 %v2453
      %2528 = vmatpush1.bf16.msra.mxu0 %v2452
      %2529 = vmatprep.subr.bf16.mxu0 %v2449
      %2530 = vmatpush1.bf16.msra.mxu0 %v2448
      %2531 = vmatprep.subr.bf16.mxu0 %v2445
      %2532 = vmatpush1.bf16.msra.mxu0 %v2444
      %2533 = vmatprep.subr.bf16.mxu0 %v2441
      %2534 = vmatpush1.bf16.msra.mxu0 %v2440
      %2535 = vmatprep.subr.bf16.mxu0 %v2437
      %2536 = vmatpush1.bf16.msra.mxu0 %v2436
      %2537 = vmatprep.subr.bf16.mxu0 %v2433
      %2538 = vmatpush1.bf16.msra.mxu0 %v2432
      %2539 = vmatprep.subr.bf16.mxu0 %v2429
      %2540 = vmatpush1.bf16.msra.mxu0 %v2428
      %2541 = vmatprep.subr.bf16.mxu0 %v2425
      %2542 = vmatpush1.bf16.msra.mxu0 %v2424
      %2543 = vmatprep.subr.bf16.mxu0 0
      %2544 = vmatpush2.bf16.msra.mxu0 0
      %2545 = vmatprep.subr.bf16.mxu0 0
      %2546 = vmatpush2.bf16.msra.mxu0 0
      %2547 = vmatprep.subr.bf16.mxu0 0
      %2548 = vmatpush2.bf16.msra.mxu0 0
      %2549 = vmatprep.subr.bf16.mxu0 0
      %2550 = vmatpush2.bf16.msra.mxu0 0
      %2551 = vmatprep.subr.bf16.mxu0 0
      %2552 = vmatpush2.bf16.msra.mxu0 0
      %2553 = vmatprep.subr.bf16.mxu0 0
      %2554 = vmatpush2.bf16.msra.mxu0 0
      %2555 = vmatprep.subr.bf16.mxu0 0
      %2556 = vmatpush2.bf16.msra.mxu0 0
      %2557 = vmatprep.subr.bf16.mxu0 0
      %2558 = vmatpush2.bf16.msra.mxu0 0
      %2559 = vmatprep.mubr.bf16.mxu0 0
      %2560 = vmatmul.mubr.bf16.gmra.mxu0 %v2271
      %v2561 = vpop.f32.mrf.mxu0
      %v2562 = vadd.f32 %v2317, %v2561
      %v2563 = vpop.f32.mrf.mxu0
      %v2564 = vadd.f32 %v2321, %v2563
      %v2565 = vpop.f32.mrf.mxu0
      %v2566 = vpop.f32.mrf.mxu0
      %2567 = vdwg.mxu0
      %v2568 = vmul.f32 %v2521, 1.702
      %v2569 = vmul.f32 %v2523, 1.702
      %v2570 = vmul.f32 %v2562, 1.702
      %v2571 = vmul.f32 %v2564, 1.702
      %v2572 = vxor.u32 %v2568, 2147483648
      %v2573 = vxor.u32 %v2569, 2147483648
      %v2574 = vxor.u32 %v2570, 2147483648
      %v2575 = vxor.u32 %v2571, 2147483648
      %v2576 = vmul.f32 %v2572, 1.442695
      %v2577 = vpow.pop %v2576
      %v2578 = vmul.f32 %v2573, 1.442695
      %v2579 = vpow.pop %v2578
      %v2580 = vmul.f32 %v2574, 1.442695
      %v2581 = vpow.pop %v2580
      %v2582 = vmul.f32 %v2575, 1.442695
      %v2583 = vpow.pop %v2582
      %v2584 = vadd.f32 %v2577, 1.0
      %v2585 = vadd.f32 %v2579, 1.0
      %v2586 = vadd.f32 %v2581, 1.0
      %v2587 = vadd.f32 %v2583, 1.0
      %v2588 = vrcp.pop %v2584
      %v2589 = vmul.f32 1.0, %v2588
      %v2590 = vrcp.pop %v2585
      %v2591 = vmul.f32 1.0, %v2590
      %v2592 = vrcp.pop %v2586
      %v2593 = vmul.f32 1.0, %v2592
      %v2594 = vrcp.pop %v2587
      %v2595 = vmul.f32 1.0, %v2594
      %v2596 = vmul.f32 %v2521, %v2589
      %v2597 = vmul.f32 %v2523, %v2591
      %v2598 = vmul.f32 %v2562, %v2593
      %v2599 = vmul.f32 %v2564, %v2595
      %v2600 = vpack.c.bf16 %v2596, %v2596
      %v2601 = vpack.c.bf16 %v2597, %v2597
      %v2602 = vpack.c.bf16 %v2598, %v2598
      %v2603 = vpack.c.bf16 %v2599, %v2599
      %v2604 = vld [vmem:[%s776] sm:$0xf]
      %v2605 = vld [vmem:[%s776 + $0x4] sm:$0xf]
      %v2606 = vld [vmem:[%s776 + $0x8] sm:$0xf]
      %v2607 = vld [vmem:[%s776 + $0xc] sm:$0xf]
      %v2608 = vld [vmem:[%s776 + $0x10] sm:$0xf]
      %v2609 = vld [vmem:[%s776 + $0x14] sm:$0xf]
      %v2610 = vld [vmem:[%s776 + $0x18] sm:$0xf]
      %v2611 = vld [vmem:[%s776 + $0x1c] sm:$0xf]
      %v2612 = vld [vmem:[%s776 + $0x20] sm:$0xf]
      %v2613 = vld [vmem:[%s776 + $0x24] sm:$0xf]
      %v2614 = vld [vmem:[%s776 + $0x28] sm:$0xf]
      %v2615 = vld [vmem:[%s776 + $0x2c] sm:$0xf]
      %v2616 = vld [vmem:[%s776 + $0x30] sm:$0xf]
      %v2617 = vld [vmem:[%s776 + $0x34] sm:$0xf]
      %v2618 = vld [vmem:[%s776 + $0x38] sm:$0xf]
      %v2619 = vld [vmem:[%s776 + $0x3c] sm:$0xf]
      %v2620 = vld [vmem:[%s776 + $0x40] sm:$0xf]
      %v2621 = vld [vmem:[%s776 + $0x44] sm:$0xf]
      %v2622 = vld [vmem:[%s776 + $0x48] sm:$0xf]
      %v2623 = vld [vmem:[%s776 + $0x4c] sm:$0xf]
      %v2624 = vld [vmem:[%s776 + $0x50] sm:$0xf]
      %v2625 = vld [vmem:[%s776 + $0x54] sm:$0xf]
      %v2626 = vld [vmem:[%s776 + $0x58] sm:$0xf]
      %v2627 = vld [vmem:[%s776 + $0x5c] sm:$0xf]
      %v2628 = vld [vmem:[%s776 + $0x60] sm:$0xf]
      %v2629 = vld [vmem:[%s776 + $0x64] sm:$0xf]
      %v2630 = vld [vmem:[%s776 + $0x68] sm:$0xf]
      %v2631 = vld [vmem:[%s776 + $0x6c] sm:$0xf]
      %v2632 = vld [vmem:[%s776 + $0x70] sm:$0xf]
      %v2633 = vld [vmem:[%s776 + $0x74] sm:$0xf]
      %v2634 = vld [vmem:[%s776 + $0x78] sm:$0xf]
      %v2635 = vld [vmem:[%s776 + $0x7c] sm:$0xf]
      %v2636 = vld [vmem:[%s776 + $0x80] sm:$0xf]
      %v2637 = vld [vmem:[%s776 + $0x84] sm:$0xf]
      %v2638 = vld [vmem:[%s776 + $0x88] sm:$0xf]
      %v2639 = vld [vmem:[%s776 + $0x8c] sm:$0xf]
      %v2640 = vld [vmem:[%s776 + $0x90] sm:$0xf]
      %v2641 = vld [vmem:[%s776 + $0x94] sm:$0xf]
      %v2642 = vld [vmem:[%s776 + $0x98] sm:$0xf]
      %v2643 = vld [vmem:[%s776 + $0x9c] sm:$0xf]
      %v2644 = vld [vmem:[%s776 + $0xa0] sm:$0xf]
      %v2645 = vld [vmem:[%s776 + $0xa4] sm:$0xf]
      %v2646 = vld [vmem:[%s776 + $0xa8] sm:$0xf]
      %v2647 = vld [vmem:[%s776 + $0xac] sm:$0xf]
      %v2648 = vld [vmem:[%s776 + $0xb0] sm:$0xf]
      %v2649 = vld [vmem:[%s776 + $0xb4] sm:$0xf]
      %v2650 = vld [vmem:[%s776 + $0xb8] sm:$0xf]
      %v2651 = vld [vmem:[%s776 + $0xbc] sm:$0xf]
      %v2652 = vld [vmem:[%s776 + $0xc0] sm:$0xf]
      %v2653 = vld [vmem:[%s776 + $0xc4] sm:$0xf]
      %v2654 = vld [vmem:[%s776 + $0xc8] sm:$0xf]
      %v2655 = vld [vmem:[%s776 + $0xcc] sm:$0xf]
      %v2656 = vld [vmem:[%s776 + $0xd0] sm:$0xf]
      %v2657 = vld [vmem:[%s776 + $0xd4] sm:$0xf]
      %v2658 = vld [vmem:[%s776 + $0xd8] sm:$0xf]
      %v2659 = vld [vmem:[%s776 + $0xdc] sm:$0xf]
      %v2660 = vld [vmem:[%s776 + $0xe0] sm:$0xf]
      %v2661 = vld [vmem:[%s776 + $0xe4] sm:$0xf]
      %v2662 = vld [vmem:[%s776 + $0xe8] sm:$0xf]
      %v2663 = vld [vmem:[%s776 + $0xec] sm:$0xf]
      %v2664 = vld [vmem:[%s776 + $0xf0] sm:$0xf]
      %v2665 = vld [vmem:[%s776 + $0xf4] sm:$0xf]
      %v2666 = vld [vmem:[%s776 + $0xf8] sm:$0xf]
      %v2667 = vld [vmem:[%s776 + $0xfc] sm:$0xf]
      %v2668 = vld [vmem:[%s779] sm:$0x1]
      %v2670 = vlaneseq
      %v2671 = vshrl.u32 %v2670, 7
      %v2672 = vsub.s32 0, %v2671
      %v2673 = vrot.slane %v2668, %v2672
      %v2739 = vunpack.c.l.b16 %v2604
      %v2740 = vunpack.c.l.b16 %v2605
      %v2741 = vunpack.c.l.b16 %v2606
      %v2742 = vunpack.c.l.b16 %v2607
      %v2743 = vunpack.c.l.b16 %v2608
      %v2744 = vunpack.c.l.b16 %v2609
      %v2745 = vunpack.c.l.b16 %v2610
      %v2746 = vunpack.c.l.b16 %v2611
      %v2747 = vunpack.c.l.b16 %v2612
      %v2748 = vunpack.c.l.b16 %v2613
      %v2749 = vunpack.c.l.b16 %v2614
      %v2750 = vunpack.c.l.b16 %v2615
      %v2751 = vunpack.c.l.b16 %v2616
      %v2752 = vunpack.c.l.b16 %v2617
      %v2753 = vunpack.c.l.b16 %v2618
      %v2754 = vunpack.c.l.b16 %v2619
      %v2755 = vunpack.c.l.b16 %v2620
      %v2756 = vunpack.c.l.b16 %v2621
      %v2757 = vunpack.c.l.b16 %v2622
      %v2758 = vunpack.c.l.b16 %v2623
      %v2759 = vunpack.c.l.b16 %v2624
      %v2760 = vunpack.c.l.b16 %v2625
      %v2761 = vunpack.c.l.b16 %v2626
      %v2762 = vunpack.c.l.b16 %v2627
      %v2763 = vunpack.c.l.b16 %v2628
      %v2764 = vunpack.c.l.b16 %v2629
      %v2765 = vunpack.c.l.b16 %v2630
      %v2766 = vunpack.c.l.b16 %v2631
      %v2767 = vunpack.c.l.b16 %v2632
      %v2768 = vunpack.c.l.b16 %v2633
      %v2769 = vunpack.c.l.b16 %v2634
      %v2770 = vunpack.c.l.b16 %v2635
      %v2771 = vunpack.c.l.b16 %v2636
      %v2772 = vunpack.c.l.b16 %v2637
      %v2773 = vunpack.c.l.b16 %v2638
      %v2774 = vunpack.c.l.b16 %v2639
      %v2775 = vunpack.c.l.b16 %v2640
      %v2776 = vunpack.c.l.b16 %v2641
      %v2777 = vunpack.c.l.b16 %v2642
      %v2778 = vunpack.c.l.b16 %v2643
      %v2779 = vunpack.c.l.b16 %v2644
      %v2780 = vunpack.c.l.b16 %v2645
      %v2781 = vunpack.c.l.b16 %v2646
      %v2782 = vunpack.c.l.b16 %v2647
      %v2783 = vunpack.c.l.b16 %v2648
      %v2784 = vunpack.c.l.b16 %v2649
      %v2785 = vunpack.c.l.b16 %v2650
      %v2786 = vunpack.c.l.b16 %v2651
      %v2787 = vunpack.c.l.b16 %v2652
      %v2788 = vunpack.c.l.b16 %v2653
      %v2789 = vunpack.c.l.b16 %v2654
      %v2790 = vunpack.c.l.b16 %v2655
      %v2791 = vunpack.c.l.b16 %v2656
      %v2792 = vunpack.c.l.b16 %v2657
      %v2793 = vunpack.c.l.b16 %v2658
      %v2794 = vunpack.c.l.b16 %v2659
      %v2795 = vunpack.c.l.b16 %v2660
      %v2796 = vunpack.c.l.b16 %v2661
      %v2797 = vunpack.c.l.b16 %v2662
      %v2798 = vunpack.c.l.b16 %v2663
      %v2799 = vunpack.c.l.b16 %v2664
      %v2800 = vunpack.c.l.b16 %v2665
      %v2801 = vunpack.c.l.b16 %v2666
      %v2802 = vunpack.c.l.b16 %v2667
      %v2803 = vpack.c.b16 %v2740, %v2739
      %v2804 = vpack.c.b16 %v2742, %v2741
      %v2805 = vpack.c.b16 %v2744, %v2743
      %v2806 = vpack.c.b16 %v2746, %v2745
      %v2807 = vpack.c.b16 %v2748, %v2747
      %v2808 = vpack.c.b16 %v2750, %v2749
      %v2809 = vpack.c.b16 %v2752, %v2751
      %v2810 = vpack.c.b16 %v2754, %v2753
      %v2811 = vpack.c.b16 %v2756, %v2755
      %v2812 = vpack.c.b16 %v2758, %v2757
      %v2813 = vpack.c.b16 %v2760, %v2759
      %v2814 = vpack.c.b16 %v2762, %v2761
      %v2815 = vpack.c.b16 %v2764, %v2763
      %v2816 = vpack.c.b16 %v2766, %v2765
      %v2817 = vpack.c.b16 %v2768, %v2767
      %v2818 = vpack.c.b16 %v2770, %v2769
      %v2819 = vpack.c.b16 %v2772, %v2771
      %v2820 = vpack.c.b16 %v2774, %v2773
      %v2821 = vpack.c.b16 %v2776, %v2775
      %v2822 = vpack.c.b16 %v2778, %v2777
      %v2823 = vpack.c.b16 %v2780, %v2779
      %v2824 = vpack.c.b16 %v2782, %v2781
      %v2825 = vpack.c.b16 %v2784, %v2783
      %v2826 = vpack.c.b16 %v2786, %v2785
      %v2827 = vpack.c.b16 %v2788, %v2787
      %v2828 = vpack.c.b16 %v2790, %v2789
      %v2829 = vpack.c.b16 %v2792, %v2791
      %v2830 = vpack.c.b16 %v2794, %v2793
      %v2831 = vpack.c.b16 %v2796, %v2795
      %v2832 = vpack.c.b16 %v2798, %v2797
      %v2833 = vpack.c.b16 %v2800, %v2799
      %v2834 = vpack.c.b16 %v2802, %v2801
      %2867 = vmatprep.subr.bf16.mxu0 0
      %2868 = vmatpush1.bf16.msra.mxu0 %v2810
      %2869 = vmatprep.subr.bf16.mxu0 0
      %2870 = vmatpush1.bf16.msra.mxu0 %v2809
      %2871 = vmatprep.subr.bf16.mxu0 0
      %2872 = vmatpush1.bf16.msra.mxu0 %v2808
      %2873 = vmatprep.subr.bf16.mxu0 0
      %2874 = vmatpush1.bf16.msra.mxu0 %v2807
      %2875 = vmatprep.subr.bf16.mxu0 0
      %2876 = vmatpush1.bf16.msra.mxu0 %v2806
      %2877 = vmatprep.subr.bf16.mxu0 0
      %2878 = vmatpush1.bf16.msra.mxu0 %v2805
      %2879 = vmatprep.subr.bf16.mxu0 0
      %2880 = vmatpush1.bf16.msra.mxu0 %v2804
      %2881 = vmatprep.subr.bf16.mxu0 0
      %2882 = vmatpush1.bf16.msra.mxu0 %v2803
      %2883 = vmatprep.subr.bf16.mxu0 0
      %2884 = vmatpush2.bf16.msra.mxu0 %v2818
      %2885 = vmatprep.subr.bf16.mxu0 0
      %2886 = vmatpush2.bf16.msra.mxu0 %v2817
      %2887 = vmatprep.subr.bf16.mxu0 0
      %2888 = vmatpush2.bf16.msra.mxu0 %v2816
      %2889 = vmatprep.subr.bf16.mxu0 0
      %2890 = vmatpush2.bf16.msra.mxu0 %v2815
      %2891 = vmatprep.subr.bf16.mxu0 0
      %2892 = vmatpush2.bf16.msra.mxu0 %v2814
      %2893 = vmatprep.subr.bf16.mxu0 0
      %2894 = vmatpush2.bf16.msra.mxu0 %v2813
      %2895 = vmatprep.subr.bf16.mxu0 0
      %2896 = vmatpush2.bf16.msra.mxu0 %v2812
      %2897 = vmatprep.subr.bf16.mxu0 0
      %2898 = vmatpush2.bf16.msra.mxu0 %v2811
      %2899 = vmatprep.mubr.bf16.mxu0 %v2601
      %2900 = vmatmul.mubr.bf16.gmra.mxu0 %v2600
      %v2901 = vpop.f32.mrf.mxu0
      %v2902 = vadd.f32 %v2673, %v2901
      %v2903 = vpop.f32.mrf.mxu0
      %v2904 = vpop.f32.mrf.mxu0
      %v2905 = vpop.f32.mrf.mxu0
      %2906 = vdwg.mxu0
      %2907 = vmatprep.subr.bf16.mxu0 0
      %2908 = vmatpush1.bf16.msra.mxu0 %v2826
      %2909 = vmatprep.subr.bf16.mxu0 0
      %2910 = vmatpush1.bf16.msra.mxu0 %v2825
      %2911 = vmatprep.subr.bf16.mxu0 0
      %2912 = vmatpush1.bf16.msra.mxu0 %v2824
      %2913 = vmatprep.subr.bf16.mxu0 0
      %2914 = vmatpush1.bf16.msra.mxu0 %v2823
      %2915 = vmatprep.subr.bf16.mxu0 0
      %2916 = vmatpush1.bf16.msra.mxu0 %v2822
      %2917 = vmatprep.subr.bf16.mxu0 0
      %2918 = vmatpush1.bf16.msra.mxu0 %v2821
      %2919 = vmatprep.subr.bf16.mxu0 0
      %2920 = vmatpush1.bf16.msra.mxu0 %v2820
      %2921 = vmatprep.subr.bf16.mxu0 0
      %2922 = vmatpush1.bf16.msra.mxu0 %v2819
      %2923 = vmatprep.subr.bf16.mxu0 0
      %2924 = vmatpush2.bf16.msra.mxu0 %v2834
      %2925 = vmatprep.subr.bf16.mxu0 0
      %2926 = vmatpush2.bf16.msra.mxu0 %v2833
      %2927 = vmatprep.subr.bf16.mxu0 0
      %2928 = vmatpush2.bf16.msra.mxu0 %v2832
      %2929 = vmatprep.subr.bf16.mxu0 0
      %2930 = vmatpush2.bf16.msra.mxu0 %v2831
      %2931 = vmatprep.subr.bf16.mxu0 0
      %2932 = vmatpush2.bf16.msra.mxu0 %v2830
      %2933 = vmatprep.subr.bf16.mxu0 0
      %2934 = vmatpush2.bf16.msra.mxu0 %v2829
      %2935 = vmatprep.subr.bf16.mxu0 0
      %2936 = vmatpush2.bf16.msra.mxu0 %v2828
      %2937 = vmatprep.subr.bf16.mxu0 0
      %2938 = vmatpush2.bf16.msra.mxu0 %v2827
      %2939 = vmatprep.mubr.bf16.mxu0 %v2603
      %2940 = vmatmul.mubr.bf16.gmra.mxu0 %v2602
      %v2941 = vpop.f32.mrf.mxu0
      %v2942 = vadd.f32 %v2902, %v2941
      %v2943 = vpop.f32.mrf.mxu0
      %v2944 = vpop.f32.mrf.mxu0
      %v2945 = vpop.f32.mrf.mxu0
      %2946 = vdwg.mxu0
      %v2947 = vadd.f32 %v2239, %v2942
      %2948 = vst [vmem:[#allocation2] sm:$0x1f] %v2947
      %p2949 = scmp.eq.s32.totalorder %s34, 1
      // Predicated region
      $region97: #{clip_vision_tower_forward.1} parent=91 // pred_check
        %p2950 = pneg %p2949
      $region98: #{clip_vision_tower_forward.1} parent=91 // pred_check_branch
        %2952 = sbr.rel (%p2950) target = $region100
      $region99: #{clip_vision_tower_forward.1} parent=91 // pred_region
        %2953 = vst [vmem:[%s783] sm:$0x1f] %v2947
      $region100: #{clip_vision_tower_forward.1} parent=91 // pred_fallthru
        _
      %p2954 = scmp.lt.s32.totalorder %s33, 1
      %s2955 = scalar_select %p2954, %s33, 1
      %s2956 = smul.addr %s2955, 8
      %s2957 = scalar_lea.vmem %s18, %s2956
      // Predicated region
      $region101: #{clip_vision_tower_forward.1} parent=91 // pred_check
        %p2958 = pneg %p502
      $region102: #{clip_vision_tower_forward.1} parent=91 // pred_check_branch
        %2960 = sbr.rel (%p2958) target = $region104
      $region103: #{clip_vision_tower_forward.1} parent=91 // pred_region
        _
      $region104: #{clip_vision_tower_forward.1} parent=91 // pred_fallthru
        _
    $region92: #{clip_vision_tower_forward.1} parent=5 // pred_fallthru
      _
    %p2961 = scmp.le.s32.totalorder 2, %s24
    // Predicated region
    $region105: #{clip_vision_tower_forward.1} parent=5 // pred_check
      %p2962 = pneg %p2961
    $region106: #{clip_vision_tower_forward.1} parent=5 // pred_check_branch
      %2964 = sbr.rel (%p2962) target = $region108
    $region107: #{clip_vision_tower_forward.1} parent=5 // pred_region
      %s2965 = ssub.s32 %s24, 2
      // Predicated region
      $region109: #{clip_vision_tower_forward.1} parent=107 // pred_check
        %p2966 = pneg %p508
      $region110: #{clip_vision_tower_forward.1} parent=107 // pred_check_branch
        %2968 = sbr.rel (%p2966) target = $region112
      $region111: #{clip_vision_tower_forward.1} parent=107 // pred_region
        %p2969 = scmp.lt.s32.totalorder %s35, 1
        %s2970 = scalar_select %p2969, %s35, 1
        %s2971 = smul.addr %s2970, 8
        %s2972 = scalar_lea.vmem %s18, %s2971
      $region112: #{clip_vision_tower_forward.1} parent=107 // pred_fallthru
        _
    $region108: #{clip_vision_tower_forward.1} parent=5 // pred_fallthru
      _
  $region6: #{clip_vision_tower_forward.1} parent=0 // loop_footer
    %s28 = sadd.s32 1, %s24
  $region7: #{clip_vision_tower_forward.1} parent=0 // loop_footer_branch
    %23 = sbr.rel target = $region3
  $region8: #{clip_vision_tower_forward.1} parent=0 // loop_exit
    _

</llo_original>
